<compile_context>
chip_gen: v7x
topology: tpu7x:2x2x1
jax: 0.10.0
libtpu: 0.0.40
codegen_flags: <defaults>
</compile_context>

<pallas_src>
import functools

import jax
import jax.numpy as jnp
from jax.experimental import pallas as pl
from jax.experimental.pallas import tpu as pltpu

P_DROP = 0.3
TOTAL_W = 1024 + 512 + 256   # total dropout features per row (for unique ids)
BM_CAP = 512                 # batch-tile cap (fits easily in 32 MiB VMEM)


def _round_up(n, m):
    return (n + m - 1) // m * m


# ----------------------------------------------------------------------------
# Stateless in-kernel uniform(0,1) via an integer hash (TPU + interpret safe).
# ----------------------------------------------------------------------------
def _uniform01(shape, base_row, col_offset, seed_i32):
    rows = jax.lax.broadcasted_iota(jnp.int32, shape, 0) + base_row
    cols = jax.lax.broadcasted_iota(jnp.int32, shape, 1)
    idx = (rows * TOTAL_W + col_offset + cols).astype(jnp.uint32)
    x = idx ^ (seed_i32.astype(jnp.uint32) * jnp.uint32(0x9E3779B9))
    # lowbias32-style avalanche (wrapping u32 mul, logical shifts).
    x = (x ^ (x >> 16)) * jnp.uint32(0x7FEB352D)
    x = (x ^ (x >> 15)) * jnp.uint32(0x846CA68B)
    x = x ^ (x >> 16)
    mant = (x & jnp.uint32(0x7FFFFF)).astype(jnp.int32).astype(jnp.float32)
    return mant * jnp.float32(1.0 / (1 << 23))


def discriminator_kernel(
    seed_ref,                                    # scalar-prefetch: (1,) int32
    x_ref,                                       # (bm, 784) bf16
    w1_ref, s1_ref, b1_ref,                      # int8 (784,1024), f32 (1,1024) x2
    w2_ref, s2_ref, b2_ref,
    w3_ref, s3_ref, b3_ref,
    w4_ref, b4_ref,                              # bf16 (1,256), f32 (1,1)
    o_ref,                                       # (bm, 1) f32
    *, training: bool, block_m: int,
):
    base_row = pl.program_id(0) * block_m
    seed = seed_ref[0]
    inv_keep = jnp.float32(1.0 / (1.0 - P_DROP))

    def dense_q(h_f32, wq_ref, s_ref, b_ref):
        # int8 -> bf16 dequant (scale folded after the dot), f32 MXU accumulation.
        w = wq_ref[...].astype(jnp.int32).astype(jnp.float32).astype(jnp.bfloat16)
        y = jnp.dot(h_f32.astype(jnp.bfloat16), w,
                    preferred_element_type=jnp.float32)
        return y * s_ref[...] + b_ref[...]

    def relu_dropout(h, col_offset):
        h = jnp.maximum(h, 0.0)
        if training:
            u = _uniform01(h.shape, base_row, col_offset, seed)
            h = jnp.where(u >= jnp.float32(P_DROP), h * inv_keep, 0.0)
        return h

    x = x_ref[...]                                            # bf16, no-op recast below
    h = relu_dropout(dense_q(x, w1_ref, s1_ref, b1_ref), 0)
    h = relu_dropout(dense_q(h, w2_ref, s2_ref, b2_ref), 1024)
    h = relu_dropout(dense_q(h, w3_ref, s3_ref, b3_ref), 1024 + 512)

    # Final 256 -> 1 layer: broadcast multiply + lane reduce (no 128-lane pad).
    w4 = w4_ref[...].astype(jnp.float32)                      # (1, 256)
    logits = jnp.sum(h * w4, axis=-1, keepdims=True) + b4_ref[...]   # (bm, 1)
    o_ref[...] = (1.0 / (1.0 + jnp.exp(-logits))).astype(o_ref.dtype)


def _choose_bm(b):
    """Batch tile <= BM_CAP, padding-minimizing, sublane aligned (16 for bf16)."""
    n_tiles = max(1, -(-b // BM_CAP))
    bm = _round_up(max(1, -(-b // n_tiles)), 16)
    return bm, n_tiles


@functools.partial(jax.jit, static_argnames=("training",))
def discriminator_forward(x, params, seed=0, training=True):
    """x: (B, ...) with 784 features per row -> (B, 1) float32 probabilities."""
    b = x.shape[0]
    x = x.reshape(b, 784).astype(jnp.bfloat16)   # bf16 activations halve the x DMA

    bm, n_tiles = _choose_bm(b)
    bp = bm * n_tiles
    if bp != b:
        x = jnp.pad(x, ((0, bp - b), (0, 0)))

    seed_arr = jnp.full((1,), seed, dtype=jnp.int32)
    (w1q, s1, b1, w2q, s2, b2, w3q, s3, b3, w4, b4) = params

    const = lambda i, seed: (0, 0)   # weights/scales/biases: resident across tiles
    # (On v7x one could add pipeline_mode=pl.Buffered(1) to the constant specs to
    #  drop their second VMEM buffer; left at the default for portability.)

    grid_spec = pltpu.PrefetchScalarGridSpec(
        num_scalar_prefetch=1,
        grid=(n_tiles,),
        in_specs=[
            pl.BlockSpec((bm, 784), lambda i, seed: (i, 0)),             # x tile
            pl.BlockSpec((784, 1024), const), pl.BlockSpec((1, 1024), const),
            pl.BlockSpec((1, 1024), const),
            pl.BlockSpec((1024, 512), const), pl.BlockSpec((1, 512), const),
            pl.BlockSpec((1, 512), const),
            pl.BlockSpec((512, 256), const), pl.BlockSpec((1, 256), const),
            pl.BlockSpec((1, 256), const),
            pl.BlockSpec((1, 256), const),                               # w4 row
            pl.BlockSpec((1, 1), const),                                 # b4
        ],
        out_specs=pl.BlockSpec((bm, 1), lambda i, seed: (i, 0)),
    )

    out = pl.pallas_call(
        functools.partial(discriminator_kernel, training=training, block_m=bm),
        out_shape=jax.ShapeDtypeStruct((bp, 1), jnp.float32),
        grid_spec=grid_spec,
        compiler_params=pltpu.CompilerParams(
            dimension_semantics=("parallel",),          # megacore-able on v7x
            vmem_limit_bytes=32 * 1024 * 1024,
        ),
    )(seed_arr, x, w1q, s1, b1, w2q, s2, b2, w3q, s3, b3, w4, b4)

    return out if bp == b else out[:b]


# ----------------------------------------------------------------------------
# Parameter init (Xavier-uniform weights, bias = 0.01) + int8 quantization.
# ----------------------------------------------------------------------------
def _xavier_uniform(key, fan_in, fan_out):
    bound = (6.0 / (fan_in + fan_out)) ** 0.5
    return jax.random.uniform(
        key, (fan_in, fan_out), dtype=jnp.float32, minval=-bound, maxval=bound
    )


def _quantize_int8(w):
    amax = jnp.max(jnp.abs(w), axis=0, keepdims=True)          # per output channel
    scale = jnp.where(amax > 0, amax / 127.0, 1.0).astype(jnp.float32)
    wq = jnp.clip(jnp.round(w / scale), -127, 127).astype(jnp.int8)
    return wq, scale


def init_params(key):
    """Layers 1-3: (int8 W[in,out], f32 scale[1,out], f32 bias[1,out]).
    Layer 4: (bf16 W row [1,256], f32 bias [1,1])."""
    dims = [(784, 1024), (1024, 512), (512, 256), (256, 1)]
    keys = jax.random.split(key, len(dims))
    params = []
    for idx, (k, (fi, fo)) in enumerate(zip(keys, dims)):
        w = _xavier_uniform(k, fi, fo)
        bias = jnp.full((1, fo), 0.01, dtype=jnp.float32)
        if idx < 3:
            wq, scale = _quantize_int8(w)
            params += [wq, scale, bias]
        else:
            params += [w.T.astype(jnp.bfloat16), bias]          # (1,256), (1,1)
    return params


def reference_forward(x, params):
    """Pure-JAX eval-mode reference with matching (int8/bf16) numerics."""
    w1q, s1, b1, w2q, s2, b2, w3q, s3, b3, w4, b4 = params
    h = x.reshape(x.shape[0], 784).astype(jnp.bfloat16)

    def dense(h, wq, s, bb):
        w = wq.astype(jnp.float32).astype(jnp.bfloat16)
        y = jnp.dot(h.astype(jnp.bfloat16), w, preferred_element_type=jnp.float32)
        return y * s + bb

    h = jnp.maximum(dense(h, w1q, s1, b1), 0.0)
    h = jnp.maximum(dense(h, w2q, s2, b2), 0.0)
    h = jnp.maximum(dense(h, w3q, s3, b3), 0.0)
    logits = jnp.sum(h * w4.astype(jnp.float32), axis=-1, keepdims=True) + b4
    return 1.0 / (1.0 + jnp.exp(-logits))


if __name__ == "__main__":
    key = jax.random.PRNGKey(0)
    k_params, k_x = jax.random.split(key)

    params = init_params(k_params)
    x = jax.random.normal(k_x, (8, 1, 28, 28), dtype=jnp.float32)   # MNIST-like

    out_train = discriminator_forward(x, params, seed=0, training=True)
    out_eval = discriminator_forward(x, params, seed=0, training=False)
    out_train, out_eval = jax.block_until_ready((out_train, out_eval))

    for out in (out_train, out_eval):
        assert out.shape == (8, 1), out.shape
        assert out.dtype == jnp.float32
        assert bool(jnp.all(jnp.isfinite(out)))
        assert bool(jnp.all((out >= 0.0) & (out <= 1.0)))           # sigmoid range

    # Eval mode (no dropout) must match the pure-JAX reference on the same
    # quantized parameters.
    ref = jax.block_until_ready(reference_forward(x, params))
    max_err = float(jnp.max(jnp.abs(out_eval - ref)))
    assert max_err < 1e-2, f"max abs err vs reference: {max_err}"

    print("KERNEL_OK")
</pallas_src>

<mosaic_0001>
module attributes {stable_mosaic.version = 11 : i64} {
  func.func @discriminator_kernel(%arg0: i32, %arg1: memref<1xi32, #tpu.memory_space<smem>>, %arg2: memref<16x784xbf16, #tpu.memory_space<vmem>>, %arg3: memref<784x1024xi8, #tpu.memory_space<vmem>>, %arg4: memref<1x1024xf32, #tpu.memory_space<vmem>>, %arg5: memref<1x1024xf32, #tpu.memory_space<vmem>>, %arg6: memref<1024x512xi8, #tpu.memory_space<vmem>>, %arg7: memref<1x512xf32, #tpu.memory_space<vmem>>, %arg8: memref<1x512xf32, #tpu.memory_space<vmem>>, %arg9: memref<512x256xi8, #tpu.memory_space<vmem>>, %arg10: memref<1x256xf32, #tpu.memory_space<vmem>>, %arg11: memref<1x256xf32, #tpu.memory_space<vmem>>, %arg12: memref<1x256xbf16, #tpu.memory_space<vmem>>, %arg13: memref<1x1xf32, #tpu.memory_space<vmem>>, %arg14: memref<16x1xf32, #tpu.memory_space<vmem>>) attributes {dimension_semantics = [#tpu.dimension_semantics<parallel>], iteration_bounds = array<i64: 1>, scalar_prefetch = 1 : i64, scratch_operands = 0 : i64, tpu.core_type = #tpu.core_type<tc>, window_params = [{transform_indices = @transform_0, window_bounds = array<i64: 16, 784>}, {pipeline_mode = #tpu.pipeline_mode<synchronous>, transform_indices = @transform_1, window_bounds = array<i64: 784, 1024>}, {pipeline_mode = #tpu.pipeline_mode<synchronous>, transform_indices = @transform_2, window_bounds = array<i64: 1, 1024>}, {pipeline_mode = #tpu.pipeline_mode<synchronous>, transform_indices = @transform_3, window_bounds = array<i64: 1, 1024>}, {pipeline_mode = #tpu.pipeline_mode<synchronous>, transform_indices = @transform_4, window_bounds = array<i64: 1024, 512>}, {pipeline_mode = #tpu.pipeline_mode<synchronous>, transform_indices = @transform_5, window_bounds = array<i64: 1, 512>}, {pipeline_mode = #tpu.pipeline_mode<synchronous>, transform_indices = @transform_6, window_bounds = array<i64: 1, 512>}, {pipeline_mode = #tpu.pipeline_mode<synchronous>, transform_indices = @transform_7, window_bounds = array<i64: 512, 256>}, {pipeline_mode = #tpu.pipeline_mode<synchronous>, transform_indices = @transform_8, window_bounds = array<i64: 1, 256>}, {pipeline_mode = #tpu.pipeline_mode<synchronous>, transform_indices = @transform_9, window_bounds = array<i64: 1, 256>}, {pipeline_mode = #tpu.pipeline_mode<synchronous>, transform_indices = @transform_10, window_bounds = array<i64: 1, 256>}, {pipeline_mode = #tpu.pipeline_mode<synchronous>, transform_indices = @transform_11, window_bounds = array<i64: 1, 1>}, {transform_indices = @transform_12, window_bounds = array<i64: 16, 1>}]} {
    %c16_i32 = arith.constant 16 : i32
    %0 = arith.muli %arg0, %c16_i32 : i32
    %c0 = arith.constant 0 : index
    %1 = memref.load %arg1[%c0] : memref<1xi32, #tpu.memory_space<smem>>
    %c0_0 = arith.constant 0 : index
    %c0_1 = arith.constant 0 : index
    %2 = vector.load %arg2[%c0_0, %c0_1] : memref<16x784xbf16, #tpu.memory_space<vmem>>, vector<16x784xbf16>
    %c0_2 = arith.constant 0 : index
    %c0_3 = arith.constant 0 : index
    %3 = vector.load %arg3[%c0_2, %c0_3] : memref<784x1024xi8, #tpu.memory_space<vmem>>, vector<784x1024xi8>
    %4 = arith.extsi %3 : vector<784x1024xi8> to vector<784x1024xi32>
    %5 = arith.sitofp %4 : vector<784x1024xi32> to vector<784x1024xf32>
    %6 = arith.truncf %5 : vector<784x1024xf32> to vector<784x1024xbf16>
    %cst = arith.constant dense<0.000000e+00> : vector<16x1024xf32>
    %7 = tpu.matmul %2, %6, %cst {dimension_numbers = #tpu.dot_dimension_numbers<[1], [0], [0], [1], [0, 0, 1, 1], [], []>} : vector<16x784xbf16>, vector<784x1024xbf16>, vector<16x1024xf32> -> vector<16x1024xf32>
    %c0_4 = arith.constant 0 : index
    %c0_5 = arith.constant 0 : index
    %8 = vector.load %arg4[%c0_4, %c0_5] : memref<1x1024xf32, #tpu.memory_space<vmem>>, vector<1x1024xf32>
    %9 = vector.broadcast %8 : vector<1x1024xf32> to vector<16x1024xf32>
    %10 = arith.mulf %7, %9 : vector<16x1024xf32>
    %c0_6 = arith.constant 0 : index
    %c0_7 = arith.constant 0 : index
    %11 = vector.load %arg5[%c0_6, %c0_7] : memref<1x1024xf32, #tpu.memory_space<vmem>>, vector<1x1024xf32>
    %12 = vector.broadcast %11 : vector<1x1024xf32> to vector<16x1024xf32>
    %13 = arith.addf %10, %12 : vector<16x1024xf32>
    %cst_8 = arith.constant 0.000000e+00 : f32
    %14 = vector.broadcast %cst_8 : f32 to vector<16x1024xf32>
    %15 = arith.maximumf %13, %14 : vector<16x1024xf32>
    %16 = tpu.iota {dimensions = array<i32: 0>} : vector<16x1024xi32>
    %17 = vector.broadcast %0 : i32 to vector<16x1024xi32>
    %18 = arith.addi %16, %17 : vector<16x1024xi32>
    %19 = tpu.iota {dimensions = array<i32: 1>} : vector<16x1024xi32>
    %c1792_i32 = arith.constant 1792 : i32
    %20 = vector.broadcast %c1792_i32 : i32 to vector<16x1024xi32>
    %21 = arith.muli %18, %20 : vector<16x1024xi32>
    %c0_i32 = arith.constant 0 : i32
    %22 = vector.broadcast %c0_i32 : i32 to vector<16x1024xi32>
    %23 = arith.addi %21, %22 : vector<16x1024xi32>
    %24 = arith.addi %23, %19 : vector<16x1024xi32>
    %c-1640531527_i32 = arith.constant -1640531527 : i32
    %25 = arith.muli %1, %c-1640531527_i32 : i32
    %26 = vector.broadcast %25 : i32 to vector<16x1024xi32>
    %27 = arith.xori %24, %26 : vector<16x1024xi32>
    %c16_i32_9 = arith.constant 16 : i32
    %28 = vector.broadcast %c16_i32_9 : i32 to vector<16x1024xi32>
    %29 = arith.shrui %27, %28 : vector<16x1024xi32>
    %30 = arith.xori %27, %29 : vector<16x1024xi32>
    %c2146121005_i32 = arith.constant 2146121005 : i32
    %31 = vector.broadcast %c2146121005_i32 : i32 to vector<16x1024xi32>
    %32 = arith.muli %30, %31 : vector<16x1024xi32>
    %c15_i32 = arith.constant 15 : i32
    %33 = vector.broadcast %c15_i32 : i32 to vector<16x1024xi32>
    %34 = arith.shrui %32, %33 : vector<16x1024xi32>
    %35 = arith.xori %32, %34 : vector<16x1024xi32>
    %c-2073254261_i32 = arith.constant -2073254261 : i32
    %36 = vector.broadcast %c-2073254261_i32 : i32 to vector<16x1024xi32>
    %37 = arith.muli %35, %36 : vector<16x1024xi32>
    %c16_i32_10 = arith.constant 16 : i32
    %38 = vector.broadcast %c16_i32_10 : i32 to vector<16x1024xi32>
    %39 = arith.shrui %37, %38 : vector<16x1024xi32>
    %40 = arith.xori %37, %39 : vector<16x1024xi32>
    %c8388607_i32 = arith.constant 8388607 : i32
    %41 = vector.broadcast %c8388607_i32 : i32 to vector<16x1024xi32>
    %42 = arith.andi %40, %41 : vector<16x1024xi32>
    %43 = arith.sitofp %42 : vector<16x1024xi32> to vector<16x1024xf32>
    %cst_11 = arith.constant 1.1920929E-7 : f32
    %44 = vector.broadcast %cst_11 : f32 to vector<16x1024xf32>
    %45 = arith.mulf %43, %44 : vector<16x1024xf32>
    %cst_12 = arith.constant 3.000000e-01 : f32
    %46 = vector.broadcast %cst_12 : f32 to vector<16x1024xf32>
    %47 = arith.cmpf oge, %45, %46 : vector<16x1024xf32>
    %cst_13 = arith.constant 1.42857146 : f32
    %48 = vector.broadcast %cst_13 : f32 to vector<16x1024xf32>
    %49 = arith.mulf %15, %48 : vector<16x1024xf32>
    %cst_14 = arith.constant 0.000000e+00 : f32
    %50 = vector.broadcast %cst_14 : f32 to vector<16x1024xf32>
    %51 = arith.select %47, %49, %50 : vector<16x1024xi1>, vector<16x1024xf32>
    %c0_15 = arith.constant 0 : index
    %c0_16 = arith.constant 0 : index
    %52 = vector.load %arg6[%c0_15, %c0_16] : memref<1024x512xi8, #tpu.memory_space<vmem>>, vector<1024x512xi8>
    %53 = arith.extsi %52 : vector<1024x512xi8> to vector<1024x512xi32>
    %54 = arith.sitofp %53 : vector<1024x512xi32> to vector<1024x512xf32>
    %55 = arith.truncf %54 : vector<1024x512xf32> to vector<1024x512xbf16>
    %56 = arith.truncf %51 : vector<16x1024xf32> to vector<16x1024xbf16>
    %cst_17 = arith.constant dense<0.000000e+00> : vector<16x512xf32>
    %57 = tpu.matmul %56, %55, %cst_17 {dimension_numbers = #tpu.dot_dimension_numbers<[1], [0], [0], [1], [0, 0, 1, 1], [], []>} : vector<16x1024xbf16>, vector<1024x512xbf16>, vector<16x512xf32> -> vector<16x512xf32>
    %c0_18 = arith.constant 0 : index
    %c0_19 = arith.constant 0 : index
    %58 = vector.load %arg7[%c0_18, %c0_19] : memref<1x512xf32, #tpu.memory_space<vmem>>, vector<1x512xf32>
    %59 = vector.broadcast %58 : vector<1x512xf32> to vector<16x512xf32>
    %60 = arith.mulf %57, %59 : vector<16x512xf32>
    %c0_20 = arith.constant 0 : index
    %c0_21 = arith.constant 0 : index
    %61 = vector.load %arg8[%c0_20, %c0_21] : memref<1x512xf32, #tpu.memory_space<vmem>>, vector<1x512xf32>
    %62 = vector.broadcast %61 : vector<1x512xf32> to vector<16x512xf32>
    %63 = arith.addf %60, %62 : vector<16x512xf32>
    %cst_22 = arith.constant 0.000000e+00 : f32
    %64 = vector.broadcast %cst_22 : f32 to vector<16x512xf32>
    %65 = arith.maximumf %63, %64 : vector<16x512xf32>
    %66 = tpu.iota {dimensions = array<i32: 0>} : vector<16x512xi32>
    %67 = vector.broadcast %0 : i32 to vector<16x512xi32>
    %68 = arith.addi %66, %67 : vector<16x512xi32>
    %69 = tpu.iota {dimensions = array<i32: 1>} : vector<16x512xi32>
    %c1792_i32_23 = arith.constant 1792 : i32
    %70 = vector.broadcast %c1792_i32_23 : i32 to vector<16x512xi32>
    %71 = arith.muli %68, %70 : vector<16x512xi32>
    %c1024_i32 = arith.constant 1024 : i32
    %72 = vector.broadcast %c1024_i32 : i32 to vector<16x512xi32>
    %73 = arith.addi %71, %72 : vector<16x512xi32>
    %74 = arith.addi %73, %69 : vector<16x512xi32>
    %c-1640531527_i32_24 = arith.constant -1640531527 : i32
    %75 = arith.muli %1, %c-1640531527_i32_24 : i32
    %76 = vector.broadcast %75 : i32 to vector<16x512xi32>
    %77 = arith.xori %74, %76 : vector<16x512xi32>
    %c16_i32_25 = arith.constant 16 : i32
    %78 = vector.broadcast %c16_i32_25 : i32 to vector<16x512xi32>
    %79 = arith.shrui %77, %78 : vector<16x512xi32>
    %80 = arith.xori %77, %79 : vector<16x512xi32>
    %c2146121005_i32_26 = arith.constant 2146121005 : i32
    %81 = vector.broadcast %c2146121005_i32_26 : i32 to vector<16x512xi32>
    %82 = arith.muli %80, %81 : vector<16x512xi32>
    %c15_i32_27 = arith.constant 15 : i32
    %83 = vector.broadcast %c15_i32_27 : i32 to vector<16x512xi32>
    %84 = arith.shrui %82, %83 : vector<16x512xi32>
    %85 = arith.xori %82, %84 : vector<16x512xi32>
    %c-2073254261_i32_28 = arith.constant -2073254261 : i32
    %86 = vector.broadcast %c-2073254261_i32_28 : i32 to vector<16x512xi32>
    %87 = arith.muli %85, %86 : vector<16x512xi32>
    %c16_i32_29 = arith.constant 16 : i32
    %88 = vector.broadcast %c16_i32_29 : i32 to vector<16x512xi32>
    %89 = arith.shrui %87, %88 : vector<16x512xi32>
    %90 = arith.xori %87, %89 : vector<16x512xi32>
    %c8388607_i32_30 = arith.constant 8388607 : i32
    %91 = vector.broadcast %c8388607_i32_30 : i32 to vector<16x512xi32>
    %92 = arith.andi %90, %91 : vector<16x512xi32>
    %93 = arith.sitofp %92 : vector<16x512xi32> to vector<16x512xf32>
    %cst_31 = arith.constant 1.1920929E-7 : f32
    %94 = vector.broadcast %cst_31 : f32 to vector<16x512xf32>
    %95 = arith.mulf %93, %94 : vector<16x512xf32>
    %cst_32 = arith.constant 3.000000e-01 : f32
    %96 = vector.broadcast %cst_32 : f32 to vector<16x512xf32>
    %97 = arith.cmpf oge, %95, %96 : vector<16x512xf32>
    %cst_33 = arith.constant 1.42857146 : f32
    %98 = vector.broadcast %cst_33 : f32 to vector<16x512xf32>
    %99 = arith.mulf %65, %98 : vector<16x512xf32>
    %cst_34 = arith.constant 0.000000e+00 : f32
    %100 = vector.broadcast %cst_34 : f32 to vector<16x512xf32>
    %101 = arith.select %97, %99, %100 : vector<16x512xi1>, vector<16x512xf32>
    %c0_35 = arith.constant 0 : index
    %c0_36 = arith.constant 0 : index
    %102 = vector.load %arg9[%c0_35, %c0_36] : memref<512x256xi8, #tpu.memory_space<vmem>>, vector<512x256xi8>
    %103 = arith.extsi %102 : vector<512x256xi8> to vector<512x256xi32>
    %104 = arith.sitofp %103 : vector<512x256xi32> to vector<512x256xf32>
    %105 = arith.truncf %104 : vector<512x256xf32> to vector<512x256xbf16>
    %106 = arith.truncf %101 : vector<16x512xf32> to vector<16x512xbf16>
    %cst_37 = arith.constant dense<0.000000e+00> : vector<16x256xf32>
    %107 = tpu.matmul %106, %105, %cst_37 {dimension_numbers = #tpu.dot_dimension_numbers<[1], [0], [0], [1], [0, 0, 1, 1], [], []>} : vector<16x512xbf16>, vector<512x256xbf16>, vector<16x256xf32> -> vector<16x256xf32>
    %c0_38 = arith.constant 0 : index
    %c0_39 = arith.constant 0 : index
    %108 = vector.load %arg10[%c0_38, %c0_39] : memref<1x256xf32, #tpu.memory_space<vmem>>, vector<1x256xf32>
    %109 = vector.broadcast %108 : vector<1x256xf32> to vector<16x256xf32>
    %110 = arith.mulf %107, %109 : vector<16x256xf32>
    %c0_40 = arith.constant 0 : index
    %c0_41 = arith.constant 0 : index
    %111 = vector.load %arg11[%c0_40, %c0_41] : memref<1x256xf32, #tpu.memory_space<vmem>>, vector<1x256xf32>
    %112 = vector.broadcast %111 : vector<1x256xf32> to vector<16x256xf32>
    %113 = arith.addf %110, %112 : vector<16x256xf32>
    %cst_42 = arith.constant 0.000000e+00 : f32
    %114 = vector.broadcast %cst_42 : f32 to vector<16x256xf32>
    %115 = arith.maximumf %113, %114 : vector<16x256xf32>
    %116 = tpu.iota {dimensions = array<i32: 0>} : vector<16x256xi32>
    %117 = vector.broadcast %0 : i32 to vector<16x256xi32>
    %118 = arith.addi %116, %117 : vector<16x256xi32>
    %119 = tpu.iota {dimensions = array<i32: 1>} : vector<16x256xi32>
    %c1792_i32_43 = arith.constant 1792 : i32
    %120 = vector.broadcast %c1792_i32_43 : i32 to vector<16x256xi32>
    %121 = arith.muli %118, %120 : vector<16x256xi32>
    %c1536_i32 = arith.constant 1536 : i32
    %122 = vector.broadcast %c1536_i32 : i32 to vector<16x256xi32>
    %123 = arith.addi %121, %122 : vector<16x256xi32>
    %124 = arith.addi %123, %119 : vector<16x256xi32>
    %c-1640531527_i32_44 = arith.constant -1640531527 : i32
    %125 = arith.muli %1, %c-1640531527_i32_44 : i32
    %126 = vector.broadcast %125 : i32 to vector<16x256xi32>
    %127 = arith.xori %124, %126 : vector<16x256xi32>
    %c16_i32_45 = arith.constant 16 : i32
    %128 = vector.broadcast %c16_i32_45 : i32 to vector<16x256xi32>
    %129 = arith.shrui %127, %128 : vector<16x256xi32>
    %130 = arith.xori %127, %129 : vector<16x256xi32>
    %c2146121005_i32_46 = arith.constant 2146121005 : i32
    %131 = vector.broadcast %c2146121005_i32_46 : i32 to vector<16x256xi32>
    %132 = arith.muli %130, %131 : vector<16x256xi32>
    %c15_i32_47 = arith.constant 15 : i32
    %133 = vector.broadcast %c15_i32_47 : i32 to vector<16x256xi32>
    %134 = arith.shrui %132, %133 : vector<16x256xi32>
    %135 = arith.xori %132, %134 : vector<16x256xi32>
    %c-2073254261_i32_48 = arith.constant -2073254261 : i32
    %136 = vector.broadcast %c-2073254261_i32_48 : i32 to vector<16x256xi32>
    %137 = arith.muli %135, %136 : vector<16x256xi32>
    %c16_i32_49 = arith.constant 16 : i32
    %138 = vector.broadcast %c16_i32_49 : i32 to vector<16x256xi32>
    %139 = arith.shrui %137, %138 : vector<16x256xi32>
    %140 = arith.xori %137, %139 : vector<16x256xi32>
    %c8388607_i32_50 = arith.constant 8388607 : i32
    %141 = vector.broadcast %c8388607_i32_50 : i32 to vector<16x256xi32>
    %142 = arith.andi %140, %141 : vector<16x256xi32>
    %143 = arith.sitofp %142 : vector<16x256xi32> to vector<16x256xf32>
    %cst_51 = arith.constant 1.1920929E-7 : f32
    %144 = vector.broadcast %cst_51 : f32 to vector<16x256xf32>
    %145 = arith.mulf %143, %144 : vector<16x256xf32>
    %cst_52 = arith.constant 3.000000e-01 : f32
    %146 = vector.broadcast %cst_52 : f32 to vector<16x256xf32>
    %147 = arith.cmpf oge, %145, %146 : vector<16x256xf32>
    %cst_53 = arith.constant 1.42857146 : f32
    %148 = vector.broadcast %cst_53 : f32 to vector<16x256xf32>
    %149 = arith.mulf %115, %148 : vector<16x256xf32>
    %cst_54 = arith.constant 0.000000e+00 : f32
    %150 = vector.broadcast %cst_54 : f32 to vector<16x256xf32>
    %151 = arith.select %147, %149, %150 : vector<16x256xi1>, vector<16x256xf32>
    %c0_55 = arith.constant 0 : index
    %c0_56 = arith.constant 0 : index
    %152 = vector.load %arg12[%c0_55, %c0_56] : memref<1x256xbf16, #tpu.memory_space<vmem>>, vector<1x256xbf16>
    %153 = arith.extf %152 : vector<1x256xbf16> to vector<1x256xf32>
    %154 = vector.broadcast %153 : vector<1x256xf32> to vector<16x256xf32>
    %155 = arith.mulf %151, %154 : vector<16x256xf32>
    %cst_57 = arith.constant dense<0.000000e+00> : vector<16xf32>
    %156 = vector.multi_reduction <add>, %155, %cst_57 [1] : vector<16x256xf32> to vector<16xf32>
    %157 = vector.shape_cast %156 : vector<16xf32> to vector<16x1xf32>
    %c0_58 = arith.constant 0 : index
    %c0_59 = arith.constant 0 : index
    %158 = vector.load %arg13[%c0_58, %c0_59] : memref<1x1xf32, #tpu.memory_space<vmem>>, vector<1x1xf32>
    %159 = vector.broadcast %158 : vector<1x1xf32> to vector<16x1xf32>
    %160 = arith.addf %157, %159 : vector<16x1xf32>
    %cst_60 = arith.constant 0.000000e+00 : f32
    %161 = vector.broadcast %cst_60 : f32 to vector<16x1xf32>
    %162 = arith.subf %161, %160 : vector<16x1xf32>
    %163 = math.exp %162 : vector<16x1xf32>
    %cst_61 = arith.constant 1.000000e+00 : f32
    %164 = vector.broadcast %cst_61 : f32 to vector<16x1xf32>
    %165 = arith.addf %164, %163 : vector<16x1xf32>
    %cst_62 = arith.constant 1.000000e+00 : f32
    %166 = vector.broadcast %cst_62 : f32 to vector<16x1xf32>
    %167 = arith.divf %166, %165 : vector<16x1xf32>
    %c0_63 = arith.constant 0 : index
    %c0_64 = arith.constant 0 : index
    %168 = vector.load %arg14[%c0_63, %c0_64] : memref<16x1xf32, #tpu.memory_space<vmem>>, vector<16x1xf32>
    tpu.vector_store %arg14[%c0_63, %c0_64], %167 {strides = array<i32>} : memref<16x1xf32, #tpu.memory_space<vmem>>, vector<16x1xf32>,
    return
  }
  func.func @transform_0(%arg0: i32, %arg1: memref<1xi32, #tpu.memory_space<smem>>) -> (i32, i32) {
    %c0_i32 = arith.constant 0 : i32
    %c0_i32_0 = arith.constant 0 : i32
    return %arg0, %c0_i32 : i32, i32
  }
  func.func @transform_1(%arg0: i32, %arg1: memref<1xi32, #tpu.memory_space<smem>>) -> (i32, i32) {
    %c0_i32 = arith.constant 0 : i32
    %c0_i32_0 = arith.constant 0 : i32
    %c0_i32_1 = arith.constant 0 : i32
    return %c0_i32, %c0_i32_0 : i32, i32
  }
  func.func @transform_2(%arg0: i32, %arg1: memref<1xi32, #tpu.memory_space<smem>>) -> (i32, i32) {
    %c0_i32 = arith.constant 0 : i32
    %c0_i32_0 = arith.constant 0 : i32
    %c0_i32_1 = arith.constant 0 : i32
    return %c0_i32, %c0_i32_0 : i32, i32
  }
  func.func @transform_3(%arg0: i32, %arg1: memref<1xi32, #tpu.memory_space<smem>>) -> (i32, i32) {
    %c0_i32 = arith.constant 0 : i32
    %c0_i32_0 = arith.constant 0 : i32
    %c0_i32_1 = arith.constant 0 : i32
    return %c0_i32, %c0_i32_0 : i32, i32
  }
  func.func @transform_4(%arg0: i32, %arg1: memref<1xi32, #tpu.memory_space<smem>>) -> (i32, i32) {
    %c0_i32 = arith.constant 0 : i32
    %c0_i32_0 = arith.constant 0 : i32
    %c0_i32_1 = arith.constant 0 : i32
    return %c0_i32, %c0_i32_0 : i32, i32
  }
  func.func @transform_5(%arg0: i32, %arg1: memref<1xi32, #tpu.memory_space<smem>>) -> (i32, i32) {
    %c0_i32 = arith.constant 0 : i32
    %c0_i32_0 = arith.constant 0 : i32
    %c0_i32_1 = arith.constant 0 : i32
    return %c0_i32, %c0_i32_0 : i32, i32
  }
  func.func @transform_6(%arg0: i32, %arg1: memref<1xi32, #tpu.memory_space<smem>>) -> (i32, i32) {
    %c0_i32 = arith.constant 0 : i32
    %c0_i32_0 = arith.constant 0 : i32
    %c0_i32_1 = arith.constant 0 : i32
    return %c0_i32, %c0_i32_0 : i32, i32
  }
  func.func @transform_7(%arg0: i32, %arg1: memref<1xi32, #tpu.memory_space<smem>>) -> (i32, i32) {
    %c0_i32 = arith.constant 0 : i32
    %c0_i32_0 = arith.constant 0 : i32
    %c0_i32_1 = arith.constant 0 : i32
    return %c0_i32, %c0_i32_0 : i32, i32
  }
  func.func @transform_8(%arg0: i32, %arg1: memref<1xi32, #tpu.memory_space<smem>>) -> (i32, i32) {
    %c0_i32 = arith.constant 0 : i32
    %c0_i32_0 = arith.constant 0 : i32
    %c0_i32_1 = arith.constant 0 : i32
    return %c0_i32, %c0_i32_0 : i32, i32
  }
  func.func @transform_9(%arg0: i32, %arg1: memref<1xi32, #tpu.memory_space<smem>>) -> (i32, i32) {
    %c0_i32 = arith.constant 0 : i32
    %c0_i32_0 = arith.constant 0 : i32
    %c0_i32_1 = arith.constant 0 : i32
    return %c0_i32, %c0_i32_0 : i32, i32
  }
  func.func @transform_10(%arg0: i32, %arg1: memref<1xi32, #tpu.memory_space<smem>>) -> (i32, i32) {
    %c0_i32 = arith.constant 0 : i32
    %c0_i32_0 = arith.constant 0 : i32
    %c0_i32_1 = arith.constant 0 : i32
    return %c0_i32, %c0_i32_0 : i32, i32
  }
  func.func @transform_11(%arg0: i32, %arg1: memref<1xi32, #tpu.memory_space<smem>>) -> (i32, i32) {
    %c0_i32 = arith.constant 0 : i32
    %c0_i32_0 = arith.constant 0 : i32
    %c0_i32_1 = arith.constant 0 : i32
    return %c0_i32, %c0_i32_0 : i32, i32
  }
  func.func @transform_12(%arg0: i32, %arg1: memref<1xi32, #tpu.memory_space<smem>>) -> (i32, i32) {
    %c0_i32 = arith.constant 0 : i32
    %c0_i32_0 = arith.constant 0 : i32
    return %arg0, %c0_i32 : i32, i32
  }
}

</mosaic_0001>

<llo_original>
// kernel: discriminator_forward.1
$region0: #{discriminator_forward.1}
  #allocation0 [shape = 'u32[]', space=smem, size = 0x4, offset = 0x4, fixed_abs, tag = 'smem constant byte address 0x4 - core index']
  #allocation1 [shape = 'u32[144,128]{1,0:T(1,128)}', space=vmem, size = 0x12000, scoped, tag = 'internal scratch']
  #allocation2 [shape = 's32[1]{0}', space=sflag, size = 0x4, scoped, tag = 'scoped memory for discriminator_forward.1']
  #allocation3 [shape = 's32[1]{0:T(128)S(6)}', space=smem, size = 0x200, scoped, tag = 'prefetched SMEM operand 0']
  #allocation4 [shape = 'f32[1,1]{1,0:T(1,128)S(1)}', space=vmem, size = 0x200, scoped, tag = 'scoped memory for discriminator_forward.1']
  %s0 = inlined_call_operand.<no memory space> [shape: s32[1], index: 0, kind: input, shape index: {}]
  %s1 = inlined_call_operand.vmem [shape: bf16[16,784], index: 1, kind: input, shape index: {}]
  %s2 = inlined_call_operand.hbm [shape: s8[784,1024], index: 2, kind: input, shape index: {}]
  %s3 = inlined_call_operand.vmem [shape: f32[1,1024], index: 3, kind: input, shape index: {}]
  %s4 = inlined_call_operand.vmem [shape: f32[1,1024], index: 4, kind: input, shape index: {}]
  %s5 = inlined_call_operand.hbm [shape: s8[1024,512], index: 5, kind: input, shape index: {}]
  %s6 = inlined_call_operand.vmem [shape: f32[1,512], index: 6, kind: input, shape index: {}]
  %s7 = inlined_call_operand.vmem [shape: f32[1,512], index: 7, kind: input, shape index: {}]
  %s8 = inlined_call_operand.vmem [shape: s8[512,256], index: 8, kind: input, shape index: {}]
  %s9 = inlined_call_operand.vmem [shape: f32[1,256], index: 9, kind: input, shape index: {}]
  %s10 = inlined_call_operand.vmem [shape: f32[1,256], index: 10, kind: input, shape index: {}]
  %s11 = inlined_call_operand.vmem [shape: bf16[1,256], index: 11, kind: input, shape index: {}]
  %s12 = inlined_call_operand.<no memory space> [shape: f32[1,1], index: 12, kind: input, shape index: {}]
  %s13 = inlined_call_operand.vmem [shape: f32[16,1], index: 13, kind: output, shape index: {}]
  %s14 = sld [smem:[#allocation0]]
  $region66: #{discriminator_forward.1} parent=0
    _
  %s16 = ssub.s32 1, %s14
  %s17 = scalar_select 0, %s16, %s14
  %18 = sst [smem:[#allocation3]] %s0
  %v19 = vstv %s12
  %20 = vst [vmem:[#allocation4] sm:$0x1] %v19
  $region1: #{discriminator_forward.1} parent=0
    #allocation5 [shape = 'u8[802816]{0}', space=vmem, size = 0xc4000, scoped, tag = 'input window, operand 2, single buffered']
    #allocation6 [shape = 's32[1]{0}', space=sflag, size = 0x4, scoped, tag = 'scoped memory for discriminator_forward.1']
    #allocation7 [shape = 'u8[524288]{0}', space=vmem, size = 0x80000, scoped, tag = 'input window, operand 5, single buffered']
    #allocation8 [shape = 's32[1]{0}', space=sflag, size = 0x4, scoped, tag = 'scoped memory for discriminator_forward.1']
    %21 = vsyncpa [#allocation6], 0
    %22 = vsyncpa [#allocation8], 0
    // Predicated region
    $region2: #{discriminator_forward.1} parent=1 // pred_check
      _
    $region3: #{discriminator_forward.1} parent=1 // pred_check_branch
      %24 = sbr.rel (0) target = $region5
    $region4: #{discriminator_forward.1} parent=1 // pred_region
      _
    $region5: #{discriminator_forward.1} parent=1 // pred_fallthru
      _
    // Predicated region
    $region6: #{discriminator_forward.1} parent=1 // pred_check
      _
    $region7: #{discriminator_forward.1} parent=1 // pred_check_branch
      %26 = sbr.rel (0) target = $region9
    $region8: #{discriminator_forward.1} parent=1 // pred_region
      %s28 = ssub.s32 25088, 25088
      %29 = vsyncadd [#allocation6], %s28
      %s30 = sshll.u32 [#allocation5], 4
      %s31 = int_to_ptr.vmem [resolvable:$true] %s30
      %36 = dma.hbm_to_vmem [thread:$0]  %s2, 25088, %s31, [#allocation6], 256, 256, 16
    $region9: #{discriminator_forward.1} parent=1 // pred_fallthru
      _
    // Predicated region
    $region10: #{discriminator_forward.1} parent=1 // pred_check
      _
    $region11: #{discriminator_forward.1} parent=1 // pred_check_branch
      %38 = sbr.rel (0) target = $region13
    $region12: #{discriminator_forward.1} parent=1 // pred_region
      _
    $region13: #{discriminator_forward.1} parent=1 // pred_fallthru
      _
    // Predicated region
    $region14: #{discriminator_forward.1} parent=1 // pred_check
      _
    $region15: #{discriminator_forward.1} parent=1 // pred_check_branch
      %40 = sbr.rel (0) target = $region17
    $region16: #{discriminator_forward.1} parent=1 // pred_region
      _
    $region17: #{discriminator_forward.1} parent=1 // pred_fallthru
      _
    // Predicated region
    $region18: #{discriminator_forward.1} parent=1 // pred_check
      _
    $region19: #{discriminator_forward.1} parent=1 // pred_check_branch
      %42 = sbr.rel (0) target = $region21
    $region20: #{discriminator_forward.1} parent=1 // pred_region
      %s44 = ssub.s32 16384, 16384
      %45 = vsyncadd [#allocation8], %s44
      %s46 = sshll.u32 [#allocation7], 4
      %s47 = int_to_ptr.vmem [resolvable:$true] %s46
      %52 = dma.hbm_to_vmem [thread:$0]  %s5, 16384, %s47, [#allocation8], 512, 512, 32
    $region21: #{discriminator_forward.1} parent=1 // pred_fallthru
      _
    // Predicated region
    $region22: #{discriminator_forward.1} parent=1 // pred_check
      _
    $region23: #{discriminator_forward.1} parent=1 // pred_check_branch
      %54 = sbr.rel (0) target = $region25
    $region24: #{discriminator_forward.1} parent=1 // pred_region
      _
    $region25: #{discriminator_forward.1} parent=1 // pred_fallthru
      _
    // Predicated region
    $region26: #{discriminator_forward.1} parent=1 // pred_check
      _
    $region27: #{discriminator_forward.1} parent=1 // pred_check_branch
      %56 = sbr.rel (0) target = $region29
    $region28: #{discriminator_forward.1} parent=1 // pred_region
      _
    $region29: #{discriminator_forward.1} parent=1 // pred_fallthru
      _
    // Predicated region
    $region30: #{discriminator_forward.1} parent=1 // pred_check
      _
    $region31: #{discriminator_forward.1} parent=1 // pred_check_branch
      %58 = sbr.rel (0) target = $region33
    $region32: #{discriminator_forward.1} parent=1 // pred_region
      _
    $region33: #{discriminator_forward.1} parent=1 // pred_fallthru
      _
    // Predicated region
    $region34: #{discriminator_forward.1} parent=1 // pred_check
      _
    $region35: #{discriminator_forward.1} parent=1 // pred_check_branch
      %60 = sbr.rel (0) target = $region37
    $region36: #{discriminator_forward.1} parent=1 // pred_region
      _
    $region37: #{discriminator_forward.1} parent=1 // pred_fallthru
      _
    // Predicated region
    $region38: #{discriminator_forward.1} parent=1 // pred_check
      _
    $region39: #{discriminator_forward.1} parent=1 // pred_check_branch
      %62 = sbr.rel (0) target = $region41
    $region40: #{discriminator_forward.1} parent=1 // pred_region
      _
    $region41: #{discriminator_forward.1} parent=1 // pred_fallthru
      _
    // Predicated region
    $region42: #{discriminator_forward.1} parent=1 // pred_check
      _
    $region43: #{discriminator_forward.1} parent=1 // pred_check_branch
      %64 = sbr.rel (0) target = $region45
    $region44: #{discriminator_forward.1} parent=1 // pred_region
      _
    $region45: #{discriminator_forward.1} parent=1 // pred_fallthru
      _
    // Predicated region
    $region46: #{discriminator_forward.1} parent=1 // pred_check
      _
    $region47: #{discriminator_forward.1} parent=1 // pred_check_branch
      %66 = sbr.rel (0) target = $region49
    $region48: #{discriminator_forward.1} parent=1 // pred_region
      _
    $region49: #{discriminator_forward.1} parent=1 // pred_fallthru
      _
    // Predicated region
    $region50: #{discriminator_forward.1} parent=1 // pred_check
      _
    $region51: #{discriminator_forward.1} parent=1 // pred_check_branch
      %68 = sbr.rel (0) target = $region53
    $region52: #{discriminator_forward.1} parent=1 // pred_region
      %69 = dma.done [#allocation6], 25088
    $region53: #{discriminator_forward.1} parent=1 // pred_fallthru
      _
    // Predicated region
    $region54: #{discriminator_forward.1} parent=1 // pred_check
      _
    $region55: #{discriminator_forward.1} parent=1 // pred_check_branch
      %71 = sbr.rel (0) target = $region57
    $region56: #{discriminator_forward.1} parent=1 // pred_region
      %72 = dma.done [#allocation8], 16384
    $region57: #{discriminator_forward.1} parent=1 // pred_fallthru
      _
    %s74 = smul.u32 0, 16
    %s75 = sld [smem:[#allocation3]]
    %v76 = vld [vmem:[%s1] sm:$0xff]
    %v77 = vld [vmem:[%s1 + $0x8] sm:$0xff]
    %v78 = vld [vmem:[%s1 + $0x10] sm:$0xff]
    %v79 = vld [vmem:[%s1 + $0x18] sm:$0xf]
    %v80 = vld [vmem:[%s1 + $0x1c] sm:$0xff]
    %v81 = vld [vmem:[%s1 + $0x24] sm:$0xff]
    %v82 = vld [vmem:[%s1 + $0x2c] sm:$0xff]
    %v83 = vld [vmem:[%s1 + $0x34] sm:$0xf]
    %v84 = vld [vmem:[#allocation5] sm:$0xff]
    %v85 = vld [vmem:[#allocation5 + $0x8] sm:$0xff]
    %v86 = vld [vmem:[#allocation5 + $0x10] sm:$0xff]
    %v87 = vld [vmem:[#allocation5 + $0x18] sm:$0xff]
    %v88 = vld [vmem:[#allocation5 + $0x20] sm:$0xff]
    %v89 = vld [vmem:[#allocation5 + $0x28] sm:$0xff]
    %v90 = vld [vmem:[#allocation5 + $0x30] sm:$0xff]
    %v91 = vld [vmem:[#allocation5 + $0x38] sm:$0xff]
    %v92 = vld [vmem:[#allocation5 + $0x40] sm:$0xff]
    %v93 = vld [vmem:[#allocation5 + $0x48] sm:$0xff]
    %v94 = vld [vmem:[#allocation5 + $0x50] sm:$0xff]
    %v95 = vld [vmem:[#allocation5 + $0x58] sm:$0xff]
    %v96 = vld [vmem:[#allocation5 + $0x60] sm:$0xff]
    %v97 = vld [vmem:[#allocation5 + $0x68] sm:$0xff]
    %v98 = vld [vmem:[#allocation5 + $0x70] sm:$0xff]
    %v99 = vld [vmem:[#allocation5 + $0x78] sm:$0xff]
    %v100 = vld [vmem:[#allocation5 + $0x80] sm:$0xff]
    %v101 = vld [vmem:[#allocation5 + $0x88] sm:$0xff]
    %v102 = vld [vmem:[#allocation5 + $0x90] sm:$0xff]
    %v103 = vld [vmem:[#allocation5 + $0x98] sm:$0xff]
    %v104 = vld [vmem:[#allocation5 + $0xa0] sm:$0xff]
    %v105 = vld [vmem:[#allocation5 + $0xa8] sm:$0xff]
    %v106 = vld [vmem:[#allocation5 + $0xb0] sm:$0xff]
    %v107 = vld [vmem:[#allocation5 + $0xb8] sm:$0xff]
    %v108 = vld [vmem:[#allocation5 + $0xc0] sm:$0xff]
    %v109 = vld [vmem:[#allocation5 + $0xc8] sm:$0xff]
    %v110 = vld [vmem:[#allocation5 + $0xd0] sm:$0xff]
    %v111 = vld [vmem:[#allocation5 + $0xd8] sm:$0xff]
    %v112 = vld [vmem:[#allocation5 + $0xe0] sm:$0xff]
    %v113 = vld [vmem:[#allocation5 + $0xe8] sm:$0xff]
    %v114 = vld [vmem:[#allocation5 + $0xf0] sm:$0xff]
    %v115 = vld [vmem:[#allocation5 + $0xf8] sm:$0xff]
    %v116 = vld [vmem:[#allocation5 + $0x100] sm:$0xff]
    %v117 = vld [vmem:[#allocation5 + $0x108] sm:$0xff]
    %v118 = vld [vmem:[#allocation5 + $0x110] sm:$0xff]
    %v119 = vld [vmem:[#allocation5 + $0x118] sm:$0xff]
    %v120 = vld [vmem:[#allocation5 + $0x120] sm:$0xff]
    %v121 = vld [vmem:[#allocation5 + $0x128] sm:$0xff]
    %v122 = vld [vmem:[#allocation5 + $0x130] sm:$0xff]
    %v123 = vld [vmem:[#allocation5 + $0x138] sm:$0xff]
    %v124 = vld [vmem:[#allocation5 + $0x140] sm:$0xff]
    %v125 = vld [vmem:[#allocation5 + $0x148] sm:$0xff]
    %v126 = vld [vmem:[#allocation5 + $0x150] sm:$0xff]
    %v127 = vld [vmem:[#allocation5 + $0x158] sm:$0xff]
    %v128 = vld [vmem:[#allocation5 + $0x160] sm:$0xff]
    %v129 = vld [vmem:[#allocation5 + $0x168] sm:$0xff]
    %v130 = vld [vmem:[#allocation5 + $0x170] sm:$0xff]
    %v131 = vld [vmem:[#allocation5 + $0x178] sm:$0xff]
    %v132 = vld [vmem:[#allocation5 + $0x180] sm:$0xff]
    %v133 = vld [vmem:[#allocation5 + $0x188] sm:$0xff]
    %v134 = vld [vmem:[#allocation5 + $0x190] sm:$0xff]
    %v135 = vld [vmem:[#allocation5 + $0x198] sm:$0xff]
    %v136 = vld [vmem:[#allocation5 + $0x1a0] sm:$0xff]
    %v137 = vld [vmem:[#allocation5 + $0x1a8] sm:$0xff]
    %v138 = vld [vmem:[#allocation5 + $0x1b0] sm:$0xff]
    %v139 = vld [vmem:[#allocation5 + $0x1b8] sm:$0xff]
    %v140 = vld [vmem:[#allocation5 + $0x1c0] sm:$0xff]
    %v141 = vld [vmem:[#allocation5 + $0x1c8] sm:$0xff]
    %v142 = vld [vmem:[#allocation5 + $0x1d0] sm:$0xff]
    %v143 = vld [vmem:[#allocation5 + $0x1d8] sm:$0xff]
    %v144 = vld [vmem:[#allocation5 + $0x1e0] sm:$0xff]
    %v145 = vld [vmem:[#allocation5 + $0x1e8] sm:$0xff]
    %v146 = vld [vmem:[#allocation5 + $0x1f0] sm:$0xff]
    %v147 = vld [vmem:[#allocation5 + $0x1f8] sm:$0xff]
    %v148 = vld [vmem:[#allocation5 + $0x200] sm:$0xff]
    %v149 = vld [vmem:[#allocation5 + $0x208] sm:$0xff]
    %v150 = vld [vmem:[#allocation5 + $0x210] sm:$0xff]
    %v151 = vld [vmem:[#allocation5 + $0x218] sm:$0xff]
    %v152 = vld [vmem:[#allocation5 + $0x220] sm:$0xff]
    %v153 = vld [vmem:[#allocation5 + $0x228] sm:$0xff]
    %v154 = vld [vmem:[#allocation5 + $0x230] sm:$0xff]
    %v155 = vld [vmem:[#allocation5 + $0x238] sm:$0xff]
    %v156 = vld [vmem:[#allocation5 + $0x240] sm:$0xff]
    %v157 = vld [vmem:[#allocation5 + $0x248] sm:$0xff]
    %v158 = vld [vmem:[#allocation5 + $0x250] sm:$0xff]
    %v159 = vld [vmem:[#allocation5 + $0x258] sm:$0xff]
    %v160 = vld [vmem:[#allocation5 + $0x260] sm:$0xff]
    %v161 = vld [vmem:[#allocation5 + $0x268] sm:$0xff]
    %v162 = vld [vmem:[#allocation5 + $0x270] sm:$0xff]
    %v163 = vld [vmem:[#allocation5 + $0x278] sm:$0xff]
    %v164 = vld [vmem:[#allocation5 + $0x280] sm:$0xff]
    %v165 = vld [vmem:[#allocation5 + $0x288] sm:$0xff]
    %v166 = vld [vmem:[#allocation5 + $0x290] sm:$0xff]
    %v167 = vld [vmem:[#allocation5 + $0x298] sm:$0xff]
    %v168 = vld [vmem:[#allocation5 + $0x2a0] sm:$0xff]
    %v169 = vld [vmem:[#allocation5 + $0x2a8] sm:$0xff]
    %v170 = vld [vmem:[#allocation5 + $0x2b0] sm:$0xff]
    %v171 = vld [vmem:[#allocation5 + $0x2b8] sm:$0xff]
    %v172 = vld [vmem:[#allocation5 + $0x2c0] sm:$0xff]
    %v173 = vld [vmem:[#allocation5 + $0x2c8] sm:$0xff]
    %v174 = vld [vmem:[#allocation5 + $0x2d0] sm:$0xff]
    %v175 = vld [vmem:[#allocation5 + $0x2d8] sm:$0xff]
    %v176 = vld [vmem:[#allocation5 + $0x2e0] sm:$0xff]
    %v177 = vld [vmem:[#allocation5 + $0x2e8] sm:$0xff]
    %v178 = vld [vmem:[#allocation5 + $0x2f0] sm:$0xff]
    %v179 = vld [vmem:[#allocation5 + $0x2f8] sm:$0xff]
    %v180 = vld [vmem:[#allocation5 + $0x300] sm:$0xff]
    %v181 = vld [vmem:[#allocation5 + $0x308] sm:$0xff]
    %v182 = vld [vmem:[#allocation5 + $0x310] sm:$0xff]
    %v183 = vld [vmem:[#allocation5 + $0x318] sm:$0xff]
    %v184 = vld [vmem:[#allocation5 + $0x320] sm:$0xff]
    %v185 = vld [vmem:[#allocation5 + $0x328] sm:$0xff]
    %v186 = vld [vmem:[#allocation5 + $0x330] sm:$0xff]
    %v187 = vld [vmem:[#allocation5 + $0x338] sm:$0xff]
    %v188 = vld [vmem:[#allocation5 + $0x340] sm:$0xff]
    %v189 = vld [vmem:[#allocation5 + $0x348] sm:$0xff]
    %v190 = vld [vmem:[#allocation5 + $0x350] sm:$0xff]
    %v191 = vld [vmem:[#allocation5 + $0x358] sm:$0xff]
    %v192 = vld [vmem:[#allocation5 + $0x360] sm:$0xff]
    %v193 = vld [vmem:[#allocation5 + $0x368] sm:$0xff]
    %v194 = vld [vmem:[#allocation5 + $0x370] sm:$0xff]
    %v195 = vld [vmem:[#allocation5 + $0x378] sm:$0xff]
    %v196 = vld [vmem:[#allocation5 + $0x380] sm:$0xff]
    %v197 = vld [vmem:[#allocation5 + $0x388] sm:$0xff]
    %v198 = vld [vmem:[#allocation5 + $0x390] sm:$0xff]
    %v199 = vld [vmem:[#allocation5 + $0x398] sm:$0xff]
    %v200 = vld [vmem:[#allocation5 + $0x3a0] sm:$0xff]
    %v201 = vld [vmem:[#allocation5 + $0x3a8] sm:$0xff]
    %v202 = vld [vmem:[#allocation5 + $0x3b0] sm:$0xff]
    %v203 = vld [vmem:[#allocation5 + $0x3b8] sm:$0xff]
    %v204 = vld [vmem:[#allocation5 + $0x3c0] sm:$0xff]
    %v205 = vld [vmem:[#allocation5 + $0x3c8] sm:$0xff]
    %v206 = vld [vmem:[#allocation5 + $0x3d0] sm:$0xff]
    %v207 = vld [vmem:[#allocation5 + $0x3d8] sm:$0xff]
    %v208 = vld [vmem:[#allocation5 + $0x3e0] sm:$0xff]
    %v209 = vld [vmem:[#allocation5 + $0x3e8] sm:$0xff]
    %v210 = vld [vmem:[#allocation5 + $0x3f0] sm:$0xff]
    %v211 = vld [vmem:[#allocation5 + $0x3f8] sm:$0xff]
    %v212 = vld [vmem:[#allocation5 + $0x400] sm:$0xff]
    %v213 = vld [vmem:[#allocation5 + $0x408] sm:$0xff]
    %v214 = vld [vmem:[#allocation5 + $0x410] sm:$0xff]
    %v215 = vld [vmem:[#allocation5 + $0x418] sm:$0xff]
    %v216 = vld [vmem:[#allocation5 + $0x420] sm:$0xff]
    %v217 = vld [vmem:[#allocation5 + $0x428] sm:$0xff]
    %v218 = vld [vmem:[#allocation5 + $0x430] sm:$0xff]
    %v219 = vld [vmem:[#allocation5 + $0x438] sm:$0xff]
    %v220 = vld [vmem:[#allocation5 + $0x440] sm:$0xff]
    %v221 = vld [vmem:[#allocation5 + $0x448] sm:$0xff]
    %v222 = vld [vmem:[#allocation5 + $0x450] sm:$0xff]
    %v223 = vld [vmem:[#allocation5 + $0x458] sm:$0xff]
    %v224 = vld [vmem:[#allocation5 + $0x460] sm:$0xff]
    %v225 = vld [vmem:[#allocation5 + $0x468] sm:$0xff]
    %v226 = vld [vmem:[#allocation5 + $0x470] sm:$0xff]
    %v227 = vld [vmem:[#allocation5 + $0x478] sm:$0xff]
    %v228 = vld [vmem:[#allocation5 + $0x480] sm:$0xff]
    %v229 = vld [vmem:[#allocation5 + $0x488] sm:$0xff]
    %v230 = vld [vmem:[#allocation5 + $0x490] sm:$0xff]
    %v231 = vld [vmem:[#allocation5 + $0x498] sm:$0xff]
    %v232 = vld [vmem:[#allocation5 + $0x4a0] sm:$0xff]
    %v233 = vld [vmem:[#allocation5 + $0x4a8] sm:$0xff]
    %v234 = vld [vmem:[#allocation5 + $0x4b0] sm:$0xff]
    %v235 = vld [vmem:[#allocation5 + $0x4b8] sm:$0xff]
    %v236 = vld [vmem:[#allocation5 + $0x4c0] sm:$0xff]
    %v237 = vld [vmem:[#allocation5 + $0x4c8] sm:$0xff]
    %v238 = vld [vmem:[#allocation5 + $0x4d0] sm:$0xff]
    %v239 = vld [vmem:[#allocation5 + $0x4d8] sm:$0xff]
    %v240 = vld [vmem:[#allocation5 + $0x4e0] sm:$0xff]
    %v241 = vld [vmem:[#allocation5 + $0x4e8] sm:$0xff]
    %v242 = vld [vmem:[#allocation5 + $0x4f0] sm:$0xff]
    %v243 = vld [vmem:[#allocation5 + $0x4f8] sm:$0xff]
    %v244 = vld [vmem:[#allocation5 + $0x500] sm:$0xff]
    %v245 = vld [vmem:[#allocation5 + $0x508] sm:$0xff]
    %v246 = vld [vmem:[#allocation5 + $0x510] sm:$0xff]
    %v247 = vld [vmem:[#allocation5 + $0x518] sm:$0xff]
    %v248 = vld [vmem:[#allocation5 + $0x520] sm:$0xff]
    %v249 = vld [vmem:[#allocation5 + $0x528] sm:$0xff]
    %v250 = vld [vmem:[#allocation5 + $0x530] sm:$0xff]
    %v251 = vld [vmem:[#allocation5 + $0x538] sm:$0xff]
    %v252 = vld [vmem:[#allocation5 + $0x540] sm:$0xff]
    %v253 = vld [vmem:[#allocation5 + $0x548] sm:$0xff]
    %v254 = vld [vmem:[#allocation5 + $0x550] sm:$0xff]
    %v255 = vld [vmem:[#allocation5 + $0x558] sm:$0xff]
    %v256 = vld [vmem:[#allocation5 + $0x560] sm:$0xff]
    %v257 = vld [vmem:[#allocation5 + $0x568] sm:$0xff]
    %v258 = vld [vmem:[#allocation5 + $0x570] sm:$0xff]
    %v259 = vld [vmem:[#allocation5 + $0x578] sm:$0xff]
    %v260 = vld [vmem:[#allocation5 + $0x580] sm:$0xff]
    %v261 = vld [vmem:[#allocation5 + $0x588] sm:$0xff]
    %v262 = vld [vmem:[#allocation5 + $0x590] sm:$0xff]
    %v263 = vld [vmem:[#allocation5 + $0x598] sm:$0xff]
    %v264 = vld [vmem:[#allocation5 + $0x5a0] sm:$0xff]
    %v265 = vld [vmem:[#allocation5 + $0x5a8] sm:$0xff]
    %v266 = vld [vmem:[#allocation5 + $0x5b0] sm:$0xff]
    %v267 = vld [vmem:[#allocation5 + $0x5b8] sm:$0xff]
    %v268 = vld [vmem:[#allocation5 + $0x5c0] sm:$0xff]
    %v269 = vld [vmem:[#allocation5 + $0x5c8] sm:$0xff]
    %v270 = vld [vmem:[#allocation5 + $0x5d0] sm:$0xff]
    %v271 = vld [vmem:[#allocation5 + $0x5d8] sm:$0xff]
    %v272 = vld [vmem:[#allocation5 + $0x5e0] sm:$0xff]
    %v273 = vld [vmem:[#allocation5 + $0x5e8] sm:$0xff]
    %v274 = vld [vmem:[#allocation5 + $0x5f0] sm:$0xff]
    %v275 = vld [vmem:[#allocation5 + $0x5f8] sm:$0xff]
    %v276 = vld [vmem:[#allocation5 + $0x600] sm:$0xff]
    %v277 = vld [vmem:[#allocation5 + $0x608] sm:$0xff]
    %v278 = vld [vmem:[#allocation5 + $0x610] sm:$0xff]
    %v279 = vld [vmem:[#allocation5 + $0x618] sm:$0xff]
    %v280 = vunpack.c.l.s8.bf16 %v84
    %v281 = vunpack.c.h.s8.bf16 %v84
    %v282 = vunpack.c.l.s8.bf16 %v85
    %v283 = vunpack.c.h.s8.bf16 %v85
    %v284 = vunpack.c.l.s8.bf16 %v86
    %v285 = vunpack.c.h.s8.bf16 %v86
    %v286 = vunpack.c.l.s8.bf16 %v87
    %v287 = vunpack.c.h.s8.bf16 %v87
    %v288 = vunpack.c.l.s8.bf16 %v88
    %v289 = vunpack.c.h.s8.bf16 %v88
    %v290 = vunpack.c.l.s8.bf16 %v89
    %v291 = vunpack.c.h.s8.bf16 %v89
    %v292 = vunpack.c.l.s8.bf16 %v90
    %v293 = vunpack.c.h.s8.bf16 %v90
    %v294 = vunpack.c.l.s8.bf16 %v91
    %v295 = vunpack.c.h.s8.bf16 %v91
    %v296 = vunpack.c.l.s8.bf16 %v92
    %v297 = vunpack.c.h.s8.bf16 %v92
    %v298 = vunpack.c.l.s8.bf16 %v93
    %v299 = vunpack.c.h.s8.bf16 %v93
    %v300 = vunpack.c.l.s8.bf16 %v94
    %v301 = vunpack.c.h.s8.bf16 %v94
    %v302 = vunpack.c.l.s8.bf16 %v95
    %v303 = vunpack.c.h.s8.bf16 %v95
    %v304 = vunpack.c.l.s8.bf16 %v96
    %v305 = vunpack.c.h.s8.bf16 %v96
    %v306 = vunpack.c.l.s8.bf16 %v97
    %v307 = vunpack.c.h.s8.bf16 %v97
    %v308 = vunpack.c.l.s8.bf16 %v98
    %v309 = vunpack.c.h.s8.bf16 %v98
    %v310 = vunpack.c.l.s8.bf16 %v99
    %v311 = vunpack.c.h.s8.bf16 %v99
    %v312 = vunpack.c.l.s8.bf16 %v100
    %v313 = vunpack.c.h.s8.bf16 %v100
    %v314 = vunpack.c.l.s8.bf16 %v101
    %v315 = vunpack.c.h.s8.bf16 %v101
    %v316 = vunpack.c.l.s8.bf16 %v102
    %v317 = vunpack.c.h.s8.bf16 %v102
    %v318 = vunpack.c.l.s8.bf16 %v103
    %v319 = vunpack.c.h.s8.bf16 %v103
    %v320 = vunpack.c.l.s8.bf16 %v104
    %v321 = vunpack.c.h.s8.bf16 %v104
    %v322 = vunpack.c.l.s8.bf16 %v105
    %v323 = vunpack.c.h.s8.bf16 %v105
    %v324 = vunpack.c.l.s8.bf16 %v106
    %v325 = vunpack.c.h.s8.bf16 %v106
    %v326 = vunpack.c.l.s8.bf16 %v107
    %v327 = vunpack.c.h.s8.bf16 %v107
    %v328 = vunpack.c.l.s8.bf16 %v108
    %v329 = vunpack.c.h.s8.bf16 %v108
    %v330 = vunpack.c.l.s8.bf16 %v109
    %v331 = vunpack.c.h.s8.bf16 %v109
    %v332 = vunpack.c.l.s8.bf16 %v110
    %v333 = vunpack.c.h.s8.bf16 %v110
    %v334 = vunpack.c.l.s8.bf16 %v111
    %v335 = vunpack.c.h.s8.bf16 %v111
    %v336 = vunpack.c.l.s8.bf16 %v112
    %v337 = vunpack.c.h.s8.bf16 %v112
    %v338 = vunpack.c.l.s8.bf16 %v113
    %v339 = vunpack.c.h.s8.bf16 %v113
    %v340 = vunpack.c.l.s8.bf16 %v114
    %v341 = vunpack.c.h.s8.bf16 %v114
    %v342 = vunpack.c.l.s8.bf16 %v115
    %v343 = vunpack.c.h.s8.bf16 %v115
    %v344 = vunpack.c.l.s8.bf16 %v116
    %v345 = vunpack.c.h.s8.bf16 %v116
    %v346 = vunpack.c.l.s8.bf16 %v117
    %v347 = vunpack.c.h.s8.bf16 %v117
    %v348 = vunpack.c.l.s8.bf16 %v118
    %v349 = vunpack.c.h.s8.bf16 %v118
    %v350 = vunpack.c.l.s8.bf16 %v119
    %v351 = vunpack.c.h.s8.bf16 %v119
    %v352 = vunpack.c.l.s8.bf16 %v120
    %v353 = vunpack.c.h.s8.bf16 %v120
    %v354 = vunpack.c.l.s8.bf16 %v121
    %v355 = vunpack.c.h.s8.bf16 %v121
    %v356 = vunpack.c.l.s8.bf16 %v122
    %v357 = vunpack.c.h.s8.bf16 %v122
    %v358 = vunpack.c.l.s8.bf16 %v123
    %v359 = vunpack.c.h.s8.bf16 %v123
    %v360 = vunpack.c.l.s8.bf16 %v124
    %v361 = vunpack.c.h.s8.bf16 %v124
    %v362 = vunpack.c.l.s8.bf16 %v125
    %v363 = vunpack.c.h.s8.bf16 %v125
    %v364 = vunpack.c.l.s8.bf16 %v126
    %v365 = vunpack.c.h.s8.bf16 %v126
    %v366 = vunpack.c.l.s8.bf16 %v127
    %v367 = vunpack.c.h.s8.bf16 %v127
    %v368 = vunpack.c.l.s8.bf16 %v128
    %v369 = vunpack.c.h.s8.bf16 %v128
    %v370 = vunpack.c.l.s8.bf16 %v129
    %v371 = vunpack.c.h.s8.bf16 %v129
    %v372 = vunpack.c.l.s8.bf16 %v130
    %v373 = vunpack.c.h.s8.bf16 %v130
    %v374 = vunpack.c.l.s8.bf16 %v131
    %v375 = vunpack.c.h.s8.bf16 %v131
    %v376 = vunpack.c.l.s8.bf16 %v132
    %v377 = vunpack.c.h.s8.bf16 %v132
    %v378 = vunpack.c.l.s8.bf16 %v133
    %v379 = vunpack.c.h.s8.bf16 %v133
    %v380 = vunpack.c.l.s8.bf16 %v134
    %v381 = vunpack.c.h.s8.bf16 %v134
    %v382 = vunpack.c.l.s8.bf16 %v135
    %v383 = vunpack.c.h.s8.bf16 %v135
    %v384 = vunpack.c.l.s8.bf16 %v136
    %v385 = vunpack.c.h.s8.bf16 %v136
    %v386 = vunpack.c.l.s8.bf16 %v137
    %v387 = vunpack.c.h.s8.bf16 %v137
    %v388 = vunpack.c.l.s8.bf16 %v138
    %v389 = vunpack.c.h.s8.bf16 %v138
    %v390 = vunpack.c.l.s8.bf16 %v139
    %v391 = vunpack.c.h.s8.bf16 %v139
    %v392 = vunpack.c.l.s8.bf16 %v140
    %v393 = vunpack.c.h.s8.bf16 %v140
    %v394 = vunpack.c.l.s8.bf16 %v141
    %v395 = vunpack.c.h.s8.bf16 %v141
    %v396 = vunpack.c.l.s8.bf16 %v142
    %v397 = vunpack.c.h.s8.bf16 %v142
    %v398 = vunpack.c.l.s8.bf16 %v143
    %v399 = vunpack.c.h.s8.bf16 %v143
    %v400 = vunpack.c.l.s8.bf16 %v144
    %v401 = vunpack.c.h.s8.bf16 %v144
    %v402 = vunpack.c.l.s8.bf16 %v145
    %v403 = vunpack.c.h.s8.bf16 %v145
    %v404 = vunpack.c.l.s8.bf16 %v146
    %v405 = vunpack.c.h.s8.bf16 %v146
    %v406 = vunpack.c.l.s8.bf16 %v147
    %v407 = vunpack.c.h.s8.bf16 %v147
    %v408 = vunpack.c.l.s8.bf16 %v148
    %v409 = vunpack.c.h.s8.bf16 %v148
    %v410 = vunpack.c.l.s8.bf16 %v149
    %v411 = vunpack.c.h.s8.bf16 %v149
    %v412 = vunpack.c.l.s8.bf16 %v150
    %v413 = vunpack.c.h.s8.bf16 %v150
    %v414 = vunpack.c.l.s8.bf16 %v151
    %v415 = vunpack.c.h.s8.bf16 %v151
    %v416 = vunpack.c.l.s8.bf16 %v152
    %v417 = vunpack.c.h.s8.bf16 %v152
    %v418 = vunpack.c.l.s8.bf16 %v153
    %v419 = vunpack.c.h.s8.bf16 %v153
    %v420 = vunpack.c.l.s8.bf16 %v154
    %v421 = vunpack.c.h.s8.bf16 %v154
    %v422 = vunpack.c.l.s8.bf16 %v155
    %v423 = vunpack.c.h.s8.bf16 %v155
    %v424 = vunpack.c.l.s8.bf16 %v156
    %v425 = vunpack.c.h.s8.bf16 %v156
    %v426 = vunpack.c.l.s8.bf16 %v157
    %v427 = vunpack.c.h.s8.bf16 %v157
    %v428 = vunpack.c.l.s8.bf16 %v158
    %v429 = vunpack.c.h.s8.bf16 %v158
    %v430 = vunpack.c.l.s8.bf16 %v159
    %v431 = vunpack.c.h.s8.bf16 %v159
    %v432 = vunpack.c.l.s8.bf16 %v160
    %v433 = vunpack.c.h.s8.bf16 %v160
    %v434 = vunpack.c.l.s8.bf16 %v161
    %v435 = vunpack.c.h.s8.bf16 %v161
    %v436 = vunpack.c.l.s8.bf16 %v162
    %v437 = vunpack.c.h.s8.bf16 %v162
    %v438 = vunpack.c.l.s8.bf16 %v163
    %v439 = vunpack.c.h.s8.bf16 %v163
    %v440 = vunpack.c.l.s8.bf16 %v164
    %v441 = vunpack.c.h.s8.bf16 %v164
    %v442 = vunpack.c.l.s8.bf16 %v165
    %v443 = vunpack.c.h.s8.bf16 %v165
    %v444 = vunpack.c.l.s8.bf16 %v166
    %v445 = vunpack.c.h.s8.bf16 %v166
    %v446 = vunpack.c.l.s8.bf16 %v167
    %v447 = vunpack.c.h.s8.bf16 %v167
    %v448 = vunpack.c.l.s8.bf16 %v168
    %v449 = vunpack.c.h.s8.bf16 %v168
    %v450 = vunpack.c.l.s8.bf16 %v169
    %v451 = vunpack.c.h.s8.bf16 %v169
    %v452 = vunpack.c.l.s8.bf16 %v170
    %v453 = vunpack.c.h.s8.bf16 %v170
    %v454 = vunpack.c.l.s8.bf16 %v171
    %v455 = vunpack.c.h.s8.bf16 %v171
    %v456 = vunpack.c.l.s8.bf16 %v172
    %v457 = vunpack.c.h.s8.bf16 %v172
    %v458 = vunpack.c.l.s8.bf16 %v173
    %v459 = vunpack.c.h.s8.bf16 %v173
    %v460 = vunpack.c.l.s8.bf16 %v174
    %v461 = vunpack.c.h.s8.bf16 %v174
    %v462 = vunpack.c.l.s8.bf16 %v175
    %v463 = vunpack.c.h.s8.bf16 %v175
    %v464 = vunpack.c.l.s8.bf16 %v176
    %v465 = vunpack.c.h.s8.bf16 %v176
    %v466 = vunpack.c.l.s8.bf16 %v177
    %v467 = vunpack.c.h.s8.bf16 %v177
    %v468 = vunpack.c.l.s8.bf16 %v178
    %v469 = vunpack.c.h.s8.bf16 %v178
    %v470 = vunpack.c.l.s8.bf16 %v179
    %v471 = vunpack.c.h.s8.bf16 %v179
    %v472 = vunpack.c.l.s8.bf16 %v180
    %v473 = vunpack.c.h.s8.bf16 %v180
    %v474 = vunpack.c.l.s8.bf16 %v181
    %v475 = vunpack.c.h.s8.bf16 %v181
    %v476 = vunpack.c.l.s8.bf16 %v182
    %v477 = vunpack.c.h.s8.bf16 %v182
    %v478 = vunpack.c.l.s8.bf16 %v183
    %v479 = vunpack.c.h.s8.bf16 %v183
    %v480 = vunpack.c.l.s8.bf16 %v184
    %v481 = vunpack.c.h.s8.bf16 %v184
    %v482 = vunpack.c.l.s8.bf16 %v185
    %v483 = vunpack.c.h.s8.bf16 %v185
    %v484 = vunpack.c.l.s8.bf16 %v186
    %v485 = vunpack.c.h.s8.bf16 %v186
    %v486 = vunpack.c.l.s8.bf16 %v187
    %v487 = vunpack.c.h.s8.bf16 %v187
    %v488 = vunpack.c.l.s8.bf16 %v188
    %v489 = vunpack.c.h.s8.bf16 %v188
    %v490 = vunpack.c.l.s8.bf16 %v189
    %v491 = vunpack.c.h.s8.bf16 %v189
    %v492 = vunpack.c.l.s8.bf16 %v190
    %v493 = vunpack.c.h.s8.bf16 %v190
    %v494 = vunpack.c.l.s8.bf16 %v191
    %v495 = vunpack.c.h.s8.bf16 %v191
    %v496 = vunpack.c.l.s8.bf16 %v192
    %v497 = vunpack.c.h.s8.bf16 %v192
    %v498 = vunpack.c.l.s8.bf16 %v193
    %v499 = vunpack.c.h.s8.bf16 %v193
    %v500 = vunpack.c.l.s8.bf16 %v194
    %v501 = vunpack.c.h.s8.bf16 %v194
    %v502 = vunpack.c.l.s8.bf16 %v195
    %v503 = vunpack.c.h.s8.bf16 %v195
    %v504 = vunpack.c.l.s8.bf16 %v196
    %v505 = vunpack.c.h.s8.bf16 %v196
    %v506 = vunpack.c.l.s8.bf16 %v197
    %v507 = vunpack.c.h.s8.bf16 %v197
    %v508 = vunpack.c.l.s8.bf16 %v198
    %v509 = vunpack.c.h.s8.bf16 %v198
    %v510 = vunpack.c.l.s8.bf16 %v199
    %v511 = vunpack.c.h.s8.bf16 %v199
    %v512 = vunpack.c.l.s8.bf16 %v200
    %v513 = vunpack.c.h.s8.bf16 %v200
    %v514 = vunpack.c.l.s8.bf16 %v201
    %v515 = vunpack.c.h.s8.bf16 %v201
    %v516 = vunpack.c.l.s8.bf16 %v202
    %v517 = vunpack.c.h.s8.bf16 %v202
    %v518 = vunpack.c.l.s8.bf16 %v203
    %v519 = vunpack.c.h.s8.bf16 %v203
    %v520 = vunpack.c.l.s8.bf16 %v204
    %v521 = vunpack.c.h.s8.bf16 %v204
    %v522 = vunpack.c.l.s8.bf16 %v205
    %v523 = vunpack.c.h.s8.bf16 %v205
    %v524 = vunpack.c.l.s8.bf16 %v206
    %v525 = vunpack.c.h.s8.bf16 %v206
    %v526 = vunpack.c.l.s8.bf16 %v207
    %v527 = vunpack.c.h.s8.bf16 %v207
    %v528 = vunpack.c.l.s8.bf16 %v208
    %v529 = vunpack.c.h.s8.bf16 %v208
    %v530 = vunpack.c.l.s8.bf16 %v209
    %v531 = vunpack.c.h.s8.bf16 %v209
    %v532 = vunpack.c.l.s8.bf16 %v210
    %v533 = vunpack.c.h.s8.bf16 %v210
    %v534 = vunpack.c.l.s8.bf16 %v211
    %v535 = vunpack.c.h.s8.bf16 %v211
    %v536 = vunpack.c.l.s8.bf16 %v212
    %v537 = vunpack.c.h.s8.bf16 %v212
    %v538 = vunpack.c.l.s8.bf16 %v213
    %v539 = vunpack.c.h.s8.bf16 %v213
    %v540 = vunpack.c.l.s8.bf16 %v214
    %v541 = vunpack.c.h.s8.bf16 %v214
    %v542 = vunpack.c.l.s8.bf16 %v215
    %v543 = vunpack.c.h.s8.bf16 %v215
    %v544 = vunpack.c.l.s8.bf16 %v216
    %v545 = vunpack.c.h.s8.bf16 %v216
    %v546 = vunpack.c.l.s8.bf16 %v217
    %v547 = vunpack.c.h.s8.bf16 %v217
    %v548 = vunpack.c.l.s8.bf16 %v218
    %v549 = vunpack.c.h.s8.bf16 %v218
    %v550 = vunpack.c.l.s8.bf16 %v219
    %v551 = vunpack.c.h.s8.bf16 %v219
    %v552 = vunpack.c.l.s8.bf16 %v220
    %v553 = vunpack.c.h.s8.bf16 %v220
    %v554 = vunpack.c.l.s8.bf16 %v221
    %v555 = vunpack.c.h.s8.bf16 %v221
    %v556 = vunpack.c.l.s8.bf16 %v222
    %v557 = vunpack.c.h.s8.bf16 %v222
    %v558 = vunpack.c.l.s8.bf16 %v223
    %v559 = vunpack.c.h.s8.bf16 %v223
    %v560 = vunpack.c.l.s8.bf16 %v224
    %v561 = vunpack.c.h.s8.bf16 %v224
    %v562 = vunpack.c.l.s8.bf16 %v225
    %v563 = vunpack.c.h.s8.bf16 %v225
    %v564 = vunpack.c.l.s8.bf16 %v226
    %v565 = vunpack.c.h.s8.bf16 %v226
    %v566 = vunpack.c.l.s8.bf16 %v227
    %v567 = vunpack.c.h.s8.bf16 %v227
    %v568 = vunpack.c.l.s8.bf16 %v228
    %v569 = vunpack.c.h.s8.bf16 %v228
    %v570 = vunpack.c.l.s8.bf16 %v229
    %v571 = vunpack.c.h.s8.bf16 %v229
    %v572 = vunpack.c.l.s8.bf16 %v230
    %v573 = vunpack.c.h.s8.bf16 %v230
    %v574 = vunpack.c.l.s8.bf16 %v231
    %v575 = vunpack.c.h.s8.bf16 %v231
    %v576 = vunpack.c.l.s8.bf16 %v232
    %v577 = vunpack.c.h.s8.bf16 %v232
    %v578 = vunpack.c.l.s8.bf16 %v233
    %v579 = vunpack.c.h.s8.bf16 %v233
    %v580 = vunpack.c.l.s8.bf16 %v234
    %v581 = vunpack.c.h.s8.bf16 %v234
    %v582 = vunpack.c.l.s8.bf16 %v235
    %v583 = vunpack.c.h.s8.bf16 %v235
    %v584 = vunpack.c.l.s8.bf16 %v236
    %v585 = vunpack.c.h.s8.bf16 %v236
    %v586 = vunpack.c.l.s8.bf16 %v237
    %v587 = vunpack.c.h.s8.bf16 %v237
    %v588 = vunpack.c.l.s8.bf16 %v238
    %v589 = vunpack.c.h.s8.bf16 %v238
    %v590 = vunpack.c.l.s8.bf16 %v239
    %v591 = vunpack.c.h.s8.bf16 %v239
    %v592 = vunpack.c.l.s8.bf16 %v240
    %v593 = vunpack.c.h.s8.bf16 %v240
    %v594 = vunpack.c.l.s8.bf16 %v241
    %v595 = vunpack.c.h.s8.bf16 %v241
    %v596 = vunpack.c.l.s8.bf16 %v242
    %v597 = vunpack.c.h.s8.bf16 %v242
    %v598 = vunpack.c.l.s8.bf16 %v243
    %v599 = vunpack.c.h.s8.bf16 %v243
    %v600 = vunpack.c.l.s8.bf16 %v244
    %v601 = vunpack.c.h.s8.bf16 %v244
    %v602 = vunpack.c.l.s8.bf16 %v245
    %v603 = vunpack.c.h.s8.bf16 %v245
    %v604 = vunpack.c.l.s8.bf16 %v246
    %v605 = vunpack.c.h.s8.bf16 %v246
    %v606 = vunpack.c.l.s8.bf16 %v247
    %v607 = vunpack.c.h.s8.bf16 %v247
    %v608 = vunpack.c.l.s8.bf16 %v248
    %v609 = vunpack.c.h.s8.bf16 %v248
    %v610 = vunpack.c.l.s8.bf16 %v249
    %v611 = vunpack.c.h.s8.bf16 %v249
    %v612 = vunpack.c.l.s8.bf16 %v250
    %v613 = vunpack.c.h.s8.bf16 %v250
    %v614 = vunpack.c.l.s8.bf16 %v251
    %v615 = vunpack.c.h.s8.bf16 %v251
    %v616 = vunpack.c.l.s8.bf16 %v252
    %v617 = vunpack.c.h.s8.bf16 %v252
    %v618 = vunpack.c.l.s8.bf16 %v253
    %v619 = vunpack.c.h.s8.bf16 %v253
    %v620 = vunpack.c.l.s8.bf16 %v254
    %v621 = vunpack.c.h.s8.bf16 %v254
    %v622 = vunpack.c.l.s8.bf16 %v255
    %v623 = vunpack.c.h.s8.bf16 %v255
    %v624 = vunpack.c.l.s8.bf16 %v256
    %v625 = vunpack.c.h.s8.bf16 %v256
    %v626 = vunpack.c.l.s8.bf16 %v257
    %v627 = vunpack.c.h.s8.bf16 %v257
    %v628 = vunpack.c.l.s8.bf16 %v258
    %v629 = vunpack.c.h.s8.bf16 %v258
    %v630 = vunpack.c.l.s8.bf16 %v259
    %v631 = vunpack.c.h.s8.bf16 %v259
    %v632 = vunpack.c.l.s8.bf16 %v260
    %v633 = vunpack.c.h.s8.bf16 %v260
    %v634 = vunpack.c.l.s8.bf16 %v261
    %v635 = vunpack.c.h.s8.bf16 %v261
    %v636 = vunpack.c.l.s8.bf16 %v262
    %v637 = vunpack.c.h.s8.bf16 %v262
    %v638 = vunpack.c.l.s8.bf16 %v263
    %v639 = vunpack.c.h.s8.bf16 %v263
    %v640 = vunpack.c.l.s8.bf16 %v264
    %v641 = vunpack.c.h.s8.bf16 %v264
    %v642 = vunpack.c.l.s8.bf16 %v265
    %v643 = vunpack.c.h.s8.bf16 %v265
    %v644 = vunpack.c.l.s8.bf16 %v266
    %v645 = vunpack.c.h.s8.bf16 %v266
    %v646 = vunpack.c.l.s8.bf16 %v267
    %v647 = vunpack.c.h.s8.bf16 %v267
    %v648 = vunpack.c.l.s8.bf16 %v268
    %v649 = vunpack.c.h.s8.bf16 %v268
    %v650 = vunpack.c.l.s8.bf16 %v269
    %v651 = vunpack.c.h.s8.bf16 %v269
    %v652 = vunpack.c.l.s8.bf16 %v270
    %v653 = vunpack.c.h.s8.bf16 %v270
    %v654 = vunpack.c.l.s8.bf16 %v271
    %v655 = vunpack.c.h.s8.bf16 %v271
    %v656 = vunpack.c.l.s8.bf16 %v272
    %v657 = vunpack.c.h.s8.bf16 %v272
    %v658 = vunpack.c.l.s8.bf16 %v273
    %v659 = vunpack.c.h.s8.bf16 %v273
    %v660 = vunpack.c.l.s8.bf16 %v274
    %v661 = vunpack.c.h.s8.bf16 %v274
    %v662 = vunpack.c.l.s8.bf16 %v275
    %v663 = vunpack.c.h.s8.bf16 %v275
    %v664 = vunpack.c.l.s8.bf16 %v276
    %v665 = vunpack.c.h.s8.bf16 %v276
    %v666 = vunpack.c.l.s8.bf16 %v277
    %v667 = vunpack.c.h.s8.bf16 %v277
    %v668 = vunpack.c.l.s8.bf16 %v278
    %v669 = vunpack.c.h.s8.bf16 %v278
    %v670 = vunpack.c.l.s8.bf16 %v279
    %v671 = vunpack.c.h.s8.bf16 %v279
    %v680 = vunpack.c.l.b16 %v76
    %v681 = vunpack.c.h.b16 %v76
    %v682 = vunpack.c.l.b16 %v77
    %v683 = vunpack.c.h.b16 %v77
    %v684 = vunpack.c.l.b16 %v78
    %v685 = vunpack.c.h.b16 %v78
    %v686 = vunpack.c.l.b16 %v79
    %v687 = vunpack.c.l.b16 %v80
    %v688 = vunpack.c.h.b16 %v80
    %v689 = vunpack.c.l.b16 %v81
    %v690 = vunpack.c.h.b16 %v81
    %v691 = vunpack.c.l.b16 %v82
    %v692 = vunpack.c.h.b16 %v82
    %v693 = vunpack.c.l.b16 %v83
    %v694 = vpack.c.b16 %v687, %v680
    %v695 = vpack.c.b16 %v688, %v681
    %v696 = vpack.c.b16 %v689, %v682
    %v697 = vpack.c.b16 %v690, %v683
    %v698 = vpack.c.b16 %v691, %v684
    %v699 = vpack.c.b16 %v692, %v685
    %v700 = vpack.c.b16 %v693, %v686
    %v1099 = vunpack.c.l.b16 %v280
    %v1100 = vunpack.c.h.b16 %v280
    %v1101 = vunpack.c.l.b16 %v281
    %v1102 = vunpack.c.h.b16 %v281
    %v1103 = vunpack.c.l.b16 %v282
    %v1104 = vunpack.c.h.b16 %v282
    %v1105 = vunpack.c.l.b16 %v283
    %v1106 = vunpack.c.h.b16 %v283
    %v1107 = vunpack.c.l.b16 %v284
    %v1108 = vunpack.c.h.b16 %v284
    %v1109 = vunpack.c.l.b16 %v285
    %v1110 = vunpack.c.h.b16 %v285
    %v1111 = vunpack.c.l.b16 %v286
    %v1112 = vunpack.c.h.b16 %v286
    %v1113 = vunpack.c.l.b16 %v287
    %v1114 = vunpack.c.h.b16 %v287
    %v1115 = vunpack.c.l.b16 %v288
    %v1116 = vunpack.c.h.b16 %v288
    %v1117 = vunpack.c.l.b16 %v289
    %v1118 = vunpack.c.h.b16 %v289
    %v1119 = vunpack.c.l.b16 %v290
    %v1120 = vunpack.c.h.b16 %v290
    %v1121 = vunpack.c.l.b16 %v291
    %v1122 = vunpack.c.h.b16 %v291
    %v1123 = vunpack.c.l.b16 %v292
    %v1124 = vunpack.c.h.b16 %v292
    %v1125 = vunpack.c.l.b16 %v293
    %v1126 = vunpack.c.h.b16 %v293
    %v1127 = vunpack.c.l.b16 %v294
    %v1128 = vunpack.c.h.b16 %v294
    %v1129 = vunpack.c.l.b16 %v295
    %v1130 = vunpack.c.h.b16 %v295
    %v1131 = vunpack.c.l.b16 %v296
    %v1132 = vunpack.c.h.b16 %v296
    %v1133 = vunpack.c.l.b16 %v297
    %v1134 = vunpack.c.h.b16 %v297
    %v1135 = vunpack.c.l.b16 %v298
    %v1136 = vunpack.c.h.b16 %v298
    %v1137 = vunpack.c.l.b16 %v299
    %v1138 = vunpack.c.h.b16 %v299
    %v1139 = vunpack.c.l.b16 %v300
    %v1140 = vunpack.c.h.b16 %v300
    %v1141 = vunpack.c.l.b16 %v301
    %v1142 = vunpack.c.h.b16 %v301
    %v1143 = vunpack.c.l.b16 %v302
    %v1144 = vunpack.c.h.b16 %v302
    %v1145 = vunpack.c.l.b16 %v303
    %v1146 = vunpack.c.h.b16 %v303
    %v1147 = vunpack.c.l.b16 %v304
    %v1148 = vunpack.c.h.b16 %v304
    %v1149 = vunpack.c.l.b16 %v305
    %v1150 = vunpack.c.h.b16 %v305
    %v1151 = vunpack.c.l.b16 %v306
    %v1152 = vunpack.c.h.b16 %v306
    %v1153 = vunpack.c.l.b16 %v307
    %v1154 = vunpack.c.h.b16 %v307
    %v1155 = vunpack.c.l.b16 %v308
    %v1156 = vunpack.c.h.b16 %v308
    %v1157 = vunpack.c.l.b16 %v309
    %v1158 = vunpack.c.h.b16 %v309
    %v1159 = vunpack.c.l.b16 %v310
    %v1160 = vunpack.c.h.b16 %v310
    %v1161 = vunpack.c.l.b16 %v311
    %v1162 = vunpack.c.h.b16 %v311
    %v1163 = vunpack.c.l.b16 %v312
    %v1164 = vunpack.c.h.b16 %v312
    %v1165 = vunpack.c.l.b16 %v313
    %v1166 = vunpack.c.h.b16 %v313
    %v1167 = vunpack.c.l.b16 %v314
    %v1168 = vunpack.c.h.b16 %v314
    %v1169 = vunpack.c.l.b16 %v315
    %v1170 = vunpack.c.h.b16 %v315
    %v1171 = vunpack.c.l.b16 %v316
    %v1172 = vunpack.c.h.b16 %v316
    %v1173 = vunpack.c.l.b16 %v317
    %v1174 = vunpack.c.h.b16 %v317
    %v1175 = vunpack.c.l.b16 %v318
    %v1176 = vunpack.c.h.b16 %v318
    %v1177 = vunpack.c.l.b16 %v319
    %v1178 = vunpack.c.h.b16 %v319
    %v1179 = vunpack.c.l.b16 %v320
    %v1180 = vunpack.c.h.b16 %v320
    %v1181 = vunpack.c.l.b16 %v321
    %v1182 = vunpack.c.h.b16 %v321
    %v1183 = vunpack.c.l.b16 %v322
    %v1184 = vunpack.c.h.b16 %v322
    %v1185 = vunpack.c.l.b16 %v323
    %v1186 = vunpack.c.h.b16 %v323
    %v1187 = vunpack.c.l.b16 %v324
    %v1188 = vunpack.c.h.b16 %v324
    %v1189 = vunpack.c.l.b16 %v325
    %v1190 = vunpack.c.h.b16 %v325
    %v1191 = vunpack.c.l.b16 %v326
    %v1192 = vunpack.c.h.b16 %v326
    %v1193 = vunpack.c.l.b16 %v327
    %v1194 = vunpack.c.h.b16 %v327
    %v1195 = vunpack.c.l.b16 %v328
    %v1196 = vunpack.c.h.b16 %v328
    %v1197 = vunpack.c.l.b16 %v329
    %v1198 = vunpack.c.h.b16 %v329
    %v1199 = vunpack.c.l.b16 %v330
    %v1200 = vunpack.c.h.b16 %v330
    %v1201 = vunpack.c.l.b16 %v331
    %v1202 = vunpack.c.h.b16 %v331
    %v1203 = vunpack.c.l.b16 %v332
    %v1204 = vunpack.c.h.b16 %v332
    %v1205 = vunpack.c.l.b16 %v333
    %v1206 = vunpack.c.h.b16 %v333
    %v1207 = vunpack.c.l.b16 %v334
    %v1208 = vunpack.c.h.b16 %v334
    %v1209 = vunpack.c.l.b16 %v335
    %v1210 = vunpack.c.h.b16 %v335
    %v1211 = vunpack.c.l.b16 %v336
    %v1212 = vunpack.c.h.b16 %v336
    %v1213 = vunpack.c.l.b16 %v337
    %v1214 = vunpack.c.h.b16 %v337
    %v1215 = vunpack.c.l.b16 %v338
    %v1216 = vunpack.c.h.b16 %v338
    %v1217 = vunpack.c.l.b16 %v339
    %v1218 = vunpack.c.h.b16 %v339
    %v1219 = vunpack.c.l.b16 %v340
    %v1220 = vunpack.c.h.b16 %v340
    %v1221 = vunpack.c.l.b16 %v341
    %v1222 = vunpack.c.h.b16 %v341
    %v1223 = vunpack.c.l.b16 %v342
    %v1224 = vunpack.c.h.b16 %v342
    %v1225 = vunpack.c.l.b16 %v343
    %v1226 = vunpack.c.h.b16 %v343
    %v1227 = vunpack.c.l.b16 %v344
    %v1228 = vunpack.c.h.b16 %v344
    %v1229 = vunpack.c.l.b16 %v345
    %v1230 = vunpack.c.h.b16 %v345
    %v1231 = vunpack.c.l.b16 %v346
    %v1232 = vunpack.c.h.b16 %v346
    %v1233 = vunpack.c.l.b16 %v347
    %v1234 = vunpack.c.h.b16 %v347
    %v1235 = vunpack.c.l.b16 %v348
    %v1236 = vunpack.c.h.b16 %v348
    %v1237 = vunpack.c.l.b16 %v349
    %v1238 = vunpack.c.h.b16 %v349
    %v1239 = vunpack.c.l.b16 %v350
    %v1240 = vunpack.c.h.b16 %v350
    %v1241 = vunpack.c.l.b16 %v351
    %v1242 = vunpack.c.h.b16 %v351
    %v1243 = vunpack.c.l.b16 %v352
    %v1244 = vunpack.c.h.b16 %v352
    %v1245 = vunpack.c.l.b16 %v353
    %v1246 = vunpack.c.h.b16 %v353
    %v1247 = vunpack.c.l.b16 %v354
    %v1248 = vunpack.c.h.b16 %v354
    %v1249 = vunpack.c.l.b16 %v355
    %v1250 = vunpack.c.h.b16 %v355
    %v1251 = vunpack.c.l.b16 %v356
    %v1252 = vunpack.c.h.b16 %v356
    %v1253 = vunpack.c.l.b16 %v357
    %v1254 = vunpack.c.h.b16 %v357
    %v1255 = vunpack.c.l.b16 %v358
    %v1256 = vunpack.c.h.b16 %v358
    %v1257 = vunpack.c.l.b16 %v359
    %v1258 = vunpack.c.h.b16 %v359
    %v1259 = vunpack.c.l.b16 %v360
    %v1260 = vunpack.c.h.b16 %v360
    %v1261 = vunpack.c.l.b16 %v361
    %v1262 = vunpack.c.h.b16 %v361
    %v1263 = vunpack.c.l.b16 %v362
    %v1264 = vunpack.c.h.b16 %v362
    %v1265 = vunpack.c.l.b16 %v363
    %v1266 = vunpack.c.h.b16 %v363
    %v1267 = vunpack.c.l.b16 %v364
    %v1268 = vunpack.c.h.b16 %v364
    %v1269 = vunpack.c.l.b16 %v365
    %v1270 = vunpack.c.h.b16 %v365
    %v1271 = vunpack.c.l.b16 %v366
    %v1272 = vunpack.c.h.b16 %v366
    %v1273 = vunpack.c.l.b16 %v367
    %v1274 = vunpack.c.h.b16 %v367
    %v1275 = vunpack.c.l.b16 %v368
    %v1276 = vunpack.c.h.b16 %v368
    %v1277 = vunpack.c.l.b16 %v369
    %v1278 = vunpack.c.h.b16 %v369
    %v1279 = vunpack.c.l.b16 %v370
    %v1280 = vunpack.c.h.b16 %v370
    %v1281 = vunpack.c.l.b16 %v371
    %v1282 = vunpack.c.h.b16 %v371
    %v1283 = vunpack.c.l.b16 %v372
    %v1284 = vunpack.c.h.b16 %v372
    %v1285 = vunpack.c.l.b16 %v373
    %v1286 = vunpack.c.h.b16 %v373
    %v1287 = vunpack.c.l.b16 %v374
    %v1288 = vunpack.c.h.b16 %v374
    %v1289 = vunpack.c.l.b16 %v375
    %v1290 = vunpack.c.h.b16 %v375
    %v1291 = vunpack.c.l.b16 %v376
    %v1292 = vunpack.c.h.b16 %v376
    %v1293 = vunpack.c.l.b16 %v377
    %v1294 = vunpack.c.h.b16 %v377
    %v1295 = vunpack.c.l.b16 %v378
    %v1296 = vunpack.c.h.b16 %v378
    %v1297 = vunpack.c.l.b16 %v379
    %v1298 = vunpack.c.h.b16 %v379
    %v1299 = vunpack.c.l.b16 %v380
    %v1300 = vunpack.c.h.b16 %v380
    %v1301 = vunpack.c.l.b16 %v381
    %v1302 = vunpack.c.h.b16 %v381
    %v1303 = vunpack.c.l.b16 %v382
    %v1304 = vunpack.c.h.b16 %v382
    %v1305 = vunpack.c.l.b16 %v383
    %v1306 = vunpack.c.h.b16 %v383
    %v1307 = vunpack.c.l.b16 %v384
    %v1308 = vunpack.c.h.b16 %v384
    %v1309 = vunpack.c.l.b16 %v385
    %v1310 = vunpack.c.h.b16 %v385
    %v1311 = vunpack.c.l.b16 %v386
    %v1312 = vunpack.c.h.b16 %v386
    %v1313 = vunpack.c.l.b16 %v387
    %v1314 = vunpack.c.h.b16 %v387
    %v1315 = vunpack.c.l.b16 %v388
    %v1316 = vunpack.c.h.b16 %v388
    %v1317 = vunpack.c.l.b16 %v389
    %v1318 = vunpack.c.h.b16 %v389
    %v1319 = vunpack.c.l.b16 %v390
    %v1320 = vunpack.c.h.b16 %v390
    %v1321 = vunpack.c.l.b16 %v391
    %v1322 = vunpack.c.h.b16 %v391
    %v1323 = vunpack.c.l.b16 %v392
    %v1324 = vunpack.c.h.b16 %v392
    %v1325 = vunpack.c.l.b16 %v393
    %v1326 = vunpack.c.h.b16 %v393
    %v1327 = vunpack.c.l.b16 %v394
    %v1328 = vunpack.c.h.b16 %v394
    %v1329 = vunpack.c.l.b16 %v395
    %v1330 = vunpack.c.h.b16 %v395
    %v1331 = vunpack.c.l.b16 %v396
    %v1332 = vunpack.c.h.b16 %v396
    %v1333 = vunpack.c.l.b16 %v397
    %v1334 = vunpack.c.h.b16 %v397
    %v1335 = vunpack.c.l.b16 %v398
    %v1336 = vunpack.c.h.b16 %v398
    %v1337 = vunpack.c.l.b16 %v399
    %v1338 = vunpack.c.h.b16 %v399
    %v1339 = vunpack.c.l.b16 %v400
    %v1340 = vunpack.c.h.b16 %v400
    %v1341 = vunpack.c.l.b16 %v401
    %v1342 = vunpack.c.h.b16 %v401
    %v1343 = vunpack.c.l.b16 %v402
    %v1344 = vunpack.c.h.b16 %v402
    %v1345 = vunpack.c.l.b16 %v403
    %v1346 = vunpack.c.h.b16 %v403
    %v1347 = vunpack.c.l.b16 %v404
    %v1348 = vunpack.c.h.b16 %v404
    %v1349 = vunpack.c.l.b16 %v405
    %v1350 = vunpack.c.h.b16 %v405
    %v1351 = vunpack.c.l.b16 %v406
    %v1352 = vunpack.c.h.b16 %v406
    %v1353 = vunpack.c.l.b16 %v407
    %v1354 = vunpack.c.h.b16 %v407
    %v1355 = vunpack.c.l.b16 %v408
    %v1356 = vunpack.c.h.b16 %v408
    %v1357 = vunpack.c.l.b16 %v409
    %v1358 = vunpack.c.h.b16 %v409
    %v1359 = vunpack.c.l.b16 %v410
    %v1360 = vunpack.c.h.b16 %v410
    %v1361 = vunpack.c.l.b16 %v411
    %v1362 = vunpack.c.h.b16 %v411
    %v1363 = vunpack.c.l.b16 %v412
    %v1364 = vunpack.c.h.b16 %v412
    %v1365 = vunpack.c.l.b16 %v413
    %v1366 = vunpack.c.h.b16 %v413
    %v1367 = vunpack.c.l.b16 %v414
    %v1368 = vunpack.c.h.b16 %v414
    %v1369 = vunpack.c.l.b16 %v415
    %v1370 = vunpack.c.h.b16 %v415
    %v1371 = vunpack.c.l.b16 %v416
    %v1372 = vunpack.c.h.b16 %v416
    %v1373 = vunpack.c.l.b16 %v417
    %v1374 = vunpack.c.h.b16 %v417
    %v1375 = vunpack.c.l.b16 %v418
    %v1376 = vunpack.c.h.b16 %v418
    %v1377 = vunpack.c.l.b16 %v419
    %v1378 = vunpack.c.h.b16 %v419
    %v1379 = vunpack.c.l.b16 %v420
    %v1380 = vunpack.c.h.b16 %v420
    %v1381 = vunpack.c.l.b16 %v421
    %v1382 = vunpack.c.h.b16 %v421
    %v1383 = vunpack.c.l.b16 %v422
    %v1384 = vunpack.c.h.b16 %v422
    %v1385 = vunpack.c.l.b16 %v423
    %v1386 = vunpack.c.h.b16 %v423
    %v1387 = vunpack.c.l.b16 %v424
    %v1388 = vunpack.c.h.b16 %v424
    %v1389 = vunpack.c.l.b16 %v425
    %v1390 = vunpack.c.h.b16 %v425
    %v1391 = vunpack.c.l.b16 %v426
    %v1392 = vunpack.c.h.b16 %v426
    %v1393 = vunpack.c.l.b16 %v427
    %v1394 = vunpack.c.h.b16 %v427
    %v1395 = vunpack.c.l.b16 %v428
    %v1396 = vunpack.c.h.b16 %v428
    %v1397 = vunpack.c.l.b16 %v429
    %v1398 = vunpack.c.h.b16 %v429
    %v1399 = vunpack.c.l.b16 %v430
    %v1400 = vunpack.c.h.b16 %v430
    %v1401 = vunpack.c.l.b16 %v431
    %v1402 = vunpack.c.h.b16 %v431
    %v1403 = vunpack.c.l.b16 %v432
    %v1404 = vunpack.c.h.b16 %v432
    %v1405 = vunpack.c.l.b16 %v433
    %v1406 = vunpack.c.h.b16 %v433
    %v1407 = vunpack.c.l.b16 %v434
    %v1408 = vunpack.c.h.b16 %v434
    %v1409 = vunpack.c.l.b16 %v435
    %v1410 = vunpack.c.h.b16 %v435
    %v1411 = vunpack.c.l.b16 %v436
    %v1412 = vunpack.c.h.b16 %v436
    %v1413 = vunpack.c.l.b16 %v437
    %v1414 = vunpack.c.h.b16 %v437
    %v1415 = vunpack.c.l.b16 %v438
    %v1416 = vunpack.c.h.b16 %v438
    %v1417 = vunpack.c.l.b16 %v439
    %v1418 = vunpack.c.h.b16 %v439
    %v1419 = vunpack.c.l.b16 %v440
    %v1420 = vunpack.c.h.b16 %v440
    %v1421 = vunpack.c.l.b16 %v441
    %v1422 = vunpack.c.h.b16 %v441
    %v1423 = vunpack.c.l.b16 %v442
    %v1424 = vunpack.c.h.b16 %v442
    %v1425 = vunpack.c.l.b16 %v443
    %v1426 = vunpack.c.h.b16 %v443
    %v1427 = vunpack.c.l.b16 %v444
    %v1428 = vunpack.c.h.b16 %v444
    %v1429 = vunpack.c.l.b16 %v445
    %v1430 = vunpack.c.h.b16 %v445
    %v1431 = vunpack.c.l.b16 %v446
    %v1432 = vunpack.c.h.b16 %v446
    %v1433 = vunpack.c.l.b16 %v447
    %v1434 = vunpack.c.h.b16 %v447
    %v1435 = vunpack.c.l.b16 %v448
    %v1436 = vunpack.c.h.b16 %v448
    %v1437 = vunpack.c.l.b16 %v449
    %v1438 = vunpack.c.h.b16 %v449
    %v1439 = vunpack.c.l.b16 %v450
    %v1440 = vunpack.c.h.b16 %v450
    %v1441 = vunpack.c.l.b16 %v451
    %v1442 = vunpack.c.h.b16 %v451
    %v1443 = vunpack.c.l.b16 %v452
    %v1444 = vunpack.c.h.b16 %v452
    %v1445 = vunpack.c.l.b16 %v453
    %v1446 = vunpack.c.h.b16 %v453
    %v1447 = vunpack.c.l.b16 %v454
    %v1448 = vunpack.c.h.b16 %v454
    %v1449 = vunpack.c.l.b16 %v455
    %v1450 = vunpack.c.h.b16 %v455
    %v1451 = vunpack.c.l.b16 %v456
    %v1452 = vunpack.c.h.b16 %v456
    %v1453 = vunpack.c.l.b16 %v457
    %v1454 = vunpack.c.h.b16 %v457
    %v1455 = vunpack.c.l.b16 %v458
    %v1456 = vunpack.c.h.b16 %v458
    %v1457 = vunpack.c.l.b16 %v459
    %v1458 = vunpack.c.h.b16 %v459
    %v1459 = vunpack.c.l.b16 %v460
    %v1460 = vunpack.c.h.b16 %v460
    %v1461 = vunpack.c.l.b16 %v461
    %v1462 = vunpack.c.h.b16 %v461
    %v1463 = vunpack.c.l.b16 %v462
    %v1464 = vunpack.c.h.b16 %v462
    %v1465 = vunpack.c.l.b16 %v463
    %v1466 = vunpack.c.h.b16 %v463
    %v1467 = vunpack.c.l.b16 %v464
    %v1468 = vunpack.c.h.b16 %v464
    %v1469 = vunpack.c.l.b16 %v465
    %v1470 = vunpack.c.h.b16 %v465
    %v1471 = vunpack.c.l.b16 %v466
    %v1472 = vunpack.c.h.b16 %v466
    %v1473 = vunpack.c.l.b16 %v467
    %v1474 = vunpack.c.h.b16 %v467
    %v1475 = vunpack.c.l.b16 %v468
    %v1476 = vunpack.c.h.b16 %v468
    %v1477 = vunpack.c.l.b16 %v469
    %v1478 = vunpack.c.h.b16 %v469
    %v1479 = vunpack.c.l.b16 %v470
    %v1480 = vunpack.c.h.b16 %v470
    %v1481 = vunpack.c.l.b16 %v471
    %v1482 = vunpack.c.h.b16 %v471
    %v1483 = vunpack.c.l.b16 %v472
    %v1484 = vunpack.c.h.b16 %v472
    %v1485 = vunpack.c.l.b16 %v473
    %v1486 = vunpack.c.h.b16 %v473
    %v1487 = vunpack.c.l.b16 %v474
    %v1488 = vunpack.c.h.b16 %v474
    %v1489 = vunpack.c.l.b16 %v475
    %v1490 = vunpack.c.h.b16 %v475
    %v1491 = vunpack.c.l.b16 %v476
    %v1492 = vunpack.c.h.b16 %v476
    %v1493 = vunpack.c.l.b16 %v477
    %v1494 = vunpack.c.h.b16 %v477
    %v1495 = vunpack.c.l.b16 %v478
    %v1496 = vunpack.c.h.b16 %v478
    %v1497 = vunpack.c.l.b16 %v479
    %v1498 = vunpack.c.h.b16 %v479
    %v1499 = vunpack.c.l.b16 %v480
    %v1500 = vunpack.c.h.b16 %v480
    %v1501 = vunpack.c.l.b16 %v481
    %v1502 = vunpack.c.h.b16 %v481
    %v1503 = vunpack.c.l.b16 %v482
    %v1504 = vunpack.c.h.b16 %v482
    %v1505 = vunpack.c.l.b16 %v483
    %v1506 = vunpack.c.h.b16 %v483
    %v1507 = vunpack.c.l.b16 %v484
    %v1508 = vunpack.c.h.b16 %v484
    %v1509 = vunpack.c.l.b16 %v485
    %v1510 = vunpack.c.h.b16 %v485
    %v1511 = vunpack.c.l.b16 %v486
    %v1512 = vunpack.c.h.b16 %v486
    %v1513 = vunpack.c.l.b16 %v487
    %v1514 = vunpack.c.h.b16 %v487
    %v1515 = vunpack.c.l.b16 %v488
    %v1516 = vunpack.c.h.b16 %v488
    %v1517 = vunpack.c.l.b16 %v489
    %v1518 = vunpack.c.h.b16 %v489
    %v1519 = vunpack.c.l.b16 %v490
    %v1520 = vunpack.c.h.b16 %v490
    %v1521 = vunpack.c.l.b16 %v491
    %v1522 = vunpack.c.h.b16 %v491
    %v1523 = vunpack.c.l.b16 %v492
    %v1524 = vunpack.c.h.b16 %v492
    %v1525 = vunpack.c.l.b16 %v493
    %v1526 = vunpack.c.h.b16 %v493
    %v1527 = vunpack.c.l.b16 %v494
    %v1528 = vunpack.c.h.b16 %v494
    %v1529 = vunpack.c.l.b16 %v495
    %v1530 = vunpack.c.h.b16 %v495
    %v1531 = vunpack.c.l.b16 %v496
    %v1532 = vunpack.c.h.b16 %v496
    %v1533 = vunpack.c.l.b16 %v497
    %v1534 = vunpack.c.h.b16 %v497
    %v1535 = vunpack.c.l.b16 %v498
    %v1536 = vunpack.c.h.b16 %v498
    %v1537 = vunpack.c.l.b16 %v499
    %v1538 = vunpack.c.h.b16 %v499
    %v1539 = vunpack.c.l.b16 %v500
    %v1540 = vunpack.c.h.b16 %v500
    %v1541 = vunpack.c.l.b16 %v501
    %v1542 = vunpack.c.h.b16 %v501
    %v1543 = vunpack.c.l.b16 %v502
    %v1544 = vunpack.c.h.b16 %v502
    %v1545 = vunpack.c.l.b16 %v503
    %v1546 = vunpack.c.h.b16 %v503
    %v1547 = vunpack.c.l.b16 %v504
    %v1548 = vunpack.c.h.b16 %v504
    %v1549 = vunpack.c.l.b16 %v505
    %v1550 = vunpack.c.h.b16 %v505
    %v1551 = vunpack.c.l.b16 %v506
    %v1552 = vunpack.c.h.b16 %v506
    %v1553 = vunpack.c.l.b16 %v507
    %v1554 = vunpack.c.h.b16 %v507
    %v1555 = vunpack.c.l.b16 %v508
    %v1556 = vunpack.c.h.b16 %v508
    %v1557 = vunpack.c.l.b16 %v509
    %v1558 = vunpack.c.h.b16 %v509
    %v1559 = vunpack.c.l.b16 %v510
    %v1560 = vunpack.c.h.b16 %v510
    %v1561 = vunpack.c.l.b16 %v511
    %v1562 = vunpack.c.h.b16 %v511
    %v1563 = vunpack.c.l.b16 %v512
    %v1564 = vunpack.c.h.b16 %v512
    %v1565 = vunpack.c.l.b16 %v513
    %v1566 = vunpack.c.h.b16 %v513
    %v1567 = vunpack.c.l.b16 %v514
    %v1568 = vunpack.c.h.b16 %v514
    %v1569 = vunpack.c.l.b16 %v515
    %v1570 = vunpack.c.h.b16 %v515
    %v1571 = vunpack.c.l.b16 %v516
    %v1572 = vunpack.c.h.b16 %v516
    %v1573 = vunpack.c.l.b16 %v517
    %v1574 = vunpack.c.h.b16 %v517
    %v1575 = vunpack.c.l.b16 %v518
    %v1576 = vunpack.c.h.b16 %v518
    %v1577 = vunpack.c.l.b16 %v519
    %v1578 = vunpack.c.h.b16 %v519
    %v1579 = vunpack.c.l.b16 %v520
    %v1580 = vunpack.c.h.b16 %v520
    %v1581 = vunpack.c.l.b16 %v521
    %v1582 = vunpack.c.h.b16 %v521
    %v1583 = vunpack.c.l.b16 %v522
    %v1584 = vunpack.c.h.b16 %v522
    %v1585 = vunpack.c.l.b16 %v523
    %v1586 = vunpack.c.h.b16 %v523
    %v1587 = vunpack.c.l.b16 %v524
    %v1588 = vunpack.c.h.b16 %v524
    %v1589 = vunpack.c.l.b16 %v525
    %v1590 = vunpack.c.h.b16 %v525
    %v1591 = vunpack.c.l.b16 %v526
    %v1592 = vunpack.c.h.b16 %v526
    %v1593 = vunpack.c.l.b16 %v527
    %v1594 = vunpack.c.h.b16 %v527
    %v1595 = vunpack.c.l.b16 %v528
    %v1596 = vunpack.c.h.b16 %v528
    %v1597 = vunpack.c.l.b16 %v529
    %v1598 = vunpack.c.h.b16 %v529
    %v1599 = vunpack.c.l.b16 %v530
    %v1600 = vunpack.c.h.b16 %v530
    %v1601 = vunpack.c.l.b16 %v531
    %v1602 = vunpack.c.h.b16 %v531
    %v1603 = vunpack.c.l.b16 %v532
    %v1604 = vunpack.c.h.b16 %v532
    %v1605 = vunpack.c.l.b16 %v533
    %v1606 = vunpack.c.h.b16 %v533
    %v1607 = vunpack.c.l.b16 %v534
    %v1608 = vunpack.c.h.b16 %v534
    %v1609 = vunpack.c.l.b16 %v535
    %v1610 = vunpack.c.h.b16 %v535
    %v1611 = vunpack.c.l.b16 %v536
    %v1612 = vunpack.c.h.b16 %v536
    %v1613 = vunpack.c.l.b16 %v537
    %v1614 = vunpack.c.h.b16 %v537
    %v1615 = vunpack.c.l.b16 %v538
    %v1616 = vunpack.c.h.b16 %v538
    %v1617 = vunpack.c.l.b16 %v539
    %v1618 = vunpack.c.h.b16 %v539
    %v1619 = vunpack.c.l.b16 %v540
    %v1620 = vunpack.c.h.b16 %v540
    %v1621 = vunpack.c.l.b16 %v541
    %v1622 = vunpack.c.h.b16 %v541
    %v1623 = vunpack.c.l.b16 %v542
    %v1624 = vunpack.c.h.b16 %v542
    %v1625 = vunpack.c.l.b16 %v543
    %v1626 = vunpack.c.h.b16 %v543
    %v1627 = vunpack.c.l.b16 %v544
    %v1628 = vunpack.c.h.b16 %v544
    %v1629 = vunpack.c.l.b16 %v545
    %v1630 = vunpack.c.h.b16 %v545
    %v1631 = vunpack.c.l.b16 %v546
    %v1632 = vunpack.c.h.b16 %v546
    %v1633 = vunpack.c.l.b16 %v547
    %v1634 = vunpack.c.h.b16 %v547
    %v1635 = vunpack.c.l.b16 %v548
    %v1636 = vunpack.c.h.b16 %v548
    %v1637 = vunpack.c.l.b16 %v549
    %v1638 = vunpack.c.h.b16 %v549
    %v1639 = vunpack.c.l.b16 %v550
    %v1640 = vunpack.c.h.b16 %v550
    %v1641 = vunpack.c.l.b16 %v551
    %v1642 = vunpack.c.h.b16 %v551
    %v1643 = vunpack.c.l.b16 %v552
    %v1644 = vunpack.c.h.b16 %v552
    %v1645 = vunpack.c.l.b16 %v553
    %v1646 = vunpack.c.h.b16 %v553
    %v1647 = vunpack.c.l.b16 %v554
    %v1648 = vunpack.c.h.b16 %v554
    %v1649 = vunpack.c.l.b16 %v555
    %v1650 = vunpack.c.h.b16 %v555
    %v1651 = vunpack.c.l.b16 %v556
    %v1652 = vunpack.c.h.b16 %v556
    %v1653 = vunpack.c.l.b16 %v557
    %v1654 = vunpack.c.h.b16 %v557
    %v1655 = vunpack.c.l.b16 %v558
    %v1656 = vunpack.c.h.b16 %v558
    %v1657 = vunpack.c.l.b16 %v559
    %v1658 = vunpack.c.h.b16 %v559
    %v1659 = vunpack.c.l.b16 %v560
    %v1660 = vunpack.c.h.b16 %v560
    %v1661 = vunpack.c.l.b16 %v561
    %v1662 = vunpack.c.h.b16 %v561
    %v1663 = vunpack.c.l.b16 %v562
    %v1664 = vunpack.c.h.b16 %v562
    %v1665 = vunpack.c.l.b16 %v563
    %v1666 = vunpack.c.h.b16 %v563
    %v1667 = vunpack.c.l.b16 %v564
    %v1668 = vunpack.c.h.b16 %v564
    %v1669 = vunpack.c.l.b16 %v565
    %v1670 = vunpack.c.h.b16 %v565
    %v1671 = vunpack.c.l.b16 %v566
    %v1672 = vunpack.c.h.b16 %v566
    %v1673 = vunpack.c.l.b16 %v567
    %v1674 = vunpack.c.h.b16 %v567
    %v1675 = vunpack.c.l.b16 %v568
    %v1676 = vunpack.c.h.b16 %v568
    %v1677 = vunpack.c.l.b16 %v569
    %v1678 = vunpack.c.h.b16 %v569
    %v1679 = vunpack.c.l.b16 %v570
    %v1680 = vunpack.c.h.b16 %v570
    %v1681 = vunpack.c.l.b16 %v571
    %v1682 = vunpack.c.h.b16 %v571
    %v1683 = vunpack.c.l.b16 %v572
    %v1684 = vunpack.c.h.b16 %v572
    %v1685 = vunpack.c.l.b16 %v573
    %v1686 = vunpack.c.h.b16 %v573
    %v1687 = vunpack.c.l.b16 %v574
    %v1688 = vunpack.c.h.b16 %v574
    %v1689 = vunpack.c.l.b16 %v575
    %v1690 = vunpack.c.h.b16 %v575
    %v1691 = vunpack.c.l.b16 %v576
    %v1692 = vunpack.c.h.b16 %v576
    %v1693 = vunpack.c.l.b16 %v577
    %v1694 = vunpack.c.h.b16 %v577
    %v1695 = vunpack.c.l.b16 %v578
    %v1696 = vunpack.c.h.b16 %v578
    %v1697 = vunpack.c.l.b16 %v579
    %v1698 = vunpack.c.h.b16 %v579
    %v1699 = vunpack.c.l.b16 %v580
    %v1700 = vunpack.c.h.b16 %v580
    %v1701 = vunpack.c.l.b16 %v581
    %v1702 = vunpack.c.h.b16 %v581
    %v1703 = vunpack.c.l.b16 %v582
    %v1704 = vunpack.c.h.b16 %v582
    %v1705 = vunpack.c.l.b16 %v583
    %v1706 = vunpack.c.h.b16 %v583
    %v1707 = vunpack.c.l.b16 %v584
    %v1708 = vunpack.c.h.b16 %v584
    %v1709 = vunpack.c.l.b16 %v585
    %v1710 = vunpack.c.h.b16 %v585
    %v1711 = vunpack.c.l.b16 %v586
    %v1712 = vunpack.c.h.b16 %v586
    %v1713 = vunpack.c.l.b16 %v587
    %v1714 = vunpack.c.h.b16 %v587
    %v1715 = vunpack.c.l.b16 %v588
    %v1716 = vunpack.c.h.b16 %v588
    %v1717 = vunpack.c.l.b16 %v589
    %v1718 = vunpack.c.h.b16 %v589
    %v1719 = vunpack.c.l.b16 %v590
    %v1720 = vunpack.c.h.b16 %v590
    %v1721 = vunpack.c.l.b16 %v591
    %v1722 = vunpack.c.h.b16 %v591
    %v1723 = vunpack.c.l.b16 %v592
    %v1724 = vunpack.c.h.b16 %v592
    %v1725 = vunpack.c.l.b16 %v593
    %v1726 = vunpack.c.h.b16 %v593
    %v1727 = vunpack.c.l.b16 %v594
    %v1728 = vunpack.c.h.b16 %v594
    %v1729 = vunpack.c.l.b16 %v595
    %v1730 = vunpack.c.h.b16 %v595
    %v1731 = vunpack.c.l.b16 %v596
    %v1732 = vunpack.c.h.b16 %v596
    %v1733 = vunpack.c.l.b16 %v597
    %v1734 = vunpack.c.h.b16 %v597
    %v1735 = vunpack.c.l.b16 %v598
    %v1736 = vunpack.c.h.b16 %v598
    %v1737 = vunpack.c.l.b16 %v599
    %v1738 = vunpack.c.h.b16 %v599
    %v1739 = vunpack.c.l.b16 %v600
    %v1740 = vunpack.c.h.b16 %v600
    %v1741 = vunpack.c.l.b16 %v601
    %v1742 = vunpack.c.h.b16 %v601
    %v1743 = vunpack.c.l.b16 %v602
    %v1744 = vunpack.c.h.b16 %v602
    %v1745 = vunpack.c.l.b16 %v603
    %v1746 = vunpack.c.h.b16 %v603
    %v1747 = vunpack.c.l.b16 %v604
    %v1748 = vunpack.c.h.b16 %v604
    %v1749 = vunpack.c.l.b16 %v605
    %v1750 = vunpack.c.h.b16 %v605
    %v1751 = vunpack.c.l.b16 %v606
    %v1752 = vunpack.c.h.b16 %v606
    %v1753 = vunpack.c.l.b16 %v607
    %v1754 = vunpack.c.h.b16 %v607
    %v1755 = vunpack.c.l.b16 %v608
    %v1756 = vunpack.c.h.b16 %v608
    %v1757 = vunpack.c.l.b16 %v609
    %v1758 = vunpack.c.h.b16 %v609
    %v1759 = vunpack.c.l.b16 %v610
    %v1760 = vunpack.c.h.b16 %v610
    %v1761 = vunpack.c.l.b16 %v611
    %v1762 = vunpack.c.h.b16 %v611
    %v1763 = vunpack.c.l.b16 %v612
    %v1764 = vunpack.c.h.b16 %v612
    %v1765 = vunpack.c.l.b16 %v613
    %v1766 = vunpack.c.h.b16 %v613
    %v1767 = vunpack.c.l.b16 %v614
    %v1768 = vunpack.c.h.b16 %v614
    %v1769 = vunpack.c.l.b16 %v615
    %v1770 = vunpack.c.h.b16 %v615
    %v1771 = vunpack.c.l.b16 %v616
    %v1772 = vunpack.c.h.b16 %v616
    %v1773 = vunpack.c.l.b16 %v617
    %v1774 = vunpack.c.h.b16 %v617
    %v1775 = vunpack.c.l.b16 %v618
    %v1776 = vunpack.c.h.b16 %v618
    %v1777 = vunpack.c.l.b16 %v619
    %v1778 = vunpack.c.h.b16 %v619
    %v1779 = vunpack.c.l.b16 %v620
    %v1780 = vunpack.c.h.b16 %v620
    %v1781 = vunpack.c.l.b16 %v621
    %v1782 = vunpack.c.h.b16 %v621
    %v1783 = vunpack.c.l.b16 %v622
    %v1784 = vunpack.c.h.b16 %v622
    %v1785 = vunpack.c.l.b16 %v623
    %v1786 = vunpack.c.h.b16 %v623
    %v1787 = vunpack.c.l.b16 %v624
    %v1788 = vunpack.c.h.b16 %v624
    %v1789 = vunpack.c.l.b16 %v625
    %v1790 = vunpack.c.h.b16 %v625
    %v1791 = vunpack.c.l.b16 %v626
    %v1792 = vunpack.c.h.b16 %v626
    %v1793 = vunpack.c.l.b16 %v627
    %v1794 = vunpack.c.h.b16 %v627
    %v1795 = vunpack.c.l.b16 %v628
    %v1796 = vunpack.c.h.b16 %v628
    %v1797 = vunpack.c.l.b16 %v629
    %v1798 = vunpack.c.h.b16 %v629
    %v1799 = vunpack.c.l.b16 %v630
    %v1800 = vunpack.c.h.b16 %v630
    %v1801 = vunpack.c.l.b16 %v631
    %v1802 = vunpack.c.h.b16 %v631
    %v1803 = vunpack.c.l.b16 %v632
    %v1804 = vunpack.c.h.b16 %v632
    %v1805 = vunpack.c.l.b16 %v633
    %v1806 = vunpack.c.h.b16 %v633
    %v1807 = vunpack.c.l.b16 %v634
    %v1808 = vunpack.c.h.b16 %v634
    %v1809 = vunpack.c.l.b16 %v635
    %v1810 = vunpack.c.h.b16 %v635
    %v1811 = vunpack.c.l.b16 %v636
    %v1812 = vunpack.c.h.b16 %v636
    %v1813 = vunpack.c.l.b16 %v637
    %v1814 = vunpack.c.h.b16 %v637
    %v1815 = vunpack.c.l.b16 %v638
    %v1816 = vunpack.c.h.b16 %v638
    %v1817 = vunpack.c.l.b16 %v639
    %v1818 = vunpack.c.h.b16 %v639
    %v1819 = vunpack.c.l.b16 %v640
    %v1820 = vunpack.c.h.b16 %v640
    %v1821 = vunpack.c.l.b16 %v641
    %v1822 = vunpack.c.h.b16 %v641
    %v1823 = vunpack.c.l.b16 %v642
    %v1824 = vunpack.c.h.b16 %v642
    %v1825 = vunpack.c.l.b16 %v643
    %v1826 = vunpack.c.h.b16 %v643
    %v1827 = vunpack.c.l.b16 %v644
    %v1828 = vunpack.c.h.b16 %v644
    %v1829 = vunpack.c.l.b16 %v645
    %v1830 = vunpack.c.h.b16 %v645
    %v1831 = vunpack.c.l.b16 %v646
    %v1832 = vunpack.c.h.b16 %v646
    %v1833 = vunpack.c.l.b16 %v647
    %v1834 = vunpack.c.h.b16 %v647
    %v1835 = vunpack.c.l.b16 %v648
    %v1836 = vunpack.c.h.b16 %v648
    %v1837 = vunpack.c.l.b16 %v649
    %v1838 = vunpack.c.h.b16 %v649
    %v1839 = vunpack.c.l.b16 %v650
    %v1840 = vunpack.c.h.b16 %v650
    %v1841 = vunpack.c.l.b16 %v651
    %v1842 = vunpack.c.h.b16 %v651
    %v1843 = vunpack.c.l.b16 %v652
    %v1844 = vunpack.c.h.b16 %v652
    %v1845 = vunpack.c.l.b16 %v653
    %v1846 = vunpack.c.h.b16 %v653
    %v1847 = vunpack.c.l.b16 %v654
    %v1848 = vunpack.c.h.b16 %v654
    %v1849 = vunpack.c.l.b16 %v655
    %v1850 = vunpack.c.h.b16 %v655
    %v1851 = vunpack.c.l.b16 %v656
    %v1852 = vunpack.c.h.b16 %v656
    %v1853 = vunpack.c.l.b16 %v657
    %v1854 = vunpack.c.h.b16 %v657
    %v1855 = vunpack.c.l.b16 %v658
    %v1856 = vunpack.c.h.b16 %v658
    %v1857 = vunpack.c.l.b16 %v659
    %v1858 = vunpack.c.h.b16 %v659
    %v1859 = vunpack.c.l.b16 %v660
    %v1860 = vunpack.c.h.b16 %v660
    %v1861 = vunpack.c.l.b16 %v661
    %v1862 = vunpack.c.h.b16 %v661
    %v1863 = vunpack.c.l.b16 %v662
    %v1864 = vunpack.c.h.b16 %v662
    %v1865 = vunpack.c.l.b16 %v663
    %v1866 = vunpack.c.h.b16 %v663
    %v1867 = vunpack.c.l.b16 %v664
    %v1868 = vunpack.c.h.b16 %v664
    %v1869 = vunpack.c.l.b16 %v665
    %v1870 = vunpack.c.h.b16 %v665
    %v1871 = vunpack.c.l.b16 %v666
    %v1872 = vunpack.c.h.b16 %v666
    %v1873 = vunpack.c.l.b16 %v667
    %v1874 = vunpack.c.h.b16 %v667
    %v1875 = vunpack.c.l.b16 %v668
    %v1876 = vunpack.c.h.b16 %v668
    %v1877 = vunpack.c.l.b16 %v669
    %v1878 = vunpack.c.h.b16 %v669
    %v1879 = vunpack.c.l.b16 %v670
    %v1880 = vunpack.c.h.b16 %v670
    %v1881 = vunpack.c.l.b16 %v671
    %v1882 = vunpack.c.h.b16 %v671
    %v1883 = vpack.c.b16 %v1107, %v1099
    %v1884 = vpack.c.b16 %v1108, %v1100
    %v1885 = vpack.c.b16 %v1109, %v1101
    %v1886 = vpack.c.b16 %v1110, %v1102
    %v1887 = vpack.c.b16 %v1111, %v1103
    %v1888 = vpack.c.b16 %v1112, %v1104
    %v1889 = vpack.c.b16 %v1113, %v1105
    %v1890 = vpack.c.b16 %v1114, %v1106
    %v1891 = vpack.c.b16 %v1123, %v1115
    %v1892 = vpack.c.b16 %v1124, %v1116
    %v1893 = vpack.c.b16 %v1125, %v1117
    %v1894 = vpack.c.b16 %v1126, %v1118
    %v1895 = vpack.c.b16 %v1127, %v1119
    %v1896 = vpack.c.b16 %v1128, %v1120
    %v1897 = vpack.c.b16 %v1129, %v1121
    %v1898 = vpack.c.b16 %v1130, %v1122
    %v1899 = vpack.c.b16 %v1139, %v1131
    %v1900 = vpack.c.b16 %v1140, %v1132
    %v1901 = vpack.c.b16 %v1141, %v1133
    %v1902 = vpack.c.b16 %v1142, %v1134
    %v1903 = vpack.c.b16 %v1143, %v1135
    %v1904 = vpack.c.b16 %v1144, %v1136
    %v1905 = vpack.c.b16 %v1145, %v1137
    %v1906 = vpack.c.b16 %v1146, %v1138
    %v1907 = vpack.c.b16 %v1155, %v1147
    %v1908 = vpack.c.b16 %v1156, %v1148
    %v1909 = vpack.c.b16 %v1157, %v1149
    %v1910 = vpack.c.b16 %v1158, %v1150
    %v1911 = vpack.c.b16 %v1159, %v1151
    %v1912 = vpack.c.b16 %v1160, %v1152
    %v1913 = vpack.c.b16 %v1161, %v1153
    %v1914 = vpack.c.b16 %v1162, %v1154
    %v1915 = vpack.c.b16 %v1171, %v1163
    %v1916 = vpack.c.b16 %v1172, %v1164
    %v1917 = vpack.c.b16 %v1173, %v1165
    %v1918 = vpack.c.b16 %v1174, %v1166
    %v1919 = vpack.c.b16 %v1175, %v1167
    %v1920 = vpack.c.b16 %v1176, %v1168
    %v1921 = vpack.c.b16 %v1177, %v1169
    %v1922 = vpack.c.b16 %v1178, %v1170
    %v1923 = vpack.c.b16 %v1187, %v1179
    %v1924 = vpack.c.b16 %v1188, %v1180
    %v1925 = vpack.c.b16 %v1189, %v1181
    %v1926 = vpack.c.b16 %v1190, %v1182
    %v1927 = vpack.c.b16 %v1191, %v1183
    %v1928 = vpack.c.b16 %v1192, %v1184
    %v1929 = vpack.c.b16 %v1193, %v1185
    %v1930 = vpack.c.b16 %v1194, %v1186
    %v1931 = vpack.c.b16 %v1203, %v1195
    %v1932 = vpack.c.b16 %v1204, %v1196
    %v1933 = vpack.c.b16 %v1205, %v1197
    %v1934 = vpack.c.b16 %v1206, %v1198
    %v1935 = vpack.c.b16 %v1207, %v1199
    %v1936 = vpack.c.b16 %v1208, %v1200
    %v1937 = vpack.c.b16 %v1209, %v1201
    %v1938 = vpack.c.b16 %v1210, %v1202
    %v1939 = vpack.c.b16 %v1219, %v1211
    %v1940 = vpack.c.b16 %v1220, %v1212
    %v1941 = vpack.c.b16 %v1221, %v1213
    %v1942 = vpack.c.b16 %v1222, %v1214
    %v1943 = vpack.c.b16 %v1223, %v1215
    %v1944 = vpack.c.b16 %v1224, %v1216
    %v1945 = vpack.c.b16 %v1225, %v1217
    %v1946 = vpack.c.b16 %v1226, %v1218
    %v1947 = vpack.c.b16 %v1235, %v1227
    %v1948 = vpack.c.b16 %v1236, %v1228
    %v1949 = vpack.c.b16 %v1237, %v1229
    %v1950 = vpack.c.b16 %v1238, %v1230
    %v1951 = vpack.c.b16 %v1239, %v1231
    %v1952 = vpack.c.b16 %v1240, %v1232
    %v1953 = vpack.c.b16 %v1241, %v1233
    %v1954 = vpack.c.b16 %v1242, %v1234
    %v1955 = vpack.c.b16 %v1251, %v1243
    %v1956 = vpack.c.b16 %v1252, %v1244
    %v1957 = vpack.c.b16 %v1253, %v1245
    %v1958 = vpack.c.b16 %v1254, %v1246
    %v1959 = vpack.c.b16 %v1255, %v1247
    %v1960 = vpack.c.b16 %v1256, %v1248
    %v1961 = vpack.c.b16 %v1257, %v1249
    %v1962 = vpack.c.b16 %v1258, %v1250
    %v1963 = vpack.c.b16 %v1267, %v1259
    %v1964 = vpack.c.b16 %v1268, %v1260
    %v1965 = vpack.c.b16 %v1269, %v1261
    %v1966 = vpack.c.b16 %v1270, %v1262
    %v1967 = vpack.c.b16 %v1271, %v1263
    %v1968 = vpack.c.b16 %v1272, %v1264
    %v1969 = vpack.c.b16 %v1273, %v1265
    %v1970 = vpack.c.b16 %v1274, %v1266
    %v1971 = vpack.c.b16 %v1283, %v1275
    %v1972 = vpack.c.b16 %v1284, %v1276
    %v1973 = vpack.c.b16 %v1285, %v1277
    %v1974 = vpack.c.b16 %v1286, %v1278
    %v1975 = vpack.c.b16 %v1287, %v1279
    %v1976 = vpack.c.b16 %v1288, %v1280
    %v1977 = vpack.c.b16 %v1289, %v1281
    %v1978 = vpack.c.b16 %v1290, %v1282
    %v1979 = vpack.c.b16 %v1299, %v1291
    %v1980 = vpack.c.b16 %v1300, %v1292
    %v1981 = vpack.c.b16 %v1301, %v1293
    %v1982 = vpack.c.b16 %v1302, %v1294
    %v1983 = vpack.c.b16 %v1303, %v1295
    %v1984 = vpack.c.b16 %v1304, %v1296
    %v1985 = vpack.c.b16 %v1305, %v1297
    %v1986 = vpack.c.b16 %v1306, %v1298
    %v1987 = vpack.c.b16 %v1315, %v1307
    %v1988 = vpack.c.b16 %v1316, %v1308
    %v1989 = vpack.c.b16 %v1317, %v1309
    %v1990 = vpack.c.b16 %v1318, %v1310
    %v1991 = vpack.c.b16 %v1319, %v1311
    %v1992 = vpack.c.b16 %v1320, %v1312
    %v1993 = vpack.c.b16 %v1321, %v1313
    %v1994 = vpack.c.b16 %v1322, %v1314
    %v1995 = vpack.c.b16 %v1331, %v1323
    %v1996 = vpack.c.b16 %v1332, %v1324
    %v1997 = vpack.c.b16 %v1333, %v1325
    %v1998 = vpack.c.b16 %v1334, %v1326
    %v1999 = vpack.c.b16 %v1335, %v1327
    %v2000 = vpack.c.b16 %v1336, %v1328
    %v2001 = vpack.c.b16 %v1337, %v1329
    %v2002 = vpack.c.b16 %v1338, %v1330
    %v2003 = vpack.c.b16 %v1347, %v1339
    %v2004 = vpack.c.b16 %v1348, %v1340
    %v2005 = vpack.c.b16 %v1349, %v1341
    %v2006 = vpack.c.b16 %v1350, %v1342
    %v2007 = vpack.c.b16 %v1351, %v1343
    %v2008 = vpack.c.b16 %v1352, %v1344
    %v2009 = vpack.c.b16 %v1353, %v1345
    %v2010 = vpack.c.b16 %v1354, %v1346
    %v2011 = vpack.c.b16 %v1363, %v1355
    %v2012 = vpack.c.b16 %v1364, %v1356
    %v2013 = vpack.c.b16 %v1365, %v1357
    %v2014 = vpack.c.b16 %v1366, %v1358
    %v2015 = vpack.c.b16 %v1367, %v1359
    %v2016 = vpack.c.b16 %v1368, %v1360
    %v2017 = vpack.c.b16 %v1369, %v1361
    %v2018 = vpack.c.b16 %v1370, %v1362
    %v2019 = vpack.c.b16 %v1379, %v1371
    %v2020 = vpack.c.b16 %v1380, %v1372
    %v2021 = vpack.c.b16 %v1381, %v1373
    %v2022 = vpack.c.b16 %v1382, %v1374
    %v2023 = vpack.c.b16 %v1383, %v1375
    %v2024 = vpack.c.b16 %v1384, %v1376
    %v2025 = vpack.c.b16 %v1385, %v1377
    %v2026 = vpack.c.b16 %v1386, %v1378
    %v2027 = vpack.c.b16 %v1395, %v1387
    %v2028 = vpack.c.b16 %v1396, %v1388
    %v2029 = vpack.c.b16 %v1397, %v1389
    %v2030 = vpack.c.b16 %v1398, %v1390
    %v2031 = vpack.c.b16 %v1399, %v1391
    %v2032 = vpack.c.b16 %v1400, %v1392
    %v2033 = vpack.c.b16 %v1401, %v1393
    %v2034 = vpack.c.b16 %v1402, %v1394
    %v2035 = vpack.c.b16 %v1411, %v1403
    %v2036 = vpack.c.b16 %v1412, %v1404
    %v2037 = vpack.c.b16 %v1413, %v1405
    %v2038 = vpack.c.b16 %v1414, %v1406
    %v2039 = vpack.c.b16 %v1415, %v1407
    %v2040 = vpack.c.b16 %v1416, %v1408
    %v2041 = vpack.c.b16 %v1417, %v1409
    %v2042 = vpack.c.b16 %v1418, %v1410
    %v2043 = vpack.c.b16 %v1427, %v1419
    %v2044 = vpack.c.b16 %v1428, %v1420
    %v2045 = vpack.c.b16 %v1429, %v1421
    %v2046 = vpack.c.b16 %v1430, %v1422
    %v2047 = vpack.c.b16 %v1431, %v1423
    %v2048 = vpack.c.b16 %v1432, %v1424
    %v2049 = vpack.c.b16 %v1433, %v1425
    %v2050 = vpack.c.b16 %v1434, %v1426
    %v2051 = vpack.c.b16 %v1443, %v1435
    %v2052 = vpack.c.b16 %v1444, %v1436
    %v2053 = vpack.c.b16 %v1445, %v1437
    %v2054 = vpack.c.b16 %v1446, %v1438
    %v2055 = vpack.c.b16 %v1447, %v1439
    %v2056 = vpack.c.b16 %v1448, %v1440
    %v2057 = vpack.c.b16 %v1449, %v1441
    %v2058 = vpack.c.b16 %v1450, %v1442
    %v2059 = vpack.c.b16 %v1459, %v1451
    %v2060 = vpack.c.b16 %v1460, %v1452
    %v2061 = vpack.c.b16 %v1461, %v1453
    %v2062 = vpack.c.b16 %v1462, %v1454
    %v2063 = vpack.c.b16 %v1463, %v1455
    %v2064 = vpack.c.b16 %v1464, %v1456
    %v2065 = vpack.c.b16 %v1465, %v1457
    %v2066 = vpack.c.b16 %v1466, %v1458
    %v2067 = vpack.c.b16 %v1475, %v1467
    %v2068 = vpack.c.b16 %v1476, %v1468
    %v2069 = vpack.c.b16 %v1477, %v1469
    %v2070 = vpack.c.b16 %v1478, %v1470
    %v2071 = vpack.c.b16 %v1479, %v1471
    %v2072 = vpack.c.b16 %v1480, %v1472
    %v2073 = vpack.c.b16 %v1481, %v1473
    %v2074 = vpack.c.b16 %v1482, %v1474
    %v2075 = vpack.c.b16 %v1491, %v1483
    %v2076 = vpack.c.b16 %v1492, %v1484
    %v2077 = vpack.c.b16 %v1493, %v1485
    %v2078 = vpack.c.b16 %v1494, %v1486
    %v2079 = vpack.c.b16 %v1495, %v1487
    %v2080 = vpack.c.b16 %v1496, %v1488
    %v2081 = vpack.c.b16 %v1497, %v1489
    %v2082 = vpack.c.b16 %v1498, %v1490
    %v2083 = vpack.c.b16 %v1507, %v1499
    %v2084 = vpack.c.b16 %v1508, %v1500
    %v2085 = vpack.c.b16 %v1509, %v1501
    %v2086 = vpack.c.b16 %v1510, %v1502
    %v2087 = vpack.c.b16 %v1511, %v1503
    %v2088 = vpack.c.b16 %v1512, %v1504
    %v2089 = vpack.c.b16 %v1513, %v1505
    %v2090 = vpack.c.b16 %v1514, %v1506
    %v2091 = vpack.c.b16 %v1523, %v1515
    %v2092 = vpack.c.b16 %v1524, %v1516
    %v2093 = vpack.c.b16 %v1525, %v1517
    %v2094 = vpack.c.b16 %v1526, %v1518
    %v2095 = vpack.c.b16 %v1527, %v1519
    %v2096 = vpack.c.b16 %v1528, %v1520
    %v2097 = vpack.c.b16 %v1529, %v1521
    %v2098 = vpack.c.b16 %v1530, %v1522
    %v2099 = vpack.c.b16 %v1539, %v1531
    %v2100 = vpack.c.b16 %v1540, %v1532
    %v2101 = vpack.c.b16 %v1541, %v1533
    %v2102 = vpack.c.b16 %v1542, %v1534
    %v2103 = vpack.c.b16 %v1543, %v1535
    %v2104 = vpack.c.b16 %v1544, %v1536
    %v2105 = vpack.c.b16 %v1545, %v1537
    %v2106 = vpack.c.b16 %v1546, %v1538
    %v2107 = vpack.c.b16 %v1555, %v1547
    %v2108 = vpack.c.b16 %v1556, %v1548
    %v2109 = vpack.c.b16 %v1557, %v1549
    %v2110 = vpack.c.b16 %v1558, %v1550
    %v2111 = vpack.c.b16 %v1559, %v1551
    %v2112 = vpack.c.b16 %v1560, %v1552
    %v2113 = vpack.c.b16 %v1561, %v1553
    %v2114 = vpack.c.b16 %v1562, %v1554
    %v2115 = vpack.c.b16 %v1571, %v1563
    %v2116 = vpack.c.b16 %v1572, %v1564
    %v2117 = vpack.c.b16 %v1573, %v1565
    %v2118 = vpack.c.b16 %v1574, %v1566
    %v2119 = vpack.c.b16 %v1575, %v1567
    %v2120 = vpack.c.b16 %v1576, %v1568
    %v2121 = vpack.c.b16 %v1577, %v1569
    %v2122 = vpack.c.b16 %v1578, %v1570
    %v2123 = vpack.c.b16 %v1587, %v1579
    %v2124 = vpack.c.b16 %v1588, %v1580
    %v2125 = vpack.c.b16 %v1589, %v1581
    %v2126 = vpack.c.b16 %v1590, %v1582
    %v2127 = vpack.c.b16 %v1591, %v1583
    %v2128 = vpack.c.b16 %v1592, %v1584
    %v2129 = vpack.c.b16 %v1593, %v1585
    %v2130 = vpack.c.b16 %v1594, %v1586
    %v2131 = vpack.c.b16 %v1603, %v1595
    %v2132 = vpack.c.b16 %v1604, %v1596
    %v2133 = vpack.c.b16 %v1605, %v1597
    %v2134 = vpack.c.b16 %v1606, %v1598
    %v2135 = vpack.c.b16 %v1607, %v1599
    %v2136 = vpack.c.b16 %v1608, %v1600
    %v2137 = vpack.c.b16 %v1609, %v1601
    %v2138 = vpack.c.b16 %v1610, %v1602
    %v2139 = vpack.c.b16 %v1619, %v1611
    %v2140 = vpack.c.b16 %v1620, %v1612
    %v2141 = vpack.c.b16 %v1621, %v1613
    %v2142 = vpack.c.b16 %v1622, %v1614
    %v2143 = vpack.c.b16 %v1623, %v1615
    %v2144 = vpack.c.b16 %v1624, %v1616
    %v2145 = vpack.c.b16 %v1625, %v1617
    %v2146 = vpack.c.b16 %v1626, %v1618
    %v2147 = vpack.c.b16 %v1635, %v1627
    %v2148 = vpack.c.b16 %v1636, %v1628
    %v2149 = vpack.c.b16 %v1637, %v1629
    %v2150 = vpack.c.b16 %v1638, %v1630
    %v2151 = vpack.c.b16 %v1639, %v1631
    %v2152 = vpack.c.b16 %v1640, %v1632
    %v2153 = vpack.c.b16 %v1641, %v1633
    %v2154 = vpack.c.b16 %v1642, %v1634
    %v2155 = vpack.c.b16 %v1651, %v1643
    %v2156 = vpack.c.b16 %v1652, %v1644
    %v2157 = vpack.c.b16 %v1653, %v1645
    %v2158 = vpack.c.b16 %v1654, %v1646
    %v2159 = vpack.c.b16 %v1655, %v1647
    %v2160 = vpack.c.b16 %v1656, %v1648
    %v2161 = vpack.c.b16 %v1657, %v1649
    %v2162 = vpack.c.b16 %v1658, %v1650
    %v2163 = vpack.c.b16 %v1667, %v1659
    %v2164 = vpack.c.b16 %v1668, %v1660
    %v2165 = vpack.c.b16 %v1669, %v1661
    %v2166 = vpack.c.b16 %v1670, %v1662
    %v2167 = vpack.c.b16 %v1671, %v1663
    %v2168 = vpack.c.b16 %v1672, %v1664
    %v2169 = vpack.c.b16 %v1673, %v1665
    %v2170 = vpack.c.b16 %v1674, %v1666
    %v2171 = vpack.c.b16 %v1683, %v1675
    %v2172 = vpack.c.b16 %v1684, %v1676
    %v2173 = vpack.c.b16 %v1685, %v1677
    %v2174 = vpack.c.b16 %v1686, %v1678
    %v2175 = vpack.c.b16 %v1687, %v1679
    %v2176 = vpack.c.b16 %v1688, %v1680
    %v2177 = vpack.c.b16 %v1689, %v1681
    %v2178 = vpack.c.b16 %v1690, %v1682
    %v2179 = vpack.c.b16 %v1699, %v1691
    %v2180 = vpack.c.b16 %v1700, %v1692
    %v2181 = vpack.c.b16 %v1701, %v1693
    %v2182 = vpack.c.b16 %v1702, %v1694
    %v2183 = vpack.c.b16 %v1703, %v1695
    %v2184 = vpack.c.b16 %v1704, %v1696
    %v2185 = vpack.c.b16 %v1705, %v1697
    %v2186 = vpack.c.b16 %v1706, %v1698
    %v2187 = vpack.c.b16 %v1715, %v1707
    %v2188 = vpack.c.b16 %v1716, %v1708
    %v2189 = vpack.c.b16 %v1717, %v1709
    %v2190 = vpack.c.b16 %v1718, %v1710
    %v2191 = vpack.c.b16 %v1719, %v1711
    %v2192 = vpack.c.b16 %v1720, %v1712
    %v2193 = vpack.c.b16 %v1721, %v1713
    %v2194 = vpack.c.b16 %v1722, %v1714
    %v2195 = vpack.c.b16 %v1731, %v1723
    %v2196 = vpack.c.b16 %v1732, %v1724
    %v2197 = vpack.c.b16 %v1733, %v1725
    %v2198 = vpack.c.b16 %v1734, %v1726
    %v2199 = vpack.c.b16 %v1735, %v1727
    %v2200 = vpack.c.b16 %v1736, %v1728
    %v2201 = vpack.c.b16 %v1737, %v1729
    %v2202 = vpack.c.b16 %v1738, %v1730
    %v2203 = vpack.c.b16 %v1747, %v1739
    %v2204 = vpack.c.b16 %v1748, %v1740
    %v2205 = vpack.c.b16 %v1749, %v1741
    %v2206 = vpack.c.b16 %v1750, %v1742
    %v2207 = vpack.c.b16 %v1751, %v1743
    %v2208 = vpack.c.b16 %v1752, %v1744
    %v2209 = vpack.c.b16 %v1753, %v1745
    %v2210 = vpack.c.b16 %v1754, %v1746
    %v2211 = vpack.c.b16 %v1763, %v1755
    %v2212 = vpack.c.b16 %v1764, %v1756
    %v2213 = vpack.c.b16 %v1765, %v1757
    %v2214 = vpack.c.b16 %v1766, %v1758
    %v2215 = vpack.c.b16 %v1767, %v1759
    %v2216 = vpack.c.b16 %v1768, %v1760
    %v2217 = vpack.c.b16 %v1769, %v1761
    %v2218 = vpack.c.b16 %v1770, %v1762
    %v2219 = vpack.c.b16 %v1779, %v1771
    %v2220 = vpack.c.b16 %v1780, %v1772
    %v2221 = vpack.c.b16 %v1781, %v1773
    %v2222 = vpack.c.b16 %v1782, %v1774
    %v2223 = vpack.c.b16 %v1783, %v1775
    %v2224 = vpack.c.b16 %v1784, %v1776
    %v2225 = vpack.c.b16 %v1785, %v1777
    %v2226 = vpack.c.b16 %v1786, %v1778
    %v2227 = vpack.c.b16 %v1795, %v1787
    %v2228 = vpack.c.b16 %v1796, %v1788
    %v2229 = vpack.c.b16 %v1797, %v1789
    %v2230 = vpack.c.b16 %v1798, %v1790
    %v2231 = vpack.c.b16 %v1799, %v1791
    %v2232 = vpack.c.b16 %v1800, %v1792
    %v2233 = vpack.c.b16 %v1801, %v1793
    %v2234 = vpack.c.b16 %v1802, %v1794
    %v2235 = vpack.c.b16 %v1811, %v1803
    %v2236 = vpack.c.b16 %v1812, %v1804
    %v2237 = vpack.c.b16 %v1813, %v1805
    %v2238 = vpack.c.b16 %v1814, %v1806
    %v2239 = vpack.c.b16 %v1815, %v1807
    %v2240 = vpack.c.b16 %v1816, %v1808
    %v2241 = vpack.c.b16 %v1817, %v1809
    %v2242 = vpack.c.b16 %v1818, %v1810
    %v2243 = vpack.c.b16 %v1827, %v1819
    %v2244 = vpack.c.b16 %v1828, %v1820
    %v2245 = vpack.c.b16 %v1829, %v1821
    %v2246 = vpack.c.b16 %v1830, %v1822
    %v2247 = vpack.c.b16 %v1831, %v1823
    %v2248 = vpack.c.b16 %v1832, %v1824
    %v2249 = vpack.c.b16 %v1833, %v1825
    %v2250 = vpack.c.b16 %v1834, %v1826
    %v2251 = vpack.c.b16 %v1843, %v1835
    %v2252 = vpack.c.b16 %v1844, %v1836
    %v2253 = vpack.c.b16 %v1845, %v1837
    %v2254 = vpack.c.b16 %v1846, %v1838
    %v2255 = vpack.c.b16 %v1847, %v1839
    %v2256 = vpack.c.b16 %v1848, %v1840
    %v2257 = vpack.c.b16 %v1849, %v1841
    %v2258 = vpack.c.b16 %v1850, %v1842
    %v2259 = vpack.c.b16 %v1859, %v1851
    %v2260 = vpack.c.b16 %v1860, %v1852
    %v2261 = vpack.c.b16 %v1861, %v1853
    %v2262 = vpack.c.b16 %v1862, %v1854
    %v2263 = vpack.c.b16 %v1863, %v1855
    %v2264 = vpack.c.b16 %v1864, %v1856
    %v2265 = vpack.c.b16 %v1865, %v1857
    %v2266 = vpack.c.b16 %v1866, %v1858
    %v2267 = vpack.c.b16 %v1875, %v1867
    %v2268 = vpack.c.b16 %v1876, %v1868
    %v2269 = vpack.c.b16 %v1877, %v1869
    %v2270 = vpack.c.b16 %v1878, %v1870
    %v2271 = vpack.c.b16 %v1879, %v1871
    %v2272 = vpack.c.b16 %v1880, %v1872
    %v2273 = vpack.c.b16 %v1881, %v1873
    %v2274 = vpack.c.b16 %v1882, %v1874
    %vm2667 = vcmask 130048
    %v2669 = vsel %vm2667, %v700, 0
    %2671 = vmatprep.subr.bf16.mxu0 %v1884
    %2672 = vmatpush1.bf16.msra.mxu0 %v1883
    %2673 = vmatprep.subr.bf16.mxu0 %v1892
    %2674 = vmatpush1.bf16.msra.mxu0 %v1891
    %2675 = vmatprep.subr.bf16.mxu0 %v1900
    %2676 = vmatpush1.bf16.msra.mxu0 %v1899
    %2677 = vmatprep.subr.bf16.mxu0 %v1908
    %2678 = vmatpush1.bf16.msra.mxu0 %v1907
    %2679 = vmatprep.subr.bf16.mxu0 %v1916
    %2680 = vmatpush1.bf16.msra.mxu0 %v1915
    %2681 = vmatprep.subr.bf16.mxu0 %v1924
    %2682 = vmatpush1.bf16.msra.mxu0 %v1923
    %2683 = vmatprep.subr.bf16.mxu0 %v1932
    %2684 = vmatpush1.bf16.msra.mxu0 %v1931
    %2685 = vmatprep.subr.bf16.mxu0 %v1940
    %2686 = vmatpush1.bf16.msra.mxu0 %v1939
    %2687 = vmatprep.subr.bf16.mxu0 %v1948
    %2688 = vmatpush1.bf16.msra.mxu0 %v1947
    %2689 = vmatprep.subr.bf16.mxu0 %v1956
    %2690 = vmatpush1.bf16.msra.mxu0 %v1955
    %2691 = vmatprep.subr.bf16.mxu0 %v1964
    %2692 = vmatpush1.bf16.msra.mxu0 %v1963
    %2693 = vmatprep.subr.bf16.mxu0 %v1972
    %2694 = vmatpush1.bf16.msra.mxu0 %v1971
    %2695 = vmatprep.subr.bf16.mxu0 %v1980
    %2696 = vmatpush1.bf16.msra.mxu0 %v1979
    %2697 = vmatprep.subr.bf16.mxu0 %v1988
    %2698 = vmatpush1.bf16.msra.mxu0 %v1987
    %2699 = vmatprep.subr.bf16.mxu0 %v1996
    %2700 = vmatpush1.bf16.msra.mxu0 %v1995
    %2701 = vmatprep.subr.bf16.mxu0 %v2004
    %2702 = vmatpush1.bf16.msra.mxu0 %v2003
    %2703 = vmatprep.mubr.bf16.mxu0 %v695
    %2704 = vmatmul.mubr.bf16.gmra.mrb[0].mxu0 %v694
    %v2705 = vpop.f32.mrb[0].mxu0
    %v2706 = vadd.f32 0.0, %v2705
    %v2707 = vpop.f32.mrb[0].mxu0
    %v2708 = vadd.f32 0.0, %v2707
    %v2709 = vpop.f32.mrb[0].mxu0
    %v2710 = vadd.f32 0.0, %v2709
    %v2711 = vpop.f32.mrb[0].mxu0
    %v2712 = vadd.f32 0.0, %v2711
    %2713 = vdwg.mxu0
    %2714 = vmatprep.subr.bf16.mxu0 %v2012
    %2715 = vmatpush1.bf16.msra.mxu0 %v2011
    %2716 = vmatprep.subr.bf16.mxu0 %v2020
    %2717 = vmatpush1.bf16.msra.mxu0 %v2019
    %2718 = vmatprep.subr.bf16.mxu0 %v2028
    %2719 = vmatpush1.bf16.msra.mxu0 %v2027
    %2720 = vmatprep.subr.bf16.mxu0 %v2036
    %2721 = vmatpush1.bf16.msra.mxu0 %v2035
    %2722 = vmatprep.subr.bf16.mxu0 %v2044
    %2723 = vmatpush1.bf16.msra.mxu0 %v2043
    %2724 = vmatprep.subr.bf16.mxu0 %v2052
    %2725 = vmatpush1.bf16.msra.mxu0 %v2051
    %2726 = vmatprep.subr.bf16.mxu0 %v2060
    %2727 = vmatpush1.bf16.msra.mxu0 %v2059
    %2728 = vmatprep.subr.bf16.mxu0 %v2068
    %2729 = vmatpush1.bf16.msra.mxu0 %v2067
    %2730 = vmatprep.subr.bf16.mxu0 %v2076
    %2731 = vmatpush1.bf16.msra.mxu0 %v2075
    %2732 = vmatprep.subr.bf16.mxu0 %v2084
    %2733 = vmatpush1.bf16.msra.mxu0 %v2083
    %2734 = vmatprep.subr.bf16.mxu0 %v2092
    %2735 = vmatpush1.bf16.msra.mxu0 %v2091
    %2736 = vmatprep.subr.bf16.mxu0 %v2100
    %2737 = vmatpush1.bf16.msra.mxu0 %v2099
    %2738 = vmatprep.subr.bf16.mxu0 %v2108
    %2739 = vmatpush1.bf16.msra.mxu0 %v2107
    %2740 = vmatprep.subr.bf16.mxu0 %v2116
    %2741 = vmatpush1.bf16.msra.mxu0 %v2115
    %2742 = vmatprep.subr.bf16.mxu0 %v2124
    %2743 = vmatpush1.bf16.msra.mxu0 %v2123
    %2744 = vmatprep.subr.bf16.mxu0 %v2132
    %2745 = vmatpush1.bf16.msra.mxu0 %v2131
    %2746 = vmatprep.mubr.bf16.mxu0 %v697
    %2747 = vmatmul.mubr.bf16.gmra.mrb[0].mxu0 %v696
    %v2748 = vpop.f32.mrb[0].mxu0
    %v2749 = vadd.f32 %v2706, %v2748
    %v2750 = vpop.f32.mrb[0].mxu0
    %v2751 = vadd.f32 %v2708, %v2750
    %v2752 = vpop.f32.mrb[0].mxu0
    %v2753 = vadd.f32 %v2710, %v2752
    %v2754 = vpop.f32.mrb[0].mxu0
    %v2755 = vadd.f32 %v2712, %v2754
    %2756 = vdwg.mxu0
    %2757 = vmatprep.subr.bf16.mxu0 %v2140
    %2758 = vmatpush1.bf16.msra.mxu0 %v2139
    %2759 = vmatprep.subr.bf16.mxu0 %v2148
    %2760 = vmatpush1.bf16.msra.mxu0 %v2147
    %2761 = vmatprep.subr.bf16.mxu0 %v2156
    %2762 = vmatpush1.bf16.msra.mxu0 %v2155
    %2763 = vmatprep.subr.bf16.mxu0 %v2164
    %2764 = vmatpush1.bf16.msra.mxu0 %v2163
    %2765 = vmatprep.subr.bf16.mxu0 %v2172
    %2766 = vmatpush1.bf16.msra.mxu0 %v2171
    %2767 = vmatprep.subr.bf16.mxu0 %v2180
    %2768 = vmatpush1.bf16.msra.mxu0 %v2179
    %2769 = vmatprep.subr.bf16.mxu0 %v2188
    %2770 = vmatpush1.bf16.msra.mxu0 %v2187
    %2771 = vmatprep.subr.bf16.mxu0 %v2196
    %2772 = vmatpush1.bf16.msra.mxu0 %v2195
    %2773 = vmatprep.subr.bf16.mxu0 %v2204
    %2774 = vmatpush1.bf16.msra.mxu0 %v2203
    %2775 = vmatprep.subr.bf16.mxu0 %v2212
    %2776 = vmatpush1.bf16.msra.mxu0 %v2211
    %2777 = vmatprep.subr.bf16.mxu0 %v2220
    %2778 = vmatpush1.bf16.msra.mxu0 %v2219
    %2779 = vmatprep.subr.bf16.mxu0 %v2228
    %2780 = vmatpush1.bf16.msra.mxu0 %v2227
    %2781 = vmatprep.subr.bf16.mxu0 %v2236
    %2782 = vmatpush1.bf16.msra.mxu0 %v2235
    %2783 = vmatprep.subr.bf16.mxu0 %v2244
    %2784 = vmatpush1.bf16.msra.mxu0 %v2243
    %2785 = vmatprep.subr.bf16.mxu0 %v2252
    %2786 = vmatpush1.bf16.msra.mxu0 %v2251
    %2787 = vmatprep.subr.bf16.mxu0 %v2260
    %2788 = vmatpush1.bf16.msra.mxu0 %v2259
    %2789 = vmatprep.mubr.bf16.mxu0 %v699
    %2790 = vmatmul.mubr.bf16.gmra.mrb[0].mxu0 %v698
    %v2791 = vpop.f32.mrb[0].mxu0
    %v2792 = vadd.f32 %v2749, %v2791
    %v2793 = vpop.f32.mrb[0].mxu0
    %v2794 = vadd.f32 %v2751, %v2793
    %v2795 = vpop.f32.mrb[0].mxu0
    %v2796 = vadd.f32 %v2753, %v2795
    %v2797 = vpop.f32.mrb[0].mxu0
    %v2798 = vadd.f32 %v2755, %v2797
    %2799 = vdwg.mxu0
    %2800 = vmatprep.subr.bf16.mxu0 %v2268
    %2801 = vmatpush1.bf16.msra.mxu0 %v2267
    %2802 = vmatprep.subr.bf16.mxu0 0
    %2803 = vmatpush1.bf16.msra.mxu0 0
    %2804 = vmatprep.subr.bf16.mxu0 0
    %2805 = vmatpush1.bf16.msra.mxu0 0
    %2806 = vmatprep.subr.bf16.mxu0 0
    %2807 = vmatpush1.bf16.msra.mxu0 0
    %2808 = vmatprep.subr.bf16.mxu0 0
    %2809 = vmatpush1.bf16.msra.mxu0 0
    %2810 = vmatprep.subr.bf16.mxu0 0
    %2811 = vmatpush1.bf16.msra.mxu0 0
    %2812 = vmatprep.subr.bf16.mxu0 0
    %2813 = vmatpush1.bf16.msra.mxu0 0
    %2814 = vmatprep.subr.bf16.mxu0 0
    %2815 = vmatpush1.bf16.msra.mxu0 0
    %2816 = vmatprep.subr.bf16.mxu0 0
    %2817 = vmatpush1.bf16.msra.mxu0 0
    %2818 = vmatprep.subr.bf16.mxu0 0
    %2819 = vmatpush1.bf16.msra.mxu0 0
    %2820 = vmatprep.subr.bf16.mxu0 0
    %2821 = vmatpush1.bf16.msra.mxu0 0
    %2822 = vmatprep.subr.bf16.mxu0 0
    %2823 = vmatpush1.bf16.msra.mxu0 0
    %2824 = vmatprep.subr.bf16.mxu0 0
    %2825 = vmatpush1.bf16.msra.mxu0 0
    %2826 = vmatprep.subr.bf16.mxu0 0
    %2827 = vmatpush1.bf16.msra.mxu0 0
    %2828 = vmatprep.subr.bf16.mxu0 0
    %2829 = vmatpush1.bf16.msra.mxu0 0
    %2830 = vmatprep.subr.bf16.mxu0 0
    %2831 = vmatpush1.bf16.msra.mxu0 0
    %2832 = vmatprep.mubr.bf16.mxu0 0
    %2833 = vmatmul.mubr.bf16.gmra.mrb[0].mxu0 %v2669
    %v2834 = vpop.f32.mrb[0].mxu0
    %v2835 = vadd.f32 %v2792, %v2834
    %v2836 = vpop.f32.mrb[0].mxu0
    %v2837 = vadd.f32 %v2794, %v2836
    %v2838 = vpop.f32.mrb[0].mxu0
    %v2839 = vadd.f32 %v2796, %v2838
    %v2840 = vpop.f32.mrb[0].mxu0
    %v2841 = vadd.f32 %v2798, %v2840
    %2842 = vdwg.mxu0
    %2843 = vmatprep.subr.bf16.mxu0 %v1886
    %2844 = vmatpush1.bf16.msra.mxu0 %v1885
    %2845 = vmatprep.subr.bf16.mxu0 %v1894
    %2846 = vmatpush1.bf16.msra.mxu0 %v1893
    %2847 = vmatprep.subr.bf16.mxu0 %v1902
    %2848 = vmatpush1.bf16.msra.mxu0 %v1901
    %2849 = vmatprep.subr.bf16.mxu0 %v1910
    %2850 = vmatpush1.bf16.msra.mxu0 %v1909
    %2851 = vmatprep.subr.bf16.mxu0 %v1918
    %2852 = vmatpush1.bf16.msra.mxu0 %v1917
    %2853 = vmatprep.subr.bf16.mxu0 %v1926
    %2854 = vmatpush1.bf16.msra.mxu0 %v1925
    %2855 = vmatprep.subr.bf16.mxu0 %v1934
    %2856 = vmatpush1.bf16.msra.mxu0 %v1933
    %2857 = vmatprep.subr.bf16.mxu0 %v1942
    %2858 = vmatpush1.bf16.msra.mxu0 %v1941
    %2859 = vmatprep.subr.bf16.mxu0 %v1950
    %2860 = vmatpush1.bf16.msra.mxu0 %v1949
    %2861 = vmatprep.subr.bf16.mxu0 %v1958
    %2862 = vmatpush1.bf16.msra.mxu0 %v1957
    %2863 = vmatprep.subr.bf16.mxu0 %v1966
    %2864 = vmatpush1.bf16.msra.mxu0 %v1965
    %2865 = vmatprep.subr.bf16.mxu0 %v1974
    %2866 = vmatpush1.bf16.msra.mxu0 %v1973
    %2867 = vmatprep.subr.bf16.mxu0 %v1982
    %2868 = vmatpush1.bf16.msra.mxu0 %v1981
    %2869 = vmatprep.subr.bf16.mxu0 %v1990
    %2870 = vmatpush1.bf16.msra.mxu0 %v1989
    %2871 = vmatprep.subr.bf16.mxu0 %v1998
    %2872 = vmatpush1.bf16.msra.mxu0 %v1997
    %2873 = vmatprep.subr.bf16.mxu0 %v2006
    %2874 = vmatpush1.bf16.msra.mxu0 %v2005
    %2875 = vmatprep.mubr.bf16.mxu0 %v695
    %2876 = vmatmul.mubr.bf16.gmra.mrb[0].mxu0 %v694
    %v2877 = vpop.f32.mrb[0].mxu0
    %v2878 = vadd.f32 0.0, %v2877
    %v2879 = vpop.f32.mrb[0].mxu0
    %v2880 = vadd.f32 0.0, %v2879
    %v2881 = vpop.f32.mrb[0].mxu0
    %v2882 = vadd.f32 0.0, %v2881
    %v2883 = vpop.f32.mrb[0].mxu0
    %v2884 = vadd.f32 0.0, %v2883
    %2885 = vdwg.mxu0
    %2886 = vmatprep.subr.bf16.mxu0 %v2014
    %2887 = vmatpush1.bf16.msra.mxu0 %v2013
    %2888 = vmatprep.subr.bf16.mxu0 %v2022
    %2889 = vmatpush1.bf16.msra.mxu0 %v2021
    %2890 = vmatprep.subr.bf16.mxu0 %v2030
    %2891 = vmatpush1.bf16.msra.mxu0 %v2029
    %2892 = vmatprep.subr.bf16.mxu0 %v2038
    %2893 = vmatpush1.bf16.msra.mxu0 %v2037
    %2894 = vmatprep.subr.bf16.mxu0 %v2046
    %2895 = vmatpush1.bf16.msra.mxu0 %v2045
    %2896 = vmatprep.subr.bf16.mxu0 %v2054
    %2897 = vmatpush1.bf16.msra.mxu0 %v2053
    %2898 = vmatprep.subr.bf16.mxu0 %v2062
    %2899 = vmatpush1.bf16.msra.mxu0 %v2061
    %2900 = vmatprep.subr.bf16.mxu0 %v2070
    %2901 = vmatpush1.bf16.msra.mxu0 %v2069
    %2902 = vmatprep.subr.bf16.mxu0 %v2078
    %2903 = vmatpush1.bf16.msra.mxu0 %v2077
    %2904 = vmatprep.subr.bf16.mxu0 %v2086
    %2905 = vmatpush1.bf16.msra.mxu0 %v2085
    %2906 = vmatprep.subr.bf16.mxu0 %v2094
    %2907 = vmatpush1.bf16.msra.mxu0 %v2093
    %2908 = vmatprep.subr.bf16.mxu0 %v2102
    %2909 = vmatpush1.bf16.msra.mxu0 %v2101
    %2910 = vmatprep.subr.bf16.mxu0 %v2110
    %2911 = vmatpush1.bf16.msra.mxu0 %v2109
    %2912 = vmatprep.subr.bf16.mxu0 %v2118
    %2913 = vmatpush1.bf16.msra.mxu0 %v2117
    %2914 = vmatprep.subr.bf16.mxu0 %v2126
    %2915 = vmatpush1.bf16.msra.mxu0 %v2125
    %2916 = vmatprep.subr.bf16.mxu0 %v2134
    %2917 = vmatpush1.bf16.msra.mxu0 %v2133
    %2918 = vmatprep.mubr.bf16.mxu0 %v697
    %2919 = vmatmul.mubr.bf16.gmra.mrb[0].mxu0 %v696
    %v2920 = vpop.f32.mrb[0].mxu0
    %v2921 = vadd.f32 %v2878, %v2920
    %v2922 = vpop.f32.mrb[0].mxu0
    %v2923 = vadd.f32 %v2880, %v2922
    %v2924 = vpop.f32.mrb[0].mxu0
    %v2925 = vadd.f32 %v2882, %v2924
    %v2926 = vpop.f32.mrb[0].mxu0
    %v2927 = vadd.f32 %v2884, %v2926
    %2928 = vdwg.mxu0
    %2929 = vmatprep.subr.bf16.mxu0 %v2142
    %2930 = vmatpush1.bf16.msra.mxu0 %v2141
    %2931 = vmatprep.subr.bf16.mxu0 %v2150
    %2932 = vmatpush1.bf16.msra.mxu0 %v2149
    %2933 = vmatprep.subr.bf16.mxu0 %v2158
    %2934 = vmatpush1.bf16.msra.mxu0 %v2157
    %2935 = vmatprep.subr.bf16.mxu0 %v2166
    %2936 = vmatpush1.bf16.msra.mxu0 %v2165
    %2937 = vmatprep.subr.bf16.mxu0 %v2174
    %2938 = vmatpush1.bf16.msra.mxu0 %v2173
    %2939 = vmatprep.subr.bf16.mxu0 %v2182
    %2940 = vmatpush1.bf16.msra.mxu0 %v2181
    %2941 = vmatprep.subr.bf16.mxu0 %v2190
    %2942 = vmatpush1.bf16.msra.mxu0 %v2189
    %2943 = vmatprep.subr.bf16.mxu0 %v2198
    %2944 = vmatpush1.bf16.msra.mxu0 %v2197
    %2945 = vmatprep.subr.bf16.mxu0 %v2206
    %2946 = vmatpush1.bf16.msra.mxu0 %v2205
    %2947 = vmatprep.subr.bf16.mxu0 %v2214
    %2948 = vmatpush1.bf16.msra.mxu0 %v2213
    %2949 = vmatprep.subr.bf16.mxu0 %v2222
    %2950 = vmatpush1.bf16.msra.mxu0 %v2221
    %2951 = vmatprep.subr.bf16.mxu0 %v2230
    %2952 = vmatpush1.bf16.msra.mxu0 %v2229
    %2953 = vmatprep.subr.bf16.mxu0 %v2238
    %2954 = vmatpush1.bf16.msra.mxu0 %v2237
    %2955 = vmatprep.subr.bf16.mxu0 %v2246
    %2956 = vmatpush1.bf16.msra.mxu0 %v2245
    %2957 = vmatprep.subr.bf16.mxu0 %v2254
    %2958 = vmatpush1.bf16.msra.mxu0 %v2253
    %2959 = vmatprep.subr.bf16.mxu0 %v2262
    %2960 = vmatpush1.bf16.msra.mxu0 %v2261
    %2961 = vmatprep.mubr.bf16.mxu0 %v699
    %2962 = vmatmul.mubr.bf16.gmra.mrb[0].mxu0 %v698
    %v2963 = vpop.f32.mrb[0].mxu0
    %v2964 = vadd.f32 %v2921, %v2963
    %v2965 = vpop.f32.mrb[0].mxu0
    %v2966 = vadd.f32 %v2923, %v2965
    %v2967 = vpop.f32.mrb[0].mxu0
    %v2968 = vadd.f32 %v2925, %v2967
    %v2969 = vpop.f32.mrb[0].mxu0
    %v2970 = vadd.f32 %v2927, %v2969
    %2971 = vdwg.mxu0
    %2972 = vmatprep.subr.bf16.mxu0 %v2270
    %2973 = vmatpush1.bf16.msra.mxu0 %v2269
    %2974 = vmatprep.subr.bf16.mxu0 0
    %2975 = vmatpush1.bf16.msra.mxu0 0
    %2976 = vmatprep.subr.bf16.mxu0 0
    %2977 = vmatpush1.bf16.msra.mxu0 0
    %2978 = vmatprep.subr.bf16.mxu0 0
    %2979 = vmatpush1.bf16.msra.mxu0 0
    %2980 = vmatprep.subr.bf16.mxu0 0
    %2981 = vmatpush1.bf16.msra.mxu0 0
    %2982 = vmatprep.subr.bf16.mxu0 0
    %2983 = vmatpush1.bf16.msra.mxu0 0
    %2984 = vmatprep.subr.bf16.mxu0 0
    %2985 = vmatpush1.bf16.msra.mxu0 0
    %2986 = vmatprep.subr.bf16.mxu0 0
    %2987 = vmatpush1.bf16.msra.mxu0 0
    %2988 = vmatprep.subr.bf16.mxu0 0
    %2989 = vmatpush1.bf16.msra.mxu0 0
    %2990 = vmatprep.subr.bf16.mxu0 0
    %2991 = vmatpush1.bf16.msra.mxu0 0
    %2992 = vmatprep.subr.bf16.mxu0 0
    %2993 = vmatpush1.bf16.msra.mxu0 0
    %2994 = vmatprep.subr.bf16.mxu0 0
    %2995 = vmatpush1.bf16.msra.mxu0 0
    %2996 = vmatprep.subr.bf16.mxu0 0
    %2997 = vmatpush1.bf16.msra.mxu0 0
    %2998 = vmatprep.subr.bf16.mxu0 0
    %2999 = vmatpush1.bf16.msra.mxu0 0
    %3000 = vmatprep.subr.bf16.mxu0 0
    %3001 = vmatpush1.bf16.msra.mxu0 0
    %3002 = vmatprep.subr.bf16.mxu0 0
    %3003 = vmatpush1.bf16.msra.mxu0 0
    %3004 = vmatprep.mubr.bf16.mxu0 0
    %3005 = vmatmul.mubr.bf16.gmra.mrb[0].mxu0 %v2669
    %v3006 = vpop.f32.mrb[0].mxu0
    %v3007 = vadd.f32 %v2964, %v3006
    %v3008 = vpop.f32.mrb[0].mxu0
    %v3009 = vadd.f32 %v2966, %v3008
    %v3010 = vpop.f32.mrb[0].mxu0
    %v3011 = vadd.f32 %v2968, %v3010
    %v3012 = vpop.f32.mrb[0].mxu0
    %v3013 = vadd.f32 %v2970, %v3012
    %3014 = vdwg.mxu0
    %3015 = vmatprep.subr.bf16.mxu0 %v1888
    %3016 = vmatpush1.bf16.msra.mxu0 %v1887
    %3017 = vmatprep.subr.bf16.mxu0 %v1896
    %3018 = vmatpush1.bf16.msra.mxu0 %v1895
    %3019 = vmatprep.subr.bf16.mxu0 %v1904
    %3020 = vmatpush1.bf16.msra.mxu0 %v1903
    %3021 = vmatprep.subr.bf16.mxu0 %v1912
    %3022 = vmatpush1.bf16.msra.mxu0 %v1911
    %3023 = vmatprep.subr.bf16.mxu0 %v1920
    %3024 = vmatpush1.bf16.msra.mxu0 %v1919
    %3025 = vmatprep.subr.bf16.mxu0 %v1928
    %3026 = vmatpush1.bf16.msra.mxu0 %v1927
    %3027 = vmatprep.subr.bf16.mxu0 %v1936
    %3028 = vmatpush1.bf16.msra.mxu0 %v1935
    %3029 = vmatprep.subr.bf16.mxu0 %v1944
    %3030 = vmatpush1.bf16.msra.mxu0 %v1943
    %3031 = vmatprep.subr.bf16.mxu0 %v1952
    %3032 = vmatpush1.bf16.msra.mxu0 %v1951
    %3033 = vmatprep.subr.bf16.mxu0 %v1960
    %3034 = vmatpush1.bf16.msra.mxu0 %v1959
    %3035 = vmatprep.subr.bf16.mxu0 %v1968
    %3036 = vmatpush1.bf16.msra.mxu0 %v1967
    %3037 = vmatprep.subr.bf16.mxu0 %v1976
    %3038 = vmatpush1.bf16.msra.mxu0 %v1975
    %3039 = vmatprep.subr.bf16.mxu0 %v1984
    %3040 = vmatpush1.bf16.msra.mxu0 %v1983
    %3041 = vmatprep.subr.bf16.mxu0 %v1992
    %3042 = vmatpush1.bf16.msra.mxu0 %v1991
    %3043 = vmatprep.subr.bf16.mxu0 %v2000
    %3044 = vmatpush1.bf16.msra.mxu0 %v1999
    %3045 = vmatprep.subr.bf16.mxu0 %v2008
    %3046 = vmatpush1.bf16.msra.mxu0 %v2007
    %3047 = vmatprep.mubr.bf16.mxu0 %v695
    %3048 = vmatmul.mubr.bf16.gmra.mrb[0].mxu0 %v694
    %v3049 = vpop.f32.mrb[0].mxu0
    %v3050 = vadd.f32 0.0, %v3049
    %v3051 = vpop.f32.mrb[0].mxu0
    %v3052 = vadd.f32 0.0, %v3051
    %v3053 = vpop.f32.mrb[0].mxu0
    %v3054 = vadd.f32 0.0, %v3053
    %v3055 = vpop.f32.mrb[0].mxu0
    %v3056 = vadd.f32 0.0, %v3055
    %3057 = vdwg.mxu0
    %3058 = vmatprep.subr.bf16.mxu0 %v2016
    %3059 = vmatpush1.bf16.msra.mxu0 %v2015
    %3060 = vmatprep.subr.bf16.mxu0 %v2024
    %3061 = vmatpush1.bf16.msra.mxu0 %v2023
    %3062 = vmatprep.subr.bf16.mxu0 %v2032
    %3063 = vmatpush1.bf16.msra.mxu0 %v2031
    %3064 = vmatprep.subr.bf16.mxu0 %v2040
    %3065 = vmatpush1.bf16.msra.mxu0 %v2039
    %3066 = vmatprep.subr.bf16.mxu0 %v2048
    %3067 = vmatpush1.bf16.msra.mxu0 %v2047
    %3068 = vmatprep.subr.bf16.mxu0 %v2056
    %3069 = vmatpush1.bf16.msra.mxu0 %v2055
    %3070 = vmatprep.subr.bf16.mxu0 %v2064
    %3071 = vmatpush1.bf16.msra.mxu0 %v2063
    %3072 = vmatprep.subr.bf16.mxu0 %v2072
    %3073 = vmatpush1.bf16.msra.mxu0 %v2071
    %3074 = vmatprep.subr.bf16.mxu0 %v2080
    %3075 = vmatpush1.bf16.msra.mxu0 %v2079
    %3076 = vmatprep.subr.bf16.mxu0 %v2088
    %3077 = vmatpush1.bf16.msra.mxu0 %v2087
    %3078 = vmatprep.subr.bf16.mxu0 %v2096
    %3079 = vmatpush1.bf16.msra.mxu0 %v2095
    %3080 = vmatprep.subr.bf16.mxu0 %v2104
    %3081 = vmatpush1.bf16.msra.mxu0 %v2103
    %3082 = vmatprep.subr.bf16.mxu0 %v2112
    %3083 = vmatpush1.bf16.msra.mxu0 %v2111
    %3084 = vmatprep.subr.bf16.mxu0 %v2120
    %3085 = vmatpush1.bf16.msra.mxu0 %v2119
    %3086 = vmatprep.subr.bf16.mxu0 %v2128
    %3087 = vmatpush1.bf16.msra.mxu0 %v2127
    %3088 = vmatprep.subr.bf16.mxu0 %v2136
    %3089 = vmatpush1.bf16.msra.mxu0 %v2135
    %3090 = vmatprep.mubr.bf16.mxu0 %v697
    %3091 = vmatmul.mubr.bf16.gmra.mrb[0].mxu0 %v696
    %v3092 = vpop.f32.mrb[0].mxu0
    %v3093 = vadd.f32 %v3050, %v3092
    %v3094 = vpop.f32.mrb[0].mxu0
    %v3095 = vadd.f32 %v3052, %v3094
    %v3096 = vpop.f32.mrb[0].mxu0
    %v3097 = vadd.f32 %v3054, %v3096
    %v3098 = vpop.f32.mrb[0].mxu0
    %v3099 = vadd.f32 %v3056, %v3098
    %3100 = vdwg.mxu0
    %3101 = vmatprep.subr.bf16.mxu0 %v2144
    %3102 = vmatpush1.bf16.msra.mxu0 %v2143
    %3103 = vmatprep.subr.bf16.mxu0 %v2152
    %3104 = vmatpush1.bf16.msra.mxu0 %v2151
    %3105 = vmatprep.subr.bf16.mxu0 %v2160
    %3106 = vmatpush1.bf16.msra.mxu0 %v2159
    %3107 = vmatprep.subr.bf16.mxu0 %v2168
    %3108 = vmatpush1.bf16.msra.mxu0 %v2167
    %3109 = vmatprep.subr.bf16.mxu0 %v2176
    %3110 = vmatpush1.bf16.msra.mxu0 %v2175
    %3111 = vmatprep.subr.bf16.mxu0 %v2184
    %3112 = vmatpush1.bf16.msra.mxu0 %v2183
    %3113 = vmatprep.subr.bf16.mxu0 %v2192
    %3114 = vmatpush1.bf16.msra.mxu0 %v2191
    %3115 = vmatprep.subr.bf16.mxu0 %v2200
    %3116 = vmatpush1.bf16.msra.mxu0 %v2199
    %3117 = vmatprep.subr.bf16.mxu0 %v2208
    %3118 = vmatpush1.bf16.msra.mxu0 %v2207
    %3119 = vmatprep.subr.bf16.mxu0 %v2216
    %3120 = vmatpush1.bf16.msra.mxu0 %v2215
    %3121 = vmatprep.subr.bf16.mxu0 %v2224
    %3122 = vmatpush1.bf16.msra.mxu0 %v2223
    %3123 = vmatprep.subr.bf16.mxu0 %v2232
    %3124 = vmatpush1.bf16.msra.mxu0 %v2231
    %3125 = vmatprep.subr.bf16.mxu0 %v2240
    %3126 = vmatpush1.bf16.msra.mxu0 %v2239
    %3127 = vmatprep.subr.bf16.mxu0 %v2248
    %3128 = vmatpush1.bf16.msra.mxu0 %v2247
    %3129 = vmatprep.subr.bf16.mxu0 %v2256
    %3130 = vmatpush1.bf16.msra.mxu0 %v2255
    %3131 = vmatprep.subr.bf16.mxu0 %v2264
    %3132 = vmatpush1.bf16.msra.mxu0 %v2263
    %3133 = vmatprep.mubr.bf16.mxu0 %v699
    %3134 = vmatmul.mubr.bf16.gmra.mrb[0].mxu0 %v698
    %v3135 = vpop.f32.mrb[0].mxu0
    %v3136 = vadd.f32 %v3093, %v3135
    %v3137 = vpop.f32.mrb[0].mxu0
    %v3138 = vadd.f32 %v3095, %v3137
    %v3139 = vpop.f32.mrb[0].mxu0
    %v3140 = vadd.f32 %v3097, %v3139
    %v3141 = vpop.f32.mrb[0].mxu0
    %v3142 = vadd.f32 %v3099, %v3141
    %3143 = vdwg.mxu0
    %3144 = vmatprep.subr.bf16.mxu0 %v2272
    %3145 = vmatpush1.bf16.msra.mxu0 %v2271
    %3146 = vmatprep.subr.bf16.mxu0 0
    %3147 = vmatpush1.bf16.msra.mxu0 0
    %3148 = vmatprep.subr.bf16.mxu0 0
    %3149 = vmatpush1.bf16.msra.mxu0 0
    %3150 = vmatprep.subr.bf16.mxu0 0
    %3151 = vmatpush1.bf16.msra.mxu0 0
    %3152 = vmatprep.subr.bf16.mxu0 0
    %3153 = vmatpush1.bf16.msra.mxu0 0
    %3154 = vmatprep.subr.bf16.mxu0 0
    %3155 = vmatpush1.bf16.msra.mxu0 0
    %3156 = vmatprep.subr.bf16.mxu0 0
    %3157 = vmatpush1.bf16.msra.mxu0 0
    %3158 = vmatprep.subr.bf16.mxu0 0
    %3159 = vmatpush1.bf16.msra.mxu0 0
    %3160 = vmatprep.subr.bf16.mxu0 0
    %3161 = vmatpush1.bf16.msra.mxu0 0
    %3162 = vmatprep.subr.bf16.mxu0 0
    %3163 = vmatpush1.bf16.msra.mxu0 0
    %3164 = vmatprep.subr.bf16.mxu0 0
    %3165 = vmatpush1.bf16.msra.mxu0 0
    %3166 = vmatprep.subr.bf16.mxu0 0
    %3167 = vmatpush1.bf16.msra.mxu0 0
    %3168 = vmatprep.subr.bf16.mxu0 0
    %3169 = vmatpush1.bf16.msra.mxu0 0
    %3170 = vmatprep.subr.bf16.mxu0 0
    %3171 = vmatpush1.bf16.msra.mxu0 0
    %3172 = vmatprep.subr.bf16.mxu0 0
    %3173 = vmatpush1.bf16.msra.mxu0 0
    %3174 = vmatprep.subr.bf16.mxu0 0
    %3175 = vmatpush1.bf16.msra.mxu0 0
    %3176 = vmatprep.mubr.bf16.mxu0 0
    %3177 = vmatmul.mubr.bf16.gmra.mrb[0].mxu0 %v2669
    %v3178 = vpop.f32.mrb[0].mxu0
    %v3179 = vadd.f32 %v3136, %v3178
    %v3180 = vpop.f32.mrb[0].mxu0
    %v3181 = vadd.f32 %v3138, %v3180
    %v3182 = vpop.f32.mrb[0].mxu0
    %v3183 = vadd.f32 %v3140, %v3182
    %v3184 = vpop.f32.mrb[0].mxu0
    %v3185 = vadd.f32 %v3142, %v3184
    %3186 = vdwg.mxu0
    %3187 = vmatprep.subr.bf16.mxu0 %v1890
    %3188 = vmatpush1.bf16.msra.mxu0 %v1889
    %3189 = vmatprep.subr.bf16.mxu0 %v1898
    %3190 = vmatpush1.bf16.msra.mxu0 %v1897
    %3191 = vmatprep.subr.bf16.mxu0 %v1906
    %3192 = vmatpush1.bf16.msra.mxu0 %v1905
    %3193 = vmatprep.subr.bf16.mxu0 %v1914
    %3194 = vmatpush1.bf16.msra.mxu0 %v1913
    %3195 = vmatprep.subr.bf16.mxu0 %v1922
    %3196 = vmatpush1.bf16.msra.mxu0 %v1921
    %3197 = vmatprep.subr.bf16.mxu0 %v1930
    %3198 = vmatpush1.bf16.msra.mxu0 %v1929
    %3199 = vmatprep.subr.bf16.mxu0 %v1938
    %3200 = vmatpush1.bf16.msra.mxu0 %v1937
    %3201 = vmatprep.subr.bf16.mxu0 %v1946
    %3202 = vmatpush1.bf16.msra.mxu0 %v1945
    %3203 = vmatprep.subr.bf16.mxu0 %v1954
    %3204 = vmatpush1.bf16.msra.mxu0 %v1953
    %3205 = vmatprep.subr.bf16.mxu0 %v1962
    %3206 = vmatpush1.bf16.msra.mxu0 %v1961
    %3207 = vmatprep.subr.bf16.mxu0 %v1970
    %3208 = vmatpush1.bf16.msra.mxu0 %v1969
    %3209 = vmatprep.subr.bf16.mxu0 %v1978
    %3210 = vmatpush1.bf16.msra.mxu0 %v1977
    %3211 = vmatprep.subr.bf16.mxu0 %v1986
    %3212 = vmatpush1.bf16.msra.mxu0 %v1985
    %3213 = vmatprep.subr.bf16.mxu0 %v1994
    %3214 = vmatpush1.bf16.msra.mxu0 %v1993
    %3215 = vmatprep.subr.bf16.mxu0 %v2002
    %3216 = vmatpush1.bf16.msra.mxu0 %v2001
    %3217 = vmatprep.subr.bf16.mxu0 %v2010
    %3218 = vmatpush1.bf16.msra.mxu0 %v2009
    %3219 = vmatprep.mubr.bf16.mxu0 %v695
    %3220 = vmatmul.mubr.bf16.gmra.mrb[0].mxu0 %v694
    %v3221 = vpop.f32.mrb[0].mxu0
    %v3222 = vadd.f32 0.0, %v3221
    %v3223 = vpop.f32.mrb[0].mxu0
    %v3224 = vadd.f32 0.0, %v3223
    %v3225 = vpop.f32.mrb[0].mxu0
    %v3226 = vadd.f32 0.0, %v3225
    %v3227 = vpop.f32.mrb[0].mxu0
    %v3228 = vadd.f32 0.0, %v3227
    %3229 = vdwg.mxu0
    %3230 = vmatprep.subr.bf16.mxu0 %v2018
    %3231 = vmatpush1.bf16.msra.mxu0 %v2017
    %3232 = vmatprep.subr.bf16.mxu0 %v2026
    %3233 = vmatpush1.bf16.msra.mxu0 %v2025
    %3234 = vmatprep.subr.bf16.mxu0 %v2034
    %3235 = vmatpush1.bf16.msra.mxu0 %v2033
    %3236 = vmatprep.subr.bf16.mxu0 %v2042
    %3237 = vmatpush1.bf16.msra.mxu0 %v2041
    %3238 = vmatprep.subr.bf16.mxu0 %v2050
    %3239 = vmatpush1.bf16.msra.mxu0 %v2049
    %3240 = vmatprep.subr.bf16.mxu0 %v2058
    %3241 = vmatpush1.bf16.msra.mxu0 %v2057
    %3242 = vmatprep.subr.bf16.mxu0 %v2066
    %3243 = vmatpush1.bf16.msra.mxu0 %v2065
    %3244 = vmatprep.subr.bf16.mxu0 %v2074
    %3245 = vmatpush1.bf16.msra.mxu0 %v2073
    %3246 = vmatprep.subr.bf16.mxu0 %v2082
    %3247 = vmatpush1.bf16.msra.mxu0 %v2081
    %3248 = vmatprep.subr.bf16.mxu0 %v2090
    %3249 = vmatpush1.bf16.msra.mxu0 %v2089
    %3250 = vmatprep.subr.bf16.mxu0 %v2098
    %3251 = vmatpush1.bf16.msra.mxu0 %v2097
    %3252 = vmatprep.subr.bf16.mxu0 %v2106
    %3253 = vmatpush1.bf16.msra.mxu0 %v2105
    %3254 = vmatprep.subr.bf16.mxu0 %v2114
    %3255 = vmatpush1.bf16.msra.mxu0 %v2113
    %3256 = vmatprep.subr.bf16.mxu0 %v2122
    %3257 = vmatpush1.bf16.msra.mxu0 %v2121
    %3258 = vmatprep.subr.bf16.mxu0 %v2130
    %3259 = vmatpush1.bf16.msra.mxu0 %v2129
    %3260 = vmatprep.subr.bf16.mxu0 %v2138
    %3261 = vmatpush1.bf16.msra.mxu0 %v2137
    %3262 = vmatprep.mubr.bf16.mxu0 %v697
    %3263 = vmatmul.mubr.bf16.gmra.mrb[0].mxu0 %v696
    %v3264 = vpop.f32.mrb[0].mxu0
    %v3265 = vadd.f32 %v3222, %v3264
    %v3266 = vpop.f32.mrb[0].mxu0
    %v3267 = vadd.f32 %v3224, %v3266
    %v3268 = vpop.f32.mrb[0].mxu0
    %v3269 = vadd.f32 %v3226, %v3268
    %v3270 = vpop.f32.mrb[0].mxu0
    %v3271 = vadd.f32 %v3228, %v3270
    %3272 = vdwg.mxu0
    %3273 = vmatprep.subr.bf16.mxu0 %v2146
    %3274 = vmatpush1.bf16.msra.mxu0 %v2145
    %3275 = vmatprep.subr.bf16.mxu0 %v2154
    %3276 = vmatpush1.bf16.msra.mxu0 %v2153
    %3277 = vmatprep.subr.bf16.mxu0 %v2162
    %3278 = vmatpush1.bf16.msra.mxu0 %v2161
    %3279 = vmatprep.subr.bf16.mxu0 %v2170
    %3280 = vmatpush1.bf16.msra.mxu0 %v2169
    %3281 = vmatprep.subr.bf16.mxu0 %v2178
    %3282 = vmatpush1.bf16.msra.mxu0 %v2177
    %3283 = vmatprep.subr.bf16.mxu0 %v2186
    %3284 = vmatpush1.bf16.msra.mxu0 %v2185
    %3285 = vmatprep.subr.bf16.mxu0 %v2194
    %3286 = vmatpush1.bf16.msra.mxu0 %v2193
    %3287 = vmatprep.subr.bf16.mxu0 %v2202
    %3288 = vmatpush1.bf16.msra.mxu0 %v2201
    %3289 = vmatprep.subr.bf16.mxu0 %v2210
    %3290 = vmatpush1.bf16.msra.mxu0 %v2209
    %3291 = vmatprep.subr.bf16.mxu0 %v2218
    %3292 = vmatpush1.bf16.msra.mxu0 %v2217
    %3293 = vmatprep.subr.bf16.mxu0 %v2226
    %3294 = vmatpush1.bf16.msra.mxu0 %v2225
    %3295 = vmatprep.subr.bf16.mxu0 %v2234
    %3296 = vmatpush1.bf16.msra.mxu0 %v2233
    %3297 = vmatprep.subr.bf16.mxu0 %v2242
    %3298 = vmatpush1.bf16.msra.mxu0 %v2241
    %3299 = vmatprep.subr.bf16.mxu0 %v2250
    %3300 = vmatpush1.bf16.msra.mxu0 %v2249
    %3301 = vmatprep.subr.bf16.mxu0 %v2258
    %3302 = vmatpush1.bf16.msra.mxu0 %v2257
    %3303 = vmatprep.subr.bf16.mxu0 %v2266
    %3304 = vmatpush1.bf16.msra.mxu0 %v2265
    %3305 = vmatprep.mubr.bf16.mxu0 %v699
    %3306 = vmatmul.mubr.bf16.gmra.mrb[0].mxu0 %v698
    %v3307 = vpop.f32.mrb[0].mxu0
    %v3308 = vadd.f32 %v3265, %v3307
    %v3309 = vpop.f32.mrb[0].mxu0
    %v3310 = vadd.f32 %v3267, %v3309
    %v3311 = vpop.f32.mrb[0].mxu0
    %v3312 = vadd.f32 %v3269, %v3311
    %v3313 = vpop.f32.mrb[0].mxu0
    %v3314 = vadd.f32 %v3271, %v3313
    %3315 = vdwg.mxu0
    %3316 = vmatprep.subr.bf16.mxu0 %v2274
    %3317 = vmatpush1.bf16.msra.mxu0 %v2273
    %3318 = vmatprep.subr.bf16.mxu0 0
    %3319 = vmatpush1.bf16.msra.mxu0 0
    %3320 = vmatprep.subr.bf16.mxu0 0
    %3321 = vmatpush1.bf16.msra.mxu0 0
    %3322 = vmatprep.subr.bf16.mxu0 0
    %3323 = vmatpush1.bf16.msra.mxu0 0
    %3324 = vmatprep.subr.bf16.mxu0 0
    %3325 = vmatpush1.bf16.msra.mxu0 0
    %3326 = vmatprep.subr.bf16.mxu0 0
    %3327 = vmatpush1.bf16.msra.mxu0 0
    %3328 = vmatprep.subr.bf16.mxu0 0
    %3329 = vmatpush1.bf16.msra.mxu0 0
    %3330 = vmatprep.subr.bf16.mxu0 0
    %3331 = vmatpush1.bf16.msra.mxu0 0
    %3332 = vmatprep.subr.bf16.mxu0 0
    %3333 = vmatpush1.bf16.msra.mxu0 0
    %3334 = vmatprep.subr.bf16.mxu0 0
    %3335 = vmatpush1.bf16.msra.mxu0 0
    %3336 = vmatprep.subr.bf16.mxu0 0
    %3337 = vmatpush1.bf16.msra.mxu0 0
    %3338 = vmatprep.subr.bf16.mxu0 0
    %3339 = vmatpush1.bf16.msra.mxu0 0
    %3340 = vmatprep.subr.bf16.mxu0 0
    %3341 = vmatpush1.bf16.msra.mxu0 0
    %3342 = vmatprep.subr.bf16.mxu0 0
    %3343 = vmatpush1.bf16.msra.mxu0 0
    %3344 = vmatprep.subr.bf16.mxu0 0
    %3345 = vmatpush1.bf16.msra.mxu0 0
    %3346 = vmatprep.subr.bf16.mxu0 0
    %3347 = vmatpush1.bf16.msra.mxu0 0
    %3348 = vmatprep.mubr.bf16.mxu0 0
    %3349 = vmatmul.mubr.bf16.gmra.mrb[0].mxu0 %v2669
    %v3350 = vpop.f32.mrb[0].mxu0
    %v3351 = vadd.f32 %v3308, %v3350
    %v3352 = vpop.f32.mrb[0].mxu0
    %v3353 = vadd.f32 %v3310, %v3352
    %v3354 = vpop.f32.mrb[0].mxu0
    %v3355 = vadd.f32 %v3312, %v3354
    %v3356 = vpop.f32.mrb[0].mxu0
    %v3357 = vadd.f32 %v3314, %v3356
    %3358 = vdwg.mxu0
    %v3359 = vld [vmem:[%s3] sm:$0xff]
    %v3361 = vlaneseq
    %v3362 = vshrl.u32 %v3361, 7
    %v3363 = vsub.s32 0, %v3362
    %v3364 = vrot.slane %v3359, %v3363
    %v3365 = vlaneseq
    %v3366 = vshrl.u32 %v3365, 7
    %v3367 = vsub.s32 1, %v3366
    %v3368 = vrot.slane %v3359, %v3367
    %v3369 = vlaneseq
    %v3370 = vshrl.u32 %v3369, 7
    %v3371 = vsub.s32 2, %v3370
    %v3372 = vrot.slane %v3359, %v3371
    %v3373 = vlaneseq
    %v3374 = vshrl.u32 %v3373, 7
    %v3375 = vsub.s32 3, %v3374
    %v3376 = vrot.slane %v3359, %v3375
    %v3377 = vlaneseq
    %v3378 = vshrl.u32 %v3377, 7
    %v3379 = vsub.s32 4, %v3378
    %v3380 = vrot.slane %v3359, %v3379
    %v3381 = vlaneseq
    %v3382 = vshrl.u32 %v3381, 7
    %v3383 = vsub.s32 5, %v3382
    %v3384 = vrot.slane %v3359, %v3383
    %v3385 = vlaneseq
    %v3386 = vshrl.u32 %v3385, 7
    %v3387 = vsub.s32 6, %v3386
    %v3388 = vrot.slane %v3359, %v3387
    %v3389 = vlaneseq
    %v3390 = vshrl.u32 %v3389, 7
    %v3391 = vsub.s32 7, %v3390
    %v3392 = vrot.slane %v3359, %v3391
    %v3401 = vmul.f32 %v2835, %v3364
    %v3402 = vmul.f32 %v2837, %v3368
    %v3403 = vmul.f32 %v3007, %v3372
    %v3404 = vmul.f32 %v3009, %v3376
    %v3405 = vmul.f32 %v3179, %v3380
    %v3406 = vmul.f32 %v3181, %v3384
    %v3407 = vmul.f32 %v3351, %v3388
    %v3408 = vmul.f32 %v3353, %v3392
    %v3409 = vmul.f32 %v2839, %v3364
    %v3410 = vmul.f32 %v2841, %v3368
    %v3411 = vmul.f32 %v3011, %v3372
    %v3412 = vmul.f32 %v3013, %v3376
    %v3413 = vmul.f32 %v3183, %v3380
    %v3414 = vmul.f32 %v3185, %v3384
    %v3415 = vmul.f32 %v3355, %v3388
    %v3416 = vmul.f32 %v3357, %v3392
    %v3417 = vld [vmem:[%s4] sm:$0xff]
    %v3419 = vlaneseq
    %v3420 = vshrl.u32 %v3419, 7
    %v3421 = vsub.s32 0, %v3420
    %v3422 = vrot.slane %v3417, %v3421
    %v3423 = vlaneseq
    %v3424 = vshrl.u32 %v3423, 7
    %v3425 = vsub.s32 1, %v3424
    %v3426 = vrot.slane %v3417, %v3425
    %v3427 = vlaneseq
    %v3428 = vshrl.u32 %v3427, 7
    %v3429 = vsub.s32 2, %v3428
    %v3430 = vrot.slane %v3417, %v3429
    %v3431 = vlaneseq
    %v3432 = vshrl.u32 %v3431, 7
    %v3433 = vsub.s32 3, %v3432
    %v3434 = vrot.slane %v3417, %v3433
    %v3435 = vlaneseq
    %v3436 = vshrl.u32 %v3435, 7
    %v3437 = vsub.s32 4, %v3436
    %v3438 = vrot.slane %v3417, %v3437
    %v3439 = vlaneseq
    %v3440 = vshrl.u32 %v3439, 7
    %v3441 = vsub.s32 5, %v3440
    %v3442 = vrot.slane %v3417, %v3441
    %v3443 = vlaneseq
    %v3444 = vshrl.u32 %v3443, 7
    %v3445 = vsub.s32 6, %v3444
    %v3446 = vrot.slane %v3417, %v3445
    %v3447 = vlaneseq
    %v3448 = vshrl.u32 %v3447, 7
    %v3449 = vsub.s32 7, %v3448
    %v3450 = vrot.slane %v3417, %v3449
    %v3459 = vadd.f32 %v3401, %v3422
    %v3460 = vadd.f32 %v3402, %v3426
    %v3461 = vadd.f32 %v3403, %v3430
    %v3462 = vadd.f32 %v3404, %v3434
    %v3463 = vadd.f32 %v3405, %v3438
    %v3464 = vadd.f32 %v3406, %v3442
    %v3465 = vadd.f32 %v3407, %v3446
    %v3466 = vadd.f32 %v3408, %v3450
    %v3467 = vadd.f32 %v3409, %v3422
    %v3468 = vadd.f32 %v3410, %v3426
    %v3469 = vadd.f32 %v3411, %v3430
    %v3470 = vadd.f32 %v3412, %v3434
    %v3471 = vadd.f32 %v3413, %v3438
    %v3472 = vadd.f32 %v3414, %v3442
    %v3473 = vadd.f32 %v3415, %v3446
    %v3474 = vadd.f32 %v3416, %v3450
    %v3475 = vmax.f32 %v3459, 0.0
    %v3476 = vmax.f32 %v3460, 0.0
    %v3477 = vmax.f32 %v3461, 0.0
    %v3478 = vmax.f32 %v3462, 0.0
    %v3479 = vmax.f32 %v3463, 0.0
    %v3480 = vmax.f32 %v3464, 0.0
    %v3481 = vmax.f32 %v3465, 0.0
    %v3482 = vmax.f32 %v3466, 0.0
    %v3483 = vmax.f32 %v3467, 0.0
    %v3484 = vmax.f32 %v3468, 0.0
    %v3485 = vmax.f32 %v3469, 0.0
    %v3486 = vmax.f32 %v3470, 0.0
    %v3487 = vmax.f32 %v3471, 0.0
    %v3488 = vmax.f32 %v3472, 0.0
    %v3489 = vmax.f32 %v3473, 0.0
    %v3490 = vmax.f32 %v3474, 0.0
    %v3491 = vlaneseq
    %v3492 = vshrl.u32 %v3491, 7
    %v3493 = vadd.s32 %v3492, 8
    %v3494 = vstv %s74
    %v3495 = vadd.s32 %v3492, %v3494
    %v3496 = vadd.s32 %v3493, %v3494
    %v3497 = vlaneseq
    %v3498 = vand.u32 %v3497, 127
    %v3499 = vadd.s32 %v3498, 128
    %v3500 = vadd.s32 %v3498, 256
    %v3501 = vadd.s32 %v3498, 384
    %v3502 = vadd.s32 %v3498, 512
    %v3503 = vadd.s32 %v3498, 640
    %v3504 = vadd.s32 %v3498, 768
    %v3505 = vadd.s32 %v3498, 896
    %v3506 = vmul.u32 %v3495, 1792
    %v3507 = vmul.u32 %v3496, 1792
    %v3508 = vadd.s32 %v3506, %v3498
    %v3509 = vadd.s32 %v3506, %v3499
    %v3510 = vadd.s32 %v3506, %v3500
    %v3511 = vadd.s32 %v3506, %v3501
    %v3512 = vadd.s32 %v3506, %v3502
    %v3513 = vadd.s32 %v3506, %v3503
    %v3514 = vadd.s32 %v3506, %v3504
    %v3515 = vadd.s32 %v3506, %v3505
    %v3516 = vadd.s32 %v3507, %v3498
    %v3517 = vadd.s32 %v3507, %v3499
    %v3518 = vadd.s32 %v3507, %v3500
    %v3519 = vadd.s32 %v3507, %v3501
    %v3520 = vadd.s32 %v3507, %v3502
    %v3521 = vadd.s32 %v3507, %v3503
    %v3522 = vadd.s32 %v3507, %v3504
    %v3523 = vadd.s32 %v3507, %v3505
    %s3524 = smul.u32 %s75, 2654435769
    %v3525 = vstv %s3524
    %v3526 = vxor.u32 %v3508, %v3525
    %v3527 = vxor.u32 %v3509, %v3525
    %v3528 = vxor.u32 %v3510, %v3525
    %v3529 = vxor.u32 %v3511, %v3525
    %v3530 = vxor.u32 %v3512, %v3525
    %v3531 = vxor.u32 %v3513, %v3525
    %v3532 = vxor.u32 %v3514, %v3525
    %v3533 = vxor.u32 %v3515, %v3525
    %v3534 = vxor.u32 %v3516, %v3525
    %v3535 = vxor.u32 %v3517, %v3525
    %v3536 = vxor.u32 %v3518, %v3525
    %v3537 = vxor.u32 %v3519, %v3525
    %v3538 = vxor.u32 %v3520, %v3525
    %v3539 = vxor.u32 %v3521, %v3525
    %v3540 = vxor.u32 %v3522, %v3525
    %v3541 = vxor.u32 %v3523, %v3525
    %v3542 = vshrl.u32 %v3526, 16
    %v3543 = vshrl.u32 %v3527, 16
    %v3544 = vshrl.u32 %v3528, 16
    %v3545 = vshrl.u32 %v3529, 16
    %v3546 = vshrl.u32 %v3530, 16
    %v3547 = vshrl.u32 %v3531, 16
    %v3548 = vshrl.u32 %v3532, 16
    %v3549 = vshrl.u32 %v3533, 16
    %v3550 = vshrl.u32 %v3534, 16
    %v3551 = vshrl.u32 %v3535, 16
    %v3552 = vshrl.u32 %v3536, 16
    %v3553 = vshrl.u32 %v3537, 16
    %v3554 = vshrl.u32 %v3538, 16
    %v3555 = vshrl.u32 %v3539, 16
    %v3556 = vshrl.u32 %v3540, 16
    %v3557 = vshrl.u32 %v3541, 16
    %v3558 = vxor.u32 %v3526, %v3542
    %v3559 = vxor.u32 %v3527, %v3543
    %v3560 = vxor.u32 %v3528, %v3544
    %v3561 = vxor.u32 %v3529, %v3545
    %v3562 = vxor.u32 %v3530, %v3546
    %v3563 = vxor.u32 %v3531, %v3547
    %v3564 = vxor.u32 %v3532, %v3548
    %v3565 = vxor.u32 %v3533, %v3549
    %v3566 = vxor.u32 %v3534, %v3550
    %v3567 = vxor.u32 %v3535, %v3551
    %v3568 = vxor.u32 %v3536, %v3552
    %v3569 = vxor.u32 %v3537, %v3553
    %v3570 = vxor.u32 %v3538, %v3554
    %v3571 = vxor.u32 %v3539, %v3555
    %v3572 = vxor.u32 %v3540, %v3556
    %v3573 = vxor.u32 %v3541, %v3557
    %v3574 = vmul.u32 %v3558, 2146121005
    %v3575 = vmul.u32 %v3559, 2146121005
    %v3576 = vmul.u32 %v3560, 2146121005
    %v3577 = vmul.u32 %v3561, 2146121005
    %v3578 = vmul.u32 %v3562, 2146121005
    %v3579 = vmul.u32 %v3563, 2146121005
    %v3580 = vmul.u32 %v3564, 2146121005
    %v3581 = vmul.u32 %v3565, 2146121005
    %v3582 = vmul.u32 %v3566, 2146121005
    %v3583 = vmul.u32 %v3567, 2146121005
    %v3584 = vmul.u32 %v3568, 2146121005
    %v3585 = vmul.u32 %v3569, 2146121005
    %v3586 = vmul.u32 %v3570, 2146121005
    %v3587 = vmul.u32 %v3571, 2146121005
    %v3588 = vmul.u32 %v3572, 2146121005
    %v3589 = vmul.u32 %v3573, 2146121005
    %v3590 = vshrl.u32 %v3574, 15
    %v3591 = vshrl.u32 %v3575, 15
    %v3592 = vshrl.u32 %v3576, 15
    %v3593 = vshrl.u32 %v3577, 15
    %v3594 = vshrl.u32 %v3578, 15
    %v3595 = vshrl.u32 %v3579, 15
    %v3596 = vshrl.u32 %v3580, 15
    %v3597 = vshrl.u32 %v3581, 15
    %v3598 = vshrl.u32 %v3582, 15
    %v3599 = vshrl.u32 %v3583, 15
    %v3600 = vshrl.u32 %v3584, 15
    %v3601 = vshrl.u32 %v3585, 15
    %v3602 = vshrl.u32 %v3586, 15
    %v3603 = vshrl.u32 %v3587, 15
    %v3604 = vshrl.u32 %v3588, 15
    %v3605 = vshrl.u32 %v3589, 15
    %v3606 = vxor.u32 %v3574, %v3590
    %v3607 = vxor.u32 %v3575, %v3591
    %v3608 = vxor.u32 %v3576, %v3592
    %v3609 = vxor.u32 %v3577, %v3593
    %v3610 = vxor.u32 %v3578, %v3594
    %v3611 = vxor.u32 %v3579, %v3595
    %v3612 = vxor.u32 %v3580, %v3596
    %v3613 = vxor.u32 %v3581, %v3597
    %v3614 = vxor.u32 %v3582, %v3598
    %v3615 = vxor.u32 %v3583, %v3599
    %v3616 = vxor.u32 %v3584, %v3600
    %v3617 = vxor.u32 %v3585, %v3601
    %v3618 = vxor.u32 %v3586, %v3602
    %v3619 = vxor.u32 %v3587, %v3603
    %v3620 = vxor.u32 %v3588, %v3604
    %v3621 = vxor.u32 %v3589, %v3605
    %v3622 = vmul.u32 %v3606, 2221713035
    %v3623 = vmul.u32 %v3607, 2221713035
    %v3624 = vmul.u32 %v3608, 2221713035
    %v3625 = vmul.u32 %v3609, 2221713035
    %v3626 = vmul.u32 %v3610, 2221713035
    %v3627 = vmul.u32 %v3611, 2221713035
    %v3628 = vmul.u32 %v3612, 2221713035
    %v3629 = vmul.u32 %v3613, 2221713035
    %v3630 = vmul.u32 %v3614, 2221713035
    %v3631 = vmul.u32 %v3615, 2221713035
    %v3632 = vmul.u32 %v3616, 2221713035
    %v3633 = vmul.u32 %v3617, 2221713035
    %v3634 = vmul.u32 %v3618, 2221713035
    %v3635 = vmul.u32 %v3619, 2221713035
    %v3636 = vmul.u32 %v3620, 2221713035
    %v3637 = vmul.u32 %v3621, 2221713035
    %v3638 = vshrl.u32 %v3622, 16
    %v3639 = vshrl.u32 %v3623, 16
    %v3640 = vshrl.u32 %v3624, 16
    %v3641 = vshrl.u32 %v3625, 16
    %v3642 = vshrl.u32 %v3626, 16
    %v3643 = vshrl.u32 %v3627, 16
    %v3644 = vshrl.u32 %v3628, 16
    %v3645 = vshrl.u32 %v3629, 16
    %v3646 = vshrl.u32 %v3630, 16
    %v3647 = vshrl.u32 %v3631, 16
    %v3648 = vshrl.u32 %v3632, 16
    %v3649 = vshrl.u32 %v3633, 16
    %v3650 = vshrl.u32 %v3634, 16
    %v3651 = vshrl.u32 %v3635, 16
    %v3652 = vshrl.u32 %v3636, 16
    %v3653 = vshrl.u32 %v3637, 16
    %v3654 = vxor.u32 %v3622, %v3638
    %v3655 = vxor.u32 %v3623, %v3639
    %v3656 = vxor.u32 %v3624, %v3640
    %v3657 = vxor.u32 %v3625, %v3641
    %v3658 = vxor.u32 %v3626, %v3642
    %v3659 = vxor.u32 %v3627, %v3643
    %v3660 = vxor.u32 %v3628, %v3644
    %v3661 = vxor.u32 %v3629, %v3645
    %v3662 = vxor.u32 %v3630, %v3646
    %v3663 = vxor.u32 %v3631, %v3647
    %v3664 = vxor.u32 %v3632, %v3648
    %v3665 = vxor.u32 %v3633, %v3649
    %v3666 = vxor.u32 %v3634, %v3650
    %v3667 = vxor.u32 %v3635, %v3651
    %v3668 = vxor.u32 %v3636, %v3652
    %v3669 = vxor.u32 %v3637, %v3653
    %v3670 = vand.u32 %v3654, 8388607
    %v3671 = vand.u32 %v3655, 8388607
    %v3672 = vand.u32 %v3656, 8388607
    %v3673 = vand.u32 %v3657, 8388607
    %v3674 = vand.u32 %v3658, 8388607
    %v3675 = vand.u32 %v3659, 8388607
    %v3676 = vand.u32 %v3660, 8388607
    %v3677 = vand.u32 %v3661, 8388607
    %v3678 = vand.u32 %v3662, 8388607
    %v3679 = vand.u32 %v3663, 8388607
    %v3680 = vand.u32 %v3664, 8388607
    %v3681 = vand.u32 %v3665, 8388607
    %v3682 = vand.u32 %v3666, 8388607
    %v3683 = vand.u32 %v3667, 8388607
    %v3684 = vand.u32 %v3668, 8388607
    %v3685 = vand.u32 %v3669, 8388607
    %v3686 = vcvt.s32.f32 %v3670
    %v3687 = vcvt.s32.f32 %v3671
    %v3688 = vcvt.s32.f32 %v3672
    %v3689 = vcvt.s32.f32 %v3673
    %v3690 = vcvt.s32.f32 %v3674
    %v3691 = vcvt.s32.f32 %v3675
    %v3692 = vcvt.s32.f32 %v3676
    %v3693 = vcvt.s32.f32 %v3677
    %v3694 = vcvt.s32.f32 %v3678
    %v3695 = vcvt.s32.f32 %v3679
    %v3696 = vcvt.s32.f32 %v3680
    %v3697 = vcvt.s32.f32 %v3681
    %v3698 = vcvt.s32.f32 %v3682
    %v3699 = vcvt.s32.f32 %v3683
    %v3700 = vcvt.s32.f32 %v3684
    %v3701 = vcvt.s32.f32 %v3685
    %v3702 = vmul.f32 %v3686, 1.1920929e-07
    %v3703 = vmul.f32 %v3687, 1.1920929e-07
    %v3704 = vmul.f32 %v3688, 1.1920929e-07
    %v3705 = vmul.f32 %v3689, 1.1920929e-07
    %v3706 = vmul.f32 %v3690, 1.1920929e-07
    %v3707 = vmul.f32 %v3691, 1.1920929e-07
    %v3708 = vmul.f32 %v3692, 1.1920929e-07
    %v3709 = vmul.f32 %v3693, 1.1920929e-07
    %v3710 = vmul.f32 %v3694, 1.1920929e-07
    %v3711 = vmul.f32 %v3695, 1.1920929e-07
    %v3712 = vmul.f32 %v3696, 1.1920929e-07
    %v3713 = vmul.f32 %v3697, 1.1920929e-07
    %v3714 = vmul.f32 %v3698, 1.1920929e-07
    %v3715 = vmul.f32 %v3699, 1.1920929e-07
    %v3716 = vmul.f32 %v3700, 1.1920929e-07
    %v3717 = vmul.f32 %v3701, 1.1920929e-07
    %vm3718 = vcmp.ge.f32.partialorder %v3702, 0.3
    %vm3719 = vcmp.ge.f32.partialorder %v3703, 0.3
    %vm3720 = vcmp.ge.f32.partialorder %v3704, 0.3
    %vm3721 = vcmp.ge.f32.partialorder %v3705, 0.3
    %vm3722 = vcmp.ge.f32.partialorder %v3706, 0.3
    %vm3723 = vcmp.ge.f32.partialorder %v3707, 0.3
    %vm3724 = vcmp.ge.f32.partialorder %v3708, 0.3
    %vm3725 = vcmp.ge.f32.partialorder %v3709, 0.3
    %vm3726 = vcmp.ge.f32.partialorder %v3710, 0.3
    %vm3727 = vcmp.ge.f32.partialorder %v3711, 0.3
    %vm3728 = vcmp.ge.f32.partialorder %v3712, 0.3
    %vm3729 = vcmp.ge.f32.partialorder %v3713, 0.3
    %vm3730 = vcmp.ge.f32.partialorder %v3714, 0.3
    %vm3731 = vcmp.ge.f32.partialorder %v3715, 0.3
    %vm3732 = vcmp.ge.f32.partialorder %v3716, 0.3
    %vm3733 = vcmp.ge.f32.partialorder %v3717, 0.3
    %v3734 = vmul.f32 %v3475, 1.4285715
    %v3735 = vmul.f32 %v3476, 1.4285715
    %v3736 = vmul.f32 %v3477, 1.4285715
    %v3737 = vmul.f32 %v3478, 1.4285715
    %v3738 = vmul.f32 %v3479, 1.4285715
    %v3739 = vmul.f32 %v3480, 1.4285715
    %v3740 = vmul.f32 %v3481, 1.4285715
    %v3741 = vmul.f32 %v3482, 1.4285715
    %v3742 = vmul.f32 %v3483, 1.4285715
    %v3743 = vmul.f32 %v3484, 1.4285715
    %v3744 = vmul.f32 %v3485, 1.4285715
    %v3745 = vmul.f32 %v3486, 1.4285715
    %v3746 = vmul.f32 %v3487, 1.4285715
    %v3747 = vmul.f32 %v3488, 1.4285715
    %v3748 = vmul.f32 %v3489, 1.4285715
    %v3749 = vmul.f32 %v3490, 1.4285715
    %v3750 = vsel %vm3718, %v3734, 0.0
    %v3751 = vsel %vm3719, %v3735, 0.0
    %v3752 = vsel %vm3720, %v3736, 0.0
    %v3753 = vsel %vm3721, %v3737, 0.0
    %v3754 = vsel %vm3722, %v3738, 0.0
    %v3755 = vsel %vm3723, %v3739, 0.0
    %v3756 = vsel %vm3724, %v3740, 0.0
    %v3757 = vsel %vm3725, %v3741, 0.0
    %v3758 = vsel %vm3726, %v3742, 0.0
    %v3759 = vsel %vm3727, %v3743, 0.0
    %v3760 = vsel %vm3728, %v3744, 0.0
    %v3761 = vsel %vm3729, %v3745, 0.0
    %v3762 = vsel %vm3730, %v3746, 0.0
    %v3763 = vsel %vm3731, %v3747, 0.0
    %v3764 = vsel %vm3732, %v3748, 0.0
    %v3765 = vsel %vm3733, %v3749, 0.0
    %v3766 = vld [vmem:[#allocation7] sm:$0xff]
    %v3767 = vld [vmem:[#allocation7 + $0x8] sm:$0xff]
    %v3768 = vld [vmem:[#allocation7 + $0x10] sm:$0xff]
    %v3769 = vld [vmem:[#allocation7 + $0x18] sm:$0xff]
    %v3770 = vld [vmem:[#allocation7 + $0x20] sm:$0xff]
    %v3771 = vld [vmem:[#allocation7 + $0x28] sm:$0xff]
    %v3772 = vld [vmem:[#allocation7 + $0x30] sm:$0xff]
    %v3773 = vld [vmem:[#allocation7 + $0x38] sm:$0xff]
    %v3774 = vld [vmem:[#allocation7 + $0x40] sm:$0xff]
    %v3775 = vld [vmem:[#allocation7 + $0x48] sm:$0xff]
    %v3776 = vld [vmem:[#allocation7 + $0x50] sm:$0xff]
    %v3777 = vld [vmem:[#allocation7 + $0x58] sm:$0xff]
    %v3778 = vld [vmem:[#allocation7 + $0x60] sm:$0xff]
    %v3779 = vld [vmem:[#allocation7 + $0x68] sm:$0xff]
    %v3780 = vld [vmem:[#allocation7 + $0x70] sm:$0xff]
    %v3781 = vld [vmem:[#allocation7 + $0x78] sm:$0xff]
    %v3782 = vld [vmem:[#allocation7 + $0x80] sm:$0xff]
    %v3783 = vld [vmem:[#allocation7 + $0x88] sm:$0xff]
    %v3784 = vld [vmem:[#allocation7 + $0x90] sm:$0xff]
    %v3785 = vld [vmem:[#allocation7 + $0x98] sm:$0xff]
    %v3786 = vld [vmem:[#allocation7 + $0xa0] sm:$0xff]
    %v3787 = vld [vmem:[#allocation7 + $0xa8] sm:$0xff]
    %v3788 = vld [vmem:[#allocation7 + $0xb0] sm:$0xff]
    %v3789 = vld [vmem:[#allocation7 + $0xb8] sm:$0xff]
    %v3790 = vld [vmem:[#allocation7 + $0xc0] sm:$0xff]
    %v3791 = vld [vmem:[#allocation7 + $0xc8] sm:$0xff]
    %v3792 = vld [vmem:[#allocation7 + $0xd0] sm:$0xff]
    %v3793 = vld [vmem:[#allocation7 + $0xd8] sm:$0xff]
    %v3794 = vld [vmem:[#allocation7 + $0xe0] sm:$0xff]
    %v3795 = vld [vmem:[#allocation7 + $0xe8] sm:$0xff]
    %v3796 = vld [vmem:[#allocation7 + $0xf0] sm:$0xff]
    %v3797 = vld [vmem:[#allocation7 + $0xf8] sm:$0xff]
    %v3798 = vld [vmem:[#allocation7 + $0x100] sm:$0xff]
    %v3799 = vld [vmem:[#allocation7 + $0x108] sm:$0xff]
    %v3800 = vld [vmem:[#allocation7 + $0x110] sm:$0xff]
    %v3801 = vld [vmem:[#allocation7 + $0x118] sm:$0xff]
    %v3802 = vld [vmem:[#allocation7 + $0x120] sm:$0xff]
    %v3803 = vld [vmem:[#allocation7 + $0x128] sm:$0xff]
    %v3804 = vld [vmem:[#allocation7 + $0x130] sm:$0xff]
    %v3805 = vld [vmem:[#allocation7 + $0x138] sm:$0xff]
    %v3806 = vld [vmem:[#allocation7 + $0x140] sm:$0xff]
    %v3807 = vld [vmem:[#allocation7 + $0x148] sm:$0xff]
    %v3808 = vld [vmem:[#allocation7 + $0x150] sm:$0xff]
    %v3809 = vld [vmem:[#allocation7 + $0x158] sm:$0xff]
    %v3810 = vld [vmem:[#allocation7 + $0x160] sm:$0xff]
    %v3811 = vld [vmem:[#allocation7 + $0x168] sm:$0xff]
    %v3812 = vld [vmem:[#allocation7 + $0x170] sm:$0xff]
    %v3813 = vld [vmem:[#allocation7 + $0x178] sm:$0xff]
    %v3814 = vld [vmem:[#allocation7 + $0x180] sm:$0xff]
    %v3815 = vld [vmem:[#allocation7 + $0x188] sm:$0xff]
    %v3816 = vld [vmem:[#allocation7 + $0x190] sm:$0xff]
    %v3817 = vld [vmem:[#allocation7 + $0x198] sm:$0xff]
    %v3818 = vld [vmem:[#allocation7 + $0x1a0] sm:$0xff]
    %v3819 = vld [vmem:[#allocation7 + $0x1a8] sm:$0xff]
    %v3820 = vld [vmem:[#allocation7 + $0x1b0] sm:$0xff]
    %v3821 = vld [vmem:[#allocation7 + $0x1b8] sm:$0xff]
    %v3822 = vld [vmem:[#allocation7 + $0x1c0] sm:$0xff]
    %v3823 = vld [vmem:[#allocation7 + $0x1c8] sm:$0xff]
    %v3824 = vld [vmem:[#allocation7 + $0x1d0] sm:$0xff]
    %v3825 = vld [vmem:[#allocation7 + $0x1d8] sm:$0xff]
    %v3826 = vld [vmem:[#allocation7 + $0x1e0] sm:$0xff]
    %v3827 = vld [vmem:[#allocation7 + $0x1e8] sm:$0xff]
    %v3828 = vld [vmem:[#allocation7 + $0x1f0] sm:$0xff]
    %v3829 = vld [vmem:[#allocation7 + $0x1f8] sm:$0xff]
    %v3830 = vld [vmem:[#allocation7 + $0x200] sm:$0xff]
    %v3831 = vld [vmem:[#allocation7 + $0x208] sm:$0xff]
    %v3832 = vld [vmem:[#allocation7 + $0x210] sm:$0xff]
    %v3833 = vld [vmem:[#allocation7 + $0x218] sm:$0xff]
    %v3834 = vld [vmem:[#allocation7 + $0x220] sm:$0xff]
    %v3835 = vld [vmem:[#allocation7 + $0x228] sm:$0xff]
    %v3836 = vld [vmem:[#allocation7 + $0x230] sm:$0xff]
    %v3837 = vld [vmem:[#allocation7 + $0x238] sm:$0xff]
    %v3838 = vld [vmem:[#allocation7 + $0x240] sm:$0xff]
    %v3839 = vld [vmem:[#allocation7 + $0x248] sm:$0xff]
    %v3840 = vld [vmem:[#allocation7 + $0x250] sm:$0xff]
    %v3841 = vld [vmem:[#allocation7 + $0x258] sm:$0xff]
    %v3842 = vld [vmem:[#allocation7 + $0x260] sm:$0xff]
    %v3843 = vld [vmem:[#allocation7 + $0x268] sm:$0xff]
    %v3844 = vld [vmem:[#allocation7 + $0x270] sm:$0xff]
    %v3845 = vld [vmem:[#allocation7 + $0x278] sm:$0xff]
    %v3846 = vld [vmem:[#allocation7 + $0x280] sm:$0xff]
    %v3847 = vld [vmem:[#allocation7 + $0x288] sm:$0xff]
    %v3848 = vld [vmem:[#allocation7 + $0x290] sm:$0xff]
    %v3849 = vld [vmem:[#allocation7 + $0x298] sm:$0xff]
    %v3850 = vld [vmem:[#allocation7 + $0x2a0] sm:$0xff]
    %v3851 = vld [vmem:[#allocation7 + $0x2a8] sm:$0xff]
    %v3852 = vld [vmem:[#allocation7 + $0x2b0] sm:$0xff]
    %v3853 = vld [vmem:[#allocation7 + $0x2b8] sm:$0xff]
    %v3854 = vld [vmem:[#allocation7 + $0x2c0] sm:$0xff]
    %v3855 = vld [vmem:[#allocation7 + $0x2c8] sm:$0xff]
    %v3856 = vld [vmem:[#allocation7 + $0x2d0] sm:$0xff]
    %v3857 = vld [vmem:[#allocation7 + $0x2d8] sm:$0xff]
    %v3858 = vld [vmem:[#allocation7 + $0x2e0] sm:$0xff]
    %v3859 = vld [vmem:[#allocation7 + $0x2e8] sm:$0xff]
    %v3860 = vld [vmem:[#allocation7 + $0x2f0] sm:$0xff]
    %v3861 = vld [vmem:[#allocation7 + $0x2f8] sm:$0xff]
    %v3862 = vld [vmem:[#allocation7 + $0x300] sm:$0xff]
    %v3863 = vld [vmem:[#allocation7 + $0x308] sm:$0xff]
    %v3864 = vld [vmem:[#allocation7 + $0x310] sm:$0xff]
    %v3865 = vld [vmem:[#allocation7 + $0x318] sm:$0xff]
    %v3866 = vld [vmem:[#allocation7 + $0x320] sm:$0xff]
    %v3867 = vld [vmem:[#allocation7 + $0x328] sm:$0xff]
    %v3868 = vld [vmem:[#allocation7 + $0x330] sm:$0xff]
    %v3869 = vld [vmem:[#allocation7 + $0x338] sm:$0xff]
    %v3870 = vld [vmem:[#allocation7 + $0x340] sm:$0xff]
    %v3871 = vld [vmem:[#allocation7 + $0x348] sm:$0xff]
    %v3872 = vld [vmem:[#allocation7 + $0x350] sm:$0xff]
    %v3873 = vld [vmem:[#allocation7 + $0x358] sm:$0xff]
    %v3874 = vld [vmem:[#allocation7 + $0x360] sm:$0xff]
    %v3875 = vld [vmem:[#allocation7 + $0x368] sm:$0xff]
    %v3876 = vld [vmem:[#allocation7 + $0x370] sm:$0xff]
    %v3877 = vld [vmem:[#allocation7 + $0x378] sm:$0xff]
    %v3878 = vld [vmem:[#allocation7 + $0x380] sm:$0xff]
    %v3879 = vld [vmem:[#allocation7 + $0x388] sm:$0xff]
    %v3880 = vld [vmem:[#allocation7 + $0x390] sm:$0xff]
    %v3881 = vld [vmem:[#allocation7 + $0x398] sm:$0xff]
    %v3882 = vld [vmem:[#allocation7 + $0x3a0] sm:$0xff]
    %v3883 = vld [vmem:[#allocation7 + $0x3a8] sm:$0xff]
    %v3884 = vld [vmem:[#allocation7 + $0x3b0] sm:$0xff]
    %v3885 = vld [vmem:[#allocation7 + $0x3b8] sm:$0xff]
    %v3886 = vld [vmem:[#allocation7 + $0x3c0] sm:$0xff]
    %v3887 = vld [vmem:[#allocation7 + $0x3c8] sm:$0xff]
    %v3888 = vld [vmem:[#allocation7 + $0x3d0] sm:$0xff]
    %v3889 = vld [vmem:[#allocation7 + $0x3d8] sm:$0xff]
    %v3890 = vld [vmem:[#allocation7 + $0x3e0] sm:$0xff]
    %v3891 = vld [vmem:[#allocation7 + $0x3e8] sm:$0xff]
    %v3892 = vld [vmem:[#allocation7 + $0x3f0] sm:$0xff]
    %v3893 = vld [vmem:[#allocation7 + $0x3f8] sm:$0xff]
    %v3894 = vunpack.c.l.s8.bf16 %v3766
    %v3895 = vunpack.c.l.s8.bf16 %v3767
    %v3896 = vunpack.c.l.s8.bf16 %v3768
    %v3897 = vunpack.c.l.s8.bf16 %v3769
    %v3898 = vunpack.c.h.s8.bf16 %v3766
    %v3899 = vunpack.c.h.s8.bf16 %v3767
    %v3900 = vunpack.c.h.s8.bf16 %v3768
    %v3901 = vunpack.c.h.s8.bf16 %v3769
    %v3902 = vunpack.c.l.s8.bf16 %v3770
    %v3903 = vunpack.c.l.s8.bf16 %v3771
    %v3904 = vunpack.c.l.s8.bf16 %v3772
    %v3905 = vunpack.c.l.s8.bf16 %v3773
    %v3906 = vunpack.c.h.s8.bf16 %v3770
    %v3907 = vunpack.c.h.s8.bf16 %v3771
    %v3908 = vunpack.c.h.s8.bf16 %v3772
    %v3909 = vunpack.c.h.s8.bf16 %v3773
    %v3910 = vunpack.c.l.s8.bf16 %v3774
    %v3911 = vunpack.c.l.s8.bf16 %v3775
    %v3912 = vunpack.c.l.s8.bf16 %v3776
    %v3913 = vunpack.c.l.s8.bf16 %v3777
    %v3914 = vunpack.c.h.s8.bf16 %v3774
    %v3915 = vunpack.c.h.s8.bf16 %v3775
    %v3916 = vunpack.c.h.s8.bf16 %v3776
    %v3917 = vunpack.c.h.s8.bf16 %v3777
    %v3918 = vunpack.c.l.s8.bf16 %v3778
    %v3919 = vunpack.c.l.s8.bf16 %v3779
    %v3920 = vunpack.c.l.s8.bf16 %v3780
    %v3921 = vunpack.c.l.s8.bf16 %v3781
    %v3922 = vunpack.c.h.s8.bf16 %v3778
    %v3923 = vunpack.c.h.s8.bf16 %v3779
    %v3924 = vunpack.c.h.s8.bf16 %v3780
    %v3925 = vunpack.c.h.s8.bf16 %v3781
    %v3926 = vunpack.c.l.s8.bf16 %v3782
    %v3927 = vunpack.c.l.s8.bf16 %v3783
    %v3928 = vunpack.c.l.s8.bf16 %v3784
    %v3929 = vunpack.c.l.s8.bf16 %v3785
    %v3930 = vunpack.c.h.s8.bf16 %v3782
    %v3931 = vunpack.c.h.s8.bf16 %v3783
    %v3932 = vunpack.c.h.s8.bf16 %v3784
    %v3933 = vunpack.c.h.s8.bf16 %v3785
    %v3934 = vunpack.c.l.s8.bf16 %v3786
    %v3935 = vunpack.c.l.s8.bf16 %v3787
    %v3936 = vunpack.c.l.s8.bf16 %v3788
    %v3937 = vunpack.c.l.s8.bf16 %v3789
    %v3938 = vunpack.c.h.s8.bf16 %v3786
    %v3939 = vunpack.c.h.s8.bf16 %v3787
    %v3940 = vunpack.c.h.s8.bf16 %v3788
    %v3941 = vunpack.c.h.s8.bf16 %v3789
    %v3942 = vunpack.c.l.s8.bf16 %v3790
    %v3943 = vunpack.c.l.s8.bf16 %v3791
    %v3944 = vunpack.c.l.s8.bf16 %v3792
    %v3945 = vunpack.c.l.s8.bf16 %v3793
    %v3946 = vunpack.c.h.s8.bf16 %v3790
    %v3947 = vunpack.c.h.s8.bf16 %v3791
    %v3948 = vunpack.c.h.s8.bf16 %v3792
    %v3949 = vunpack.c.h.s8.bf16 %v3793
    %v3950 = vunpack.c.l.s8.bf16 %v3794
    %v3951 = vunpack.c.l.s8.bf16 %v3795
    %v3952 = vunpack.c.l.s8.bf16 %v3796
    %v3953 = vunpack.c.l.s8.bf16 %v3797
    %v3954 = vunpack.c.h.s8.bf16 %v3794
    %v3955 = vunpack.c.h.s8.bf16 %v3795
    %v3956 = vunpack.c.h.s8.bf16 %v3796
    %v3957 = vunpack.c.h.s8.bf16 %v3797
    %v3958 = vunpack.c.l.s8.bf16 %v3798
    %v3959 = vunpack.c.l.s8.bf16 %v3799
    %v3960 = vunpack.c.l.s8.bf16 %v3800
    %v3961 = vunpack.c.l.s8.bf16 %v3801
    %v3962 = vunpack.c.h.s8.bf16 %v3798
    %v3963 = vunpack.c.h.s8.bf16 %v3799
    %v3964 = vunpack.c.h.s8.bf16 %v3800
    %v3965 = vunpack.c.h.s8.bf16 %v3801
    %v3966 = vunpack.c.l.s8.bf16 %v3802
    %v3967 = vunpack.c.l.s8.bf16 %v3803
    %v3968 = vunpack.c.l.s8.bf16 %v3804
    %v3969 = vunpack.c.l.s8.bf16 %v3805
    %v3970 = vunpack.c.h.s8.bf16 %v3802
    %v3971 = vunpack.c.h.s8.bf16 %v3803
    %v3972 = vunpack.c.h.s8.bf16 %v3804
    %v3973 = vunpack.c.h.s8.bf16 %v3805
    %v3974 = vunpack.c.l.s8.bf16 %v3806
    %v3975 = vunpack.c.l.s8.bf16 %v3807
    %v3976 = vunpack.c.l.s8.bf16 %v3808
    %v3977 = vunpack.c.l.s8.bf16 %v3809
    %v3978 = vunpack.c.h.s8.bf16 %v3806
    %v3979 = vunpack.c.h.s8.bf16 %v3807
    %v3980 = vunpack.c.h.s8.bf16 %v3808
    %v3981 = vunpack.c.h.s8.bf16 %v3809
    %v3982 = vunpack.c.l.s8.bf16 %v3810
    %v3983 = vunpack.c.l.s8.bf16 %v3811
    %v3984 = vunpack.c.l.s8.bf16 %v3812
    %v3985 = vunpack.c.l.s8.bf16 %v3813
    %v3986 = vunpack.c.h.s8.bf16 %v3810
    %v3987 = vunpack.c.h.s8.bf16 %v3811
    %v3988 = vunpack.c.h.s8.bf16 %v3812
    %v3989 = vunpack.c.h.s8.bf16 %v3813
    %v3990 = vunpack.c.l.s8.bf16 %v3814
    %v3991 = vunpack.c.l.s8.bf16 %v3815
    %v3992 = vunpack.c.l.s8.bf16 %v3816
    %v3993 = vunpack.c.l.s8.bf16 %v3817
    %v3994 = vunpack.c.h.s8.bf16 %v3814
    %v3995 = vunpack.c.h.s8.bf16 %v3815
    %v3996 = vunpack.c.h.s8.bf16 %v3816
    %v3997 = vunpack.c.h.s8.bf16 %v3817
    %v3998 = vunpack.c.l.s8.bf16 %v3818
    %v3999 = vunpack.c.l.s8.bf16 %v3819
    %v4000 = vunpack.c.l.s8.bf16 %v3820
    %v4001 = vunpack.c.l.s8.bf16 %v3821
    %v4002 = vunpack.c.h.s8.bf16 %v3818
    %v4003 = vunpack.c.h.s8.bf16 %v3819
    %v4004 = vunpack.c.h.s8.bf16 %v3820
    %v4005 = vunpack.c.h.s8.bf16 %v3821
    %v4006 = vunpack.c.l.s8.bf16 %v3822
    %v4007 = vunpack.c.l.s8.bf16 %v3823
    %v4008 = vunpack.c.l.s8.bf16 %v3824
    %v4009 = vunpack.c.l.s8.bf16 %v3825
    %v4010 = vunpack.c.h.s8.bf16 %v3822
    %v4011 = vunpack.c.h.s8.bf16 %v3823
    %v4012 = vunpack.c.h.s8.bf16 %v3824
    %v4013 = vunpack.c.h.s8.bf16 %v3825
    %v4014 = vunpack.c.l.s8.bf16 %v3826
    %v4015 = vunpack.c.l.s8.bf16 %v3827
    %v4016 = vunpack.c.l.s8.bf16 %v3828
    %v4017 = vunpack.c.l.s8.bf16 %v3829
    %v4018 = vunpack.c.h.s8.bf16 %v3826
    %v4019 = vunpack.c.h.s8.bf16 %v3827
    %v4020 = vunpack.c.h.s8.bf16 %v3828
    %v4021 = vunpack.c.h.s8.bf16 %v3829
    %v4022 = vunpack.c.l.s8.bf16 %v3830
    %v4023 = vunpack.c.l.s8.bf16 %v3831
    %v4024 = vunpack.c.l.s8.bf16 %v3832
    %v4025 = vunpack.c.l.s8.bf16 %v3833
    %v4026 = vunpack.c.h.s8.bf16 %v3830
    %v4027 = vunpack.c.h.s8.bf16 %v3831
    %v4028 = vunpack.c.h.s8.bf16 %v3832
    %v4029 = vunpack.c.h.s8.bf16 %v3833
    %v4030 = vunpack.c.l.s8.bf16 %v3834
    %v4031 = vunpack.c.l.s8.bf16 %v3835
    %v4032 = vunpack.c.l.s8.bf16 %v3836
    %v4033 = vunpack.c.l.s8.bf16 %v3837
    %v4034 = vunpack.c.h.s8.bf16 %v3834
    %v4035 = vunpack.c.h.s8.bf16 %v3835
    %v4036 = vunpack.c.h.s8.bf16 %v3836
    %v4037 = vunpack.c.h.s8.bf16 %v3837
    %v4038 = vunpack.c.l.s8.bf16 %v3838
    %v4039 = vunpack.c.l.s8.bf16 %v3839
    %v4040 = vunpack.c.l.s8.bf16 %v3840
    %v4041 = vunpack.c.l.s8.bf16 %v3841
    %v4042 = vunpack.c.h.s8.bf16 %v3838
    %v4043 = vunpack.c.h.s8.bf16 %v3839
    %v4044 = vunpack.c.h.s8.bf16 %v3840
    %v4045 = vunpack.c.h.s8.bf16 %v3841
    %v4046 = vunpack.c.l.s8.bf16 %v3842
    %v4047 = vunpack.c.l.s8.bf16 %v3843
    %v4048 = vunpack.c.l.s8.bf16 %v3844
    %v4049 = vunpack.c.l.s8.bf16 %v3845
    %v4050 = vunpack.c.h.s8.bf16 %v3842
    %v4051 = vunpack.c.h.s8.bf16 %v3843
    %v4052 = vunpack.c.h.s8.bf16 %v3844
    %v4053 = vunpack.c.h.s8.bf16 %v3845
    %v4054 = vunpack.c.l.s8.bf16 %v3846
    %v4055 = vunpack.c.l.s8.bf16 %v3847
    %v4056 = vunpack.c.l.s8.bf16 %v3848
    %v4057 = vunpack.c.l.s8.bf16 %v3849
    %v4058 = vunpack.c.h.s8.bf16 %v3846
    %v4059 = vunpack.c.h.s8.bf16 %v3847
    %v4060 = vunpack.c.h.s8.bf16 %v3848
    %v4061 = vunpack.c.h.s8.bf16 %v3849
    %v4062 = vunpack.c.l.s8.bf16 %v3850
    %v4063 = vunpack.c.l.s8.bf16 %v3851
    %v4064 = vunpack.c.l.s8.bf16 %v3852
    %v4065 = vunpack.c.l.s8.bf16 %v3853
    %v4066 = vunpack.c.h.s8.bf16 %v3850
    %v4067 = vunpack.c.h.s8.bf16 %v3851
    %v4068 = vunpack.c.h.s8.bf16 %v3852
    %v4069 = vunpack.c.h.s8.bf16 %v3853
    %v4070 = vunpack.c.l.s8.bf16 %v3854
    %v4071 = vunpack.c.l.s8.bf16 %v3855
    %v4072 = vunpack.c.l.s8.bf16 %v3856
    %v4073 = vunpack.c.l.s8.bf16 %v3857
    %v4074 = vunpack.c.h.s8.bf16 %v3854
    %v4075 = vunpack.c.h.s8.bf16 %v3855
    %v4076 = vunpack.c.h.s8.bf16 %v3856
    %v4077 = vunpack.c.h.s8.bf16 %v3857
    %v4078 = vunpack.c.l.s8.bf16 %v3858
    %v4079 = vunpack.c.l.s8.bf16 %v3859
    %v4080 = vunpack.c.l.s8.bf16 %v3860
    %v4081 = vunpack.c.l.s8.bf16 %v3861
    %v4082 = vunpack.c.h.s8.bf16 %v3858
    %v4083 = vunpack.c.h.s8.bf16 %v3859
    %v4084 = vunpack.c.h.s8.bf16 %v3860
    %v4085 = vunpack.c.h.s8.bf16 %v3861
    %v4086 = vunpack.c.l.s8.bf16 %v3862
    %v4087 = vunpack.c.l.s8.bf16 %v3863
    %v4088 = vunpack.c.l.s8.bf16 %v3864
    %v4089 = vunpack.c.l.s8.bf16 %v3865
    %v4090 = vunpack.c.h.s8.bf16 %v3862
    %v4091 = vunpack.c.h.s8.bf16 %v3863
    %v4092 = vunpack.c.h.s8.bf16 %v3864
    %v4093 = vunpack.c.h.s8.bf16 %v3865
    %v4094 = vunpack.c.l.s8.bf16 %v3866
    %v4095 = vunpack.c.l.s8.bf16 %v3867
    %v4096 = vunpack.c.l.s8.bf16 %v3868
    %v4097 = vunpack.c.l.s8.bf16 %v3869
    %v4098 = vunpack.c.h.s8.bf16 %v3866
    %v4099 = vunpack.c.h.s8.bf16 %v3867
    %v4100 = vunpack.c.h.s8.bf16 %v3868
    %v4101 = vunpack.c.h.s8.bf16 %v3869
    %v4102 = vunpack.c.l.s8.bf16 %v3870
    %v4103 = vunpack.c.l.s8.bf16 %v3871
    %v4104 = vunpack.c.l.s8.bf16 %v3872
    %v4105 = vunpack.c.l.s8.bf16 %v3873
    %v4106 = vunpack.c.h.s8.bf16 %v3870
    %v4107 = vunpack.c.h.s8.bf16 %v3871
    %v4108 = vunpack.c.h.s8.bf16 %v3872
    %v4109 = vunpack.c.h.s8.bf16 %v3873
    %v4110 = vunpack.c.l.s8.bf16 %v3874
    %v4111 = vunpack.c.l.s8.bf16 %v3875
    %v4112 = vunpack.c.l.s8.bf16 %v3876
    %v4113 = vunpack.c.l.s8.bf16 %v3877
    %v4114 = vunpack.c.h.s8.bf16 %v3874
    %v4115 = vunpack.c.h.s8.bf16 %v3875
    %v4116 = vunpack.c.h.s8.bf16 %v3876
    %v4117 = vunpack.c.h.s8.bf16 %v3877
    %v4118 = vunpack.c.l.s8.bf16 %v3878
    %v4119 = vunpack.c.l.s8.bf16 %v3879
    %v4120 = vunpack.c.l.s8.bf16 %v3880
    %v4121 = vunpack.c.l.s8.bf16 %v3881
    %v4122 = vunpack.c.h.s8.bf16 %v3878
    %v4123 = vunpack.c.h.s8.bf16 %v3879
    %v4124 = vunpack.c.h.s8.bf16 %v3880
    %v4125 = vunpack.c.h.s8.bf16 %v3881
    %v4126 = vunpack.c.l.s8.bf16 %v3882
    %v4127 = vunpack.c.l.s8.bf16 %v3883
    %v4128 = vunpack.c.l.s8.bf16 %v3884
    %v4129 = vunpack.c.l.s8.bf16 %v3885
    %v4130 = vunpack.c.h.s8.bf16 %v3882
    %v4131 = vunpack.c.h.s8.bf16 %v3883
    %v4132 = vunpack.c.h.s8.bf16 %v3884
    %v4133 = vunpack.c.h.s8.bf16 %v3885
    %v4134 = vunpack.c.l.s8.bf16 %v3886
    %v4135 = vunpack.c.l.s8.bf16 %v3887
    %v4136 = vunpack.c.l.s8.bf16 %v3888
    %v4137 = vunpack.c.l.s8.bf16 %v3889
    %v4138 = vunpack.c.h.s8.bf16 %v3886
    %v4139 = vunpack.c.h.s8.bf16 %v3887
    %v4140 = vunpack.c.h.s8.bf16 %v3888
    %v4141 = vunpack.c.h.s8.bf16 %v3889
    %v4142 = vunpack.c.l.s8.bf16 %v3890
    %v4143 = vunpack.c.l.s8.bf16 %v3891
    %v4144 = vunpack.c.l.s8.bf16 %v3892
    %v4145 = vunpack.c.l.s8.bf16 %v3893
    %v4146 = vunpack.c.h.s8.bf16 %v3890
    %v4147 = vunpack.c.h.s8.bf16 %v3891
    %v4148 = vunpack.c.h.s8.bf16 %v3892
    %v4149 = vunpack.c.h.s8.bf16 %v3893
    %v4150 = vpack.c.bf16 %v3758, %v3750
    %v4151 = vpack.c.bf16 %v3759, %v3751
    %v4152 = vpack.c.bf16 %v3760, %v3752
    %v4153 = vpack.c.bf16 %v3761, %v3753
    %v4154 = vpack.c.bf16 %v3762, %v3754
    %v4155 = vpack.c.bf16 %v3763, %v3755
    %v4156 = vpack.c.bf16 %v3764, %v3756
    %v4157 = vpack.c.bf16 %v3765, %v3757
    %4158 = vmatprep.subr.bf16.mxu0 %v3895
    %4159 = vmatpush1.bf16.msra.mxu0 %v3894
    %4160 = vmatprep.subr.bf16.mxu0 %v3899
    %4161 = vmatpush1.bf16.msra.mxu0 %v3898
    %4162 = vmatprep.subr.bf16.mxu0 %v3903
    %4163 = vmatpush1.bf16.msra.mxu0 %v3902
    %4164 = vmatprep.subr.bf16.mxu0 %v3907
    %4165 = vmatpush1.bf16.msra.mxu0 %v3906
    %4166 = vmatprep.subr.bf16.mxu0 %v3911
    %4167 = vmatpush1.bf16.msra.mxu0 %v3910
    %4168 = vmatprep.subr.bf16.mxu0 %v3915
    %4169 = vmatpush1.bf16.msra.mxu0 %v3914
    %4170 = vmatprep.subr.bf16.mxu0 %v3919
    %4171 = vmatpush1.bf16.msra.mxu0 %v3918
    %4172 = vmatprep.subr.bf16.mxu0 %v3923
    %4173 = vmatpush1.bf16.msra.mxu0 %v3922
    %4174 = vmatprep.subr.bf16.mxu0 %v3927
    %4175 = vmatpush1.bf16.msra.mxu0 %v3926
    %4176 = vmatprep.subr.bf16.mxu0 %v3931
    %4177 = vmatpush1.bf16.msra.mxu0 %v3930
    %4178 = vmatprep.subr.bf16.mxu0 %v3935
    %4179 = vmatpush1.bf16.msra.mxu0 %v3934
    %4180 = vmatprep.subr.bf16.mxu0 %v3939
    %4181 = vmatpush1.bf16.msra.mxu0 %v3938
    %4182 = vmatprep.subr.bf16.mxu0 %v3943
    %4183 = vmatpush1.bf16.msra.mxu0 %v3942
    %4184 = vmatprep.subr.bf16.mxu0 %v3947
    %4185 = vmatpush1.bf16.msra.mxu0 %v3946
    %4186 = vmatprep.subr.bf16.mxu0 %v3951
    %4187 = vmatpush1.bf16.msra.mxu0 %v3950
    %4188 = vmatprep.subr.bf16.mxu0 %v3955
    %4189 = vmatpush1.bf16.msra.mxu0 %v3954
    %4190 = vmatprep.mubr.bf16.mxu0 %v4151
    %4191 = vmatmul.mubr.bf16.gmra.mrb[0].mxu0 %v4150
    %v4192 = vpop.f32.mrb[0].mxu0
    %v4193 = vadd.f32 0.0, %v4192
    %v4194 = vpop.f32.mrb[0].mxu0
    %v4195 = vadd.f32 0.0, %v4194
    %v4196 = vpop.f32.mrb[0].mxu0
    %v4197 = vadd.f32 0.0, %v4196
    %v4198 = vpop.f32.mrb[0].mxu0
    %v4199 = vadd.f32 0.0, %v4198
    %4200 = vdwg.mxu0
    %4201 = vmatprep.subr.bf16.mxu0 %v3959
    %4202 = vmatpush1.bf16.msra.mxu0 %v3958
    %4203 = vmatprep.subr.bf16.mxu0 %v3963
    %4204 = vmatpush1.bf16.msra.mxu0 %v3962
    %4205 = vmatprep.subr.bf16.mxu0 %v3967
    %4206 = vmatpush1.bf16.msra.mxu0 %v3966
    %4207 = vmatprep.subr.bf16.mxu0 %v3971
    %4208 = vmatpush1.bf16.msra.mxu0 %v3970
    %4209 = vmatprep.subr.bf16.mxu0 %v3975
    %4210 = vmatpush1.bf16.msra.mxu0 %v3974
    %4211 = vmatprep.subr.bf16.mxu0 %v3979
    %4212 = vmatpush1.bf16.msra.mxu0 %v3978
    %4213 = vmatprep.subr.bf16.mxu0 %v3983
    %4214 = vmatpush1.bf16.msra.mxu0 %v3982
    %4215 = vmatprep.subr.bf16.mxu0 %v3987
    %4216 = vmatpush1.bf16.msra.mxu0 %v3986
    %4217 = vmatprep.subr.bf16.mxu0 %v3991
    %4218 = vmatpush1.bf16.msra.mxu0 %v3990
    %4219 = vmatprep.subr.bf16.mxu0 %v3995
    %4220 = vmatpush1.bf16.msra.mxu0 %v3994
    %4221 = vmatprep.subr.bf16.mxu0 %v3999
    %4222 = vmatpush1.bf16.msra.mxu0 %v3998
    %4223 = vmatprep.subr.bf16.mxu0 %v4003
    %4224 = vmatpush1.bf16.msra.mxu0 %v4002
    %4225 = vmatprep.subr.bf16.mxu0 %v4007
    %4226 = vmatpush1.bf16.msra.mxu0 %v4006
    %4227 = vmatprep.subr.bf16.mxu0 %v4011
    %4228 = vmatpush1.bf16.msra.mxu0 %v4010
    %4229 = vmatprep.subr.bf16.mxu0 %v4015
    %4230 = vmatpush1.bf16.msra.mxu0 %v4014
    %4231 = vmatprep.subr.bf16.mxu0 %v4019
    %4232 = vmatpush1.bf16.msra.mxu0 %v4018
    %4233 = vmatprep.mubr.bf16.mxu0 %v4153
    %4234 = vmatmul.mubr.bf16.gmra.mrb[0].mxu0 %v4152
    %v4235 = vpop.f32.mrb[0].mxu0
    %v4236 = vadd.f32 %v4193, %v4235
    %v4237 = vpop.f32.mrb[0].mxu0
    %v4238 = vadd.f32 %v4195, %v4237
    %v4239 = vpop.f32.mrb[0].mxu0
    %v4240 = vadd.f32 %v4197, %v4239
    %v4241 = vpop.f32.mrb[0].mxu0
    %v4242 = vadd.f32 %v4199, %v4241
    %4243 = vdwg.mxu0
    %4244 = vmatprep.subr.bf16.mxu0 %v4023
    %4245 = vmatpush1.bf16.msra.mxu0 %v4022
    %4246 = vmatprep.subr.bf16.mxu0 %v4027
    %4247 = vmatpush1.bf16.msra.mxu0 %v4026
    %4248 = vmatprep.subr.bf16.mxu0 %v4031
    %4249 = vmatpush1.bf16.msra.mxu0 %v4030
    %4250 = vmatprep.subr.bf16.mxu0 %v4035
    %4251 = vmatpush1.bf16.msra.mxu0 %v4034
    %4252 = vmatprep.subr.bf16.mxu0 %v4039
    %4253 = vmatpush1.bf16.msra.mxu0 %v4038
    %4254 = vmatprep.subr.bf16.mxu0 %v4043
    %4255 = vmatpush1.bf16.msra.mxu0 %v4042
    %4256 = vmatprep.subr.bf16.mxu0 %v4047
    %4257 = vmatpush1.bf16.msra.mxu0 %v4046
    %4258 = vmatprep.subr.bf16.mxu0 %v4051
    %4259 = vmatpush1.bf16.msra.mxu0 %v4050
    %4260 = vmatprep.subr.bf16.mxu0 %v4055
    %4261 = vmatpush1.bf16.msra.mxu0 %v4054
    %4262 = vmatprep.subr.bf16.mxu0 %v4059
    %4263 = vmatpush1.bf16.msra.mxu0 %v4058
    %4264 = vmatprep.subr.bf16.mxu0 %v4063
    %4265 = vmatpush1.bf16.msra.mxu0 %v4062
    %4266 = vmatprep.subr.bf16.mxu0 %v4067
    %4267 = vmatpush1.bf16.msra.mxu0 %v4066
    %4268 = vmatprep.subr.bf16.mxu0 %v4071
    %4269 = vmatpush1.bf16.msra.mxu0 %v4070
    %4270 = vmatprep.subr.bf16.mxu0 %v4075
    %4271 = vmatpush1.bf16.msra.mxu0 %v4074
    %4272 = vmatprep.subr.bf16.mxu0 %v4079
    %4273 = vmatpush1.bf16.msra.mxu0 %v4078
    %4274 = vmatprep.subr.bf16.mxu0 %v4083
    %4275 = vmatpush1.bf16.msra.mxu0 %v4082
    %4276 = vmatprep.mubr.bf16.mxu0 %v4155
    %4277 = vmatmul.mubr.bf16.gmra.mrb[0].mxu0 %v4154
    %v4278 = vpop.f32.mrb[0].mxu0
    %v4279 = vadd.f32 %v4236, %v4278
    %v4280 = vpop.f32.mrb[0].mxu0
    %v4281 = vadd.f32 %v4238, %v4280
    %v4282 = vpop.f32.mrb[0].mxu0
    %v4283 = vadd.f32 %v4240, %v4282
    %v4284 = vpop.f32.mrb[0].mxu0
    %v4285 = vadd.f32 %v4242, %v4284
    %4286 = vdwg.mxu0
    %4287 = vmatprep.subr.bf16.mxu0 %v4087
    %4288 = vmatpush1.bf16.msra.mxu0 %v4086
    %4289 = vmatprep.subr.bf16.mxu0 %v4091
    %4290 = vmatpush1.bf16.msra.mxu0 %v4090
    %4291 = vmatprep.subr.bf16.mxu0 %v4095
    %4292 = vmatpush1.bf16.msra.mxu0 %v4094
    %4293 = vmatprep.subr.bf16.mxu0 %v4099
    %4294 = vmatpush1.bf16.msra.mxu0 %v4098
    %4295 = vmatprep.subr.bf16.mxu0 %v4103
    %4296 = vmatpush1.bf16.msra.mxu0 %v4102
    %4297 = vmatprep.subr.bf16.mxu0 %v4107
    %4298 = vmatpush1.bf16.msra.mxu0 %v4106
    %4299 = vmatprep.subr.bf16.mxu0 %v4111
    %4300 = vmatpush1.bf16.msra.mxu0 %v4110
    %4301 = vmatprep.subr.bf16.mxu0 %v4115
    %4302 = vmatpush1.bf16.msra.mxu0 %v4114
    %4303 = vmatprep.subr.bf16.mxu0 %v4119
    %4304 = vmatpush1.bf16.msra.mxu0 %v4118
    %4305 = vmatprep.subr.bf16.mxu0 %v4123
    %4306 = vmatpush1.bf16.msra.mxu0 %v4122
    %4307 = vmatprep.subr.bf16.mxu0 %v4127
    %4308 = vmatpush1.bf16.msra.mxu0 %v4126
    %4309 = vmatprep.subr.bf16.mxu0 %v4131
    %4310 = vmatpush1.bf16.msra.mxu0 %v4130
    %4311 = vmatprep.subr.bf16.mxu0 %v4135
    %4312 = vmatpush1.bf16.msra.mxu0 %v4134
    %4313 = vmatprep.subr.bf16.mxu0 %v4139
    %4314 = vmatpush1.bf16.msra.mxu0 %v4138
    %4315 = vmatprep.subr.bf16.mxu0 %v4143
    %4316 = vmatpush1.bf16.msra.mxu0 %v4142
    %4317 = vmatprep.subr.bf16.mxu0 %v4147
    %4318 = vmatpush1.bf16.msra.mxu0 %v4146
    %4319 = vmatprep.mubr.bf16.mxu0 %v4157
    %4320 = vmatmul.mubr.bf16.gmra.mrb[0].mxu0 %v4156
    %v4321 = vpop.f32.mrb[0].mxu0
    %v4322 = vadd.f32 %v4279, %v4321
    %v4323 = vpop.f32.mrb[0].mxu0
    %v4324 = vadd.f32 %v4281, %v4323
    %v4325 = vpop.f32.mrb[0].mxu0
    %v4326 = vadd.f32 %v4283, %v4325
    %v4327 = vpop.f32.mrb[0].mxu0
    %v4328 = vadd.f32 %v4285, %v4327
    %4329 = vdwg.mxu0
    %4330 = vmatprep.subr.bf16.mxu0 %v3897
    %4331 = vmatpush1.bf16.msra.mxu0 %v3896
    %4332 = vmatprep.subr.bf16.mxu0 %v3901
    %4333 = vmatpush1.bf16.msra.mxu0 %v3900
    %4334 = vmatprep.subr.bf16.mxu0 %v3905
    %4335 = vmatpush1.bf16.msra.mxu0 %v3904
    %4336 = vmatprep.subr.bf16.mxu0 %v3909
    %4337 = vmatpush1.bf16.msra.mxu0 %v3908
    %4338 = vmatprep.subr.bf16.mxu0 %v3913
    %4339 = vmatpush1.bf16.msra.mxu0 %v3912
    %4340 = vmatprep.subr.bf16.mxu0 %v3917
    %4341 = vmatpush1.bf16.msra.mxu0 %v3916
    %4342 = vmatprep.subr.bf16.mxu0 %v3921
    %4343 = vmatpush1.bf16.msra.mxu0 %v3920
    %4344 = vmatprep.subr.bf16.mxu0 %v3925
    %4345 = vmatpush1.bf16.msra.mxu0 %v3924
    %4346 = vmatprep.subr.bf16.mxu0 %v3929
    %4347 = vmatpush1.bf16.msra.mxu0 %v3928
    %4348 = vmatprep.subr.bf16.mxu0 %v3933
    %4349 = vmatpush1.bf16.msra.mxu0 %v3932
    %4350 = vmatprep.subr.bf16.mxu0 %v3937
    %4351 = vmatpush1.bf16.msra.mxu0 %v3936
    %4352 = vmatprep.subr.bf16.mxu0 %v3941
    %4353 = vmatpush1.bf16.msra.mxu0 %v3940
    %4354 = vmatprep.subr.bf16.mxu0 %v3945
    %4355 = vmatpush1.bf16.msra.mxu0 %v3944
    %4356 = vmatprep.subr.bf16.mxu0 %v3949
    %4357 = vmatpush1.bf16.msra.mxu0 %v3948
    %4358 = vmatprep.subr.bf16.mxu0 %v3953
    %4359 = vmatpush1.bf16.msra.mxu0 %v3952
    %4360 = vmatprep.subr.bf16.mxu0 %v3957
    %4361 = vmatpush1.bf16.msra.mxu0 %v3956
    %4362 = vmatprep.mubr.bf16.mxu0 %v4151
    %4363 = vmatmul.mubr.bf16.gmra.mrb[0].mxu0 %v4150
    %v4364 = vpop.f32.mrb[0].mxu0
    %v4365 = vadd.f32 0.0, %v4364
    %v4366 = vpop.f32.mrb[0].mxu0
    %v4367 = vadd.f32 0.0, %v4366
    %v4368 = vpop.f32.mrb[0].mxu0
    %v4369 = vadd.f32 0.0, %v4368
    %v4370 = vpop.f32.mrb[0].mxu0
    %v4371 = vadd.f32 0.0, %v4370
    %4372 = vdwg.mxu0
    %4373 = vmatprep.subr.bf16.mxu0 %v3961
    %4374 = vmatpush1.bf16.msra.mxu0 %v3960
    %4375 = vmatprep.subr.bf16.mxu0 %v3965
    %4376 = vmatpush1.bf16.msra.mxu0 %v3964
    %4377 = vmatprep.subr.bf16.mxu0 %v3969
    %4378 = vmatpush1.bf16.msra.mxu0 %v3968
    %4379 = vmatprep.subr.bf16.mxu0 %v3973
    %4380 = vmatpush1.bf16.msra.mxu0 %v3972
    %4381 = vmatprep.subr.bf16.mxu0 %v3977
    %4382 = vmatpush1.bf16.msra.mxu0 %v3976
    %4383 = vmatprep.subr.bf16.mxu0 %v3981
    %4384 = vmatpush1.bf16.msra.mxu0 %v3980
    %4385 = vmatprep.subr.bf16.mxu0 %v3985
    %4386 = vmatpush1.bf16.msra.mxu0 %v3984
    %4387 = vmatprep.subr.bf16.mxu0 %v3989
    %4388 = vmatpush1.bf16.msra.mxu0 %v3988
    %4389 = vmatprep.subr.bf16.mxu0 %v3993
    %4390 = vmatpush1.bf16.msra.mxu0 %v3992
    %4391 = vmatprep.subr.bf16.mxu0 %v3997
    %4392 = vmatpush1.bf16.msra.mxu0 %v3996
    %4393 = vmatprep.subr.bf16.mxu0 %v4001
    %4394 = vmatpush1.bf16.msra.mxu0 %v4000
    %4395 = vmatprep.subr.bf16.mxu0 %v4005
    %4396 = vmatpush1.bf16.msra.mxu0 %v4004
    %4397 = vmatprep.subr.bf16.mxu0 %v4009
    %4398 = vmatpush1.bf16.msra.mxu0 %v4008
    %4399 = vmatprep.subr.bf16.mxu0 %v4013
    %4400 = vmatpush1.bf16.msra.mxu0 %v4012
    %4401 = vmatprep.subr.bf16.mxu0 %v4017
    %4402 = vmatpush1.bf16.msra.mxu0 %v4016
    %4403 = vmatprep.subr.bf16.mxu0 %v4021
    %4404 = vmatpush1.bf16.msra.mxu0 %v4020
    %4405 = vmatprep.mubr.bf16.mxu0 %v4153
    %4406 = vmatmul.mubr.bf16.gmra.mrb[0].mxu0 %v4152
    %v4407 = vpop.f32.mrb[0].mxu0
    %v4408 = vadd.f32 %v4365, %v4407
    %v4409 = vpop.f32.mrb[0].mxu0
    %v4410 = vadd.f32 %v4367, %v4409
    %v4411 = vpop.f32.mrb[0].mxu0
    %v4412 = vadd.f32 %v4369, %v4411
    %v4413 = vpop.f32.mrb[0].mxu0
    %v4414 = vadd.f32 %v4371, %v4413
    %4415 = vdwg.mxu0
    %4416 = vmatprep.subr.bf16.mxu0 %v4025
    %4417 = vmatpush1.bf16.msra.mxu0 %v4024
    %4418 = vmatprep.subr.bf16.mxu0 %v4029
    %4419 = vmatpush1.bf16.msra.mxu0 %v4028
    %4420 = vmatprep.subr.bf16.mxu0 %v4033
    %4421 = vmatpush1.bf16.msra.mxu0 %v4032
    %4422 = vmatprep.subr.bf16.mxu0 %v4037
    %4423 = vmatpush1.bf16.msra.mxu0 %v4036
    %4424 = vmatprep.subr.bf16.mxu0 %v4041
    %4425 = vmatpush1.bf16.msra.mxu0 %v4040
    %4426 = vmatprep.subr.bf16.mxu0 %v4045
    %4427 = vmatpush1.bf16.msra.mxu0 %v4044
    %4428 = vmatprep.subr.bf16.mxu0 %v4049
    %4429 = vmatpush1.bf16.msra.mxu0 %v4048
    %4430 = vmatprep.subr.bf16.mxu0 %v4053
    %4431 = vmatpush1.bf16.msra.mxu0 %v4052
    %4432 = vmatprep.subr.bf16.mxu0 %v4057
    %4433 = vmatpush1.bf16.msra.mxu0 %v4056
    %4434 = vmatprep.subr.bf16.mxu0 %v4061
    %4435 = vmatpush1.bf16.msra.mxu0 %v4060
    %4436 = vmatprep.subr.bf16.mxu0 %v4065
    %4437 = vmatpush1.bf16.msra.mxu0 %v4064
    %4438 = vmatprep.subr.bf16.mxu0 %v4069
    %4439 = vmatpush1.bf16.msra.mxu0 %v4068
    %4440 = vmatprep.subr.bf16.mxu0 %v4073
    %4441 = vmatpush1.bf16.msra.mxu0 %v4072
    %4442 = vmatprep.subr.bf16.mxu0 %v4077
    %4443 = vmatpush1.bf16.msra.mxu0 %v4076
    %4444 = vmatprep.subr.bf16.mxu0 %v4081
    %4445 = vmatpush1.bf16.msra.mxu0 %v4080
    %4446 = vmatprep.subr.bf16.mxu0 %v4085
    %4447 = vmatpush1.bf16.msra.mxu0 %v4084
    %4448 = vmatprep.mubr.bf16.mxu0 %v4155
    %4449 = vmatmul.mubr.bf16.gmra.mrb[0].mxu0 %v4154
    %v4450 = vpop.f32.mrb[0].mxu0
    %v4451 = vadd.f32 %v4408, %v4450
    %v4452 = vpop.f32.mrb[0].mxu0
    %v4453 = vadd.f32 %v4410, %v4452
    %v4454 = vpop.f32.mrb[0].mxu0
    %v4455 = vadd.f32 %v4412, %v4454
    %v4456 = vpop.f32.mrb[0].mxu0
    %v4457 = vadd.f32 %v4414, %v4456
    %4458 = vdwg.mxu0
    %4459 = vmatprep.subr.bf16.mxu0 %v4089
    %4460 = vmatpush1.bf16.msra.mxu0 %v4088
    %4461 = vmatprep.subr.bf16.mxu0 %v4093
    %4462 = vmatpush1.bf16.msra.mxu0 %v4092
    %4463 = vmatprep.subr.bf16.mxu0 %v4097
    %4464 = vmatpush1.bf16.msra.mxu0 %v4096
    %4465 = vmatprep.subr.bf16.mxu0 %v4101
    %4466 = vmatpush1.bf16.msra.mxu0 %v4100
    %4467 = vmatprep.subr.bf16.mxu0 %v4105
    %4468 = vmatpush1.bf16.msra.mxu0 %v4104
    %4469 = vmatprep.subr.bf16.mxu0 %v4109
    %4470 = vmatpush1.bf16.msra.mxu0 %v4108
    %4471 = vmatprep.subr.bf16.mxu0 %v4113
    %4472 = vmatpush1.bf16.msra.mxu0 %v4112
    %4473 = vmatprep.subr.bf16.mxu0 %v4117
    %4474 = vmatpush1.bf16.msra.mxu0 %v4116
    %4475 = vmatprep.subr.bf16.mxu0 %v4121
    %4476 = vmatpush1.bf16.msra.mxu0 %v4120
    %4477 = vmatprep.subr.bf16.mxu0 %v4125
    %4478 = vmatpush1.bf16.msra.mxu0 %v4124
    %4479 = vmatprep.subr.bf16.mxu0 %v4129
    %4480 = vmatpush1.bf16.msra.mxu0 %v4128
    %4481 = vmatprep.subr.bf16.mxu0 %v4133
    %4482 = vmatpush1.bf16.msra.mxu0 %v4132
    %4483 = vmatprep.subr.bf16.mxu0 %v4137
    %4484 = vmatpush1.bf16.msra.mxu0 %v4136
    %4485 = vmatprep.subr.bf16.mxu0 %v4141
    %4486 = vmatpush1.bf16.msra.mxu0 %v4140
    %4487 = vmatprep.subr.bf16.mxu0 %v4145
    %4488 = vmatpush1.bf16.msra.mxu0 %v4144
    %4489 = vmatprep.subr.bf16.mxu0 %v4149
    %4490 = vmatpush1.bf16.msra.mxu0 %v4148
    %4491 = vmatprep.mubr.bf16.mxu0 %v4157
    %4492 = vmatmul.mubr.bf16.gmra.mrb[0].mxu0 %v4156
    %v4493 = vpop.f32.mrb[0].mxu0
    %v4494 = vadd.f32 %v4451, %v4493
    %v4495 = vpop.f32.mrb[0].mxu0
    %v4496 = vadd.f32 %v4453, %v4495
    %v4497 = vpop.f32.mrb[0].mxu0
    %v4498 = vadd.f32 %v4455, %v4497
    %v4499 = vpop.f32.mrb[0].mxu0
    %v4500 = vadd.f32 %v4457, %v4499
    %4501 = vdwg.mxu0
    %v4502 = vld [vmem:[%s6] sm:$0xf]
    %v4504 = vlaneseq
    %v4505 = vshrl.u32 %v4504, 7
    %v4506 = vsub.s32 0, %v4505
    %v4507 = vrot.slane %v4502, %v4506
    %v4508 = vlaneseq
    %v4509 = vshrl.u32 %v4508, 7
    %v4510 = vsub.s32 1, %v4509
    %v4511 = vrot.slane %v4502, %v4510
    %v4512 = vlaneseq
    %v4513 = vshrl.u32 %v4512, 7
    %v4514 = vsub.s32 2, %v4513
    %v4515 = vrot.slane %v4502, %v4514
    %v4516 = vlaneseq
    %v4517 = vshrl.u32 %v4516, 7
    %v4518 = vsub.s32 3, %v4517
    %v4519 = vrot.slane %v4502, %v4518
    %v4524 = vmul.f32 %v4322, %v4507
    %v4525 = vmul.f32 %v4324, %v4511
    %v4526 = vmul.f32 %v4494, %v4515
    %v4527 = vmul.f32 %v4496, %v4519
    %v4528 = vmul.f32 %v4326, %v4507
    %v4529 = vmul.f32 %v4328, %v4511
    %v4530 = vmul.f32 %v4498, %v4515
    %v4531 = vmul.f32 %v4500, %v4519
    %v4532 = vld [vmem:[%s7] sm:$0xf]
    %v4534 = vlaneseq
    %v4535 = vshrl.u32 %v4534, 7
    %v4536 = vsub.s32 0, %v4535
    %v4537 = vrot.slane %v4532, %v4536
    %v4538 = vlaneseq
    %v4539 = vshrl.u32 %v4538, 7
    %v4540 = vsub.s32 1, %v4539
    %v4541 = vrot.slane %v4532, %v4540
    %v4542 = vlaneseq
    %v4543 = vshrl.u32 %v4542, 7
    %v4544 = vsub.s32 2, %v4543
    %v4545 = vrot.slane %v4532, %v4544
    %v4546 = vlaneseq
    %v4547 = vshrl.u32 %v4546, 7
    %v4548 = vsub.s32 3, %v4547
    %v4549 = vrot.slane %v4532, %v4548
    %v4554 = vadd.f32 %v4524, %v4537
    %v4555 = vadd.f32 %v4525, %v4541
    %v4556 = vadd.f32 %v4526, %v4545
    %v4557 = vadd.f32 %v4527, %v4549
    %v4558 = vadd.f32 %v4528, %v4537
    %v4559 = vadd.f32 %v4529, %v4541
    %v4560 = vadd.f32 %v4530, %v4545
    %v4561 = vadd.f32 %v4531, %v4549
    %v4562 = vmax.f32 %v4554, 0.0
    %v4563 = vmax.f32 %v4555, 0.0
    %v4564 = vmax.f32 %v4556, 0.0
    %v4565 = vmax.f32 %v4557, 0.0
    %v4566 = vmax.f32 %v4558, 0.0
    %v4567 = vmax.f32 %v4559, 0.0
    %v4568 = vmax.f32 %v4560, 0.0
    %v4569 = vmax.f32 %v4561, 0.0
    %v4570 = vadd.s32 %v3506, 1024
    %v4571 = vadd.s32 %v3507, 1024
    %v4572 = vadd.s32 %v4570, %v3498
    %v4573 = vadd.s32 %v4570, %v3499
    %v4574 = vadd.s32 %v4570, %v3500
    %v4575 = vadd.s32 %v4570, %v3501
    %v4576 = vadd.s32 %v4571, %v3498
    %v4577 = vadd.s32 %v4571, %v3499
    %v4578 = vadd.s32 %v4571, %v3500
    %v4579 = vadd.s32 %v4571, %v3501
    %v4580 = vxor.u32 %v4572, %v3525
    %v4581 = vxor.u32 %v4573, %v3525
    %v4582 = vxor.u32 %v4574, %v3525
    %v4583 = vxor.u32 %v4575, %v3525
    %v4584 = vxor.u32 %v4576, %v3525
    %v4585 = vxor.u32 %v4577, %v3525
    %v4586 = vxor.u32 %v4578, %v3525
    %v4587 = vxor.u32 %v4579, %v3525
    %v4588 = vshrl.u32 %v4580, 16
    %v4589 = vshrl.u32 %v4581, 16
    %v4590 = vshrl.u32 %v4582, 16
    %v4591 = vshrl.u32 %v4583, 16
    %v4592 = vshrl.u32 %v4584, 16
    %v4593 = vshrl.u32 %v4585, 16
    %v4594 = vshrl.u32 %v4586, 16
    %v4595 = vshrl.u32 %v4587, 16
    %v4596 = vxor.u32 %v4580, %v4588
    %v4597 = vxor.u32 %v4581, %v4589
    %v4598 = vxor.u32 %v4582, %v4590
    %v4599 = vxor.u32 %v4583, %v4591
    %v4600 = vxor.u32 %v4584, %v4592
    %v4601 = vxor.u32 %v4585, %v4593
    %v4602 = vxor.u32 %v4586, %v4594
    %v4603 = vxor.u32 %v4587, %v4595
    %v4604 = vmul.u32 %v4596, 2146121005
    %v4605 = vmul.u32 %v4597, 2146121005
    %v4606 = vmul.u32 %v4598, 2146121005
    %v4607 = vmul.u32 %v4599, 2146121005
    %v4608 = vmul.u32 %v4600, 2146121005
    %v4609 = vmul.u32 %v4601, 2146121005
    %v4610 = vmul.u32 %v4602, 2146121005
    %v4611 = vmul.u32 %v4603, 2146121005
    %v4612 = vshrl.u32 %v4604, 15
    %v4613 = vshrl.u32 %v4605, 15
    %v4614 = vshrl.u32 %v4606, 15
    %v4615 = vshrl.u32 %v4607, 15
    %v4616 = vshrl.u32 %v4608, 15
    %v4617 = vshrl.u32 %v4609, 15
    %v4618 = vshrl.u32 %v4610, 15
    %v4619 = vshrl.u32 %v4611, 15
    %v4620 = vxor.u32 %v4604, %v4612
    %v4621 = vxor.u32 %v4605, %v4613
    %v4622 = vxor.u32 %v4606, %v4614
    %v4623 = vxor.u32 %v4607, %v4615
    %v4624 = vxor.u32 %v4608, %v4616
    %v4625 = vxor.u32 %v4609, %v4617
    %v4626 = vxor.u32 %v4610, %v4618
    %v4627 = vxor.u32 %v4611, %v4619
    %v4628 = vmul.u32 %v4620, 2221713035
    %v4629 = vmul.u32 %v4621, 2221713035
    %v4630 = vmul.u32 %v4622, 2221713035
    %v4631 = vmul.u32 %v4623, 2221713035
    %v4632 = vmul.u32 %v4624, 2221713035
    %v4633 = vmul.u32 %v4625, 2221713035
    %v4634 = vmul.u32 %v4626, 2221713035
    %v4635 = vmul.u32 %v4627, 2221713035
    %v4636 = vshrl.u32 %v4628, 16
    %v4637 = vshrl.u32 %v4629, 16
    %v4638 = vshrl.u32 %v4630, 16
    %v4639 = vshrl.u32 %v4631, 16
    %v4640 = vshrl.u32 %v4632, 16
    %v4641 = vshrl.u32 %v4633, 16
    %v4642 = vshrl.u32 %v4634, 16
    %v4643 = vshrl.u32 %v4635, 16
    %v4644 = vxor.u32 %v4628, %v4636
    %v4645 = vxor.u32 %v4629, %v4637
    %v4646 = vxor.u32 %v4630, %v4638
    %v4647 = vxor.u32 %v4631, %v4639
    %v4648 = vxor.u32 %v4632, %v4640
    %v4649 = vxor.u32 %v4633, %v4641
    %v4650 = vxor.u32 %v4634, %v4642
    %v4651 = vxor.u32 %v4635, %v4643
    %v4652 = vand.u32 %v4644, 8388607
    %v4653 = vand.u32 %v4645, 8388607
    %v4654 = vand.u32 %v4646, 8388607
    %v4655 = vand.u32 %v4647, 8388607
    %v4656 = vand.u32 %v4648, 8388607
    %v4657 = vand.u32 %v4649, 8388607
    %v4658 = vand.u32 %v4650, 8388607
    %v4659 = vand.u32 %v4651, 8388607
    %v4660 = vcvt.s32.f32 %v4652
    %v4661 = vcvt.s32.f32 %v4653
    %v4662 = vcvt.s32.f32 %v4654
    %v4663 = vcvt.s32.f32 %v4655
    %v4664 = vcvt.s32.f32 %v4656
    %v4665 = vcvt.s32.f32 %v4657
    %v4666 = vcvt.s32.f32 %v4658
    %v4667 = vcvt.s32.f32 %v4659
    %v4668 = vmul.f32 %v4660, 1.1920929e-07
    %v4669 = vmul.f32 %v4661, 1.1920929e-07
    %v4670 = vmul.f32 %v4662, 1.1920929e-07
    %v4671 = vmul.f32 %v4663, 1.1920929e-07
    %v4672 = vmul.f32 %v4664, 1.1920929e-07
    %v4673 = vmul.f32 %v4665, 1.1920929e-07
    %v4674 = vmul.f32 %v4666, 1.1920929e-07
    %v4675 = vmul.f32 %v4667, 1.1920929e-07
    %vm4676 = vcmp.ge.f32.partialorder %v4668, 0.3
    %vm4677 = vcmp.ge.f32.partialorder %v4669, 0.3
    %vm4678 = vcmp.ge.f32.partialorder %v4670, 0.3
    %vm4679 = vcmp.ge.f32.partialorder %v4671, 0.3
    %vm4680 = vcmp.ge.f32.partialorder %v4672, 0.3
    %vm4681 = vcmp.ge.f32.partialorder %v4673, 0.3
    %vm4682 = vcmp.ge.f32.partialorder %v4674, 0.3
    %vm4683 = vcmp.ge.f32.partialorder %v4675, 0.3
    %v4684 = vmul.f32 %v4562, 1.4285715
    %v4685 = vmul.f32 %v4563, 1.4285715
    %v4686 = vmul.f32 %v4564, 1.4285715
    %v4687 = vmul.f32 %v4565, 1.4285715
    %v4688 = vmul.f32 %v4566, 1.4285715
    %v4689 = vmul.f32 %v4567, 1.4285715
    %v4690 = vmul.f32 %v4568, 1.4285715
    %v4691 = vmul.f32 %v4569, 1.4285715
    %v4692 = vsel %vm4676, %v4684, 0.0
    %v4693 = vsel %vm4677, %v4685, 0.0
    %v4694 = vsel %vm4678, %v4686, 0.0
    %v4695 = vsel %vm4679, %v4687, 0.0
    %v4696 = vsel %vm4680, %v4688, 0.0
    %v4697 = vsel %vm4681, %v4689, 0.0
    %v4698 = vsel %vm4682, %v4690, 0.0
    %v4699 = vsel %vm4683, %v4691, 0.0
    %v4700 = vld [vmem:[%s8] sm:$0xff]
    %v4701 = vld [vmem:[%s8 + $0x8] sm:$0xff]
    %v4702 = vld [vmem:[%s8 + $0x10] sm:$0xff]
    %v4703 = vld [vmem:[%s8 + $0x18] sm:$0xff]
    %v4704 = vld [vmem:[%s8 + $0x20] sm:$0xff]
    %v4705 = vld [vmem:[%s8 + $0x28] sm:$0xff]
    %v4706 = vld [vmem:[%s8 + $0x30] sm:$0xff]
    %v4707 = vld [vmem:[%s8 + $0x38] sm:$0xff]
    %v4708 = vld [vmem:[%s8 + $0x40] sm:$0xff]
    %v4709 = vld [vmem:[%s8 + $0x48] sm:$0xff]
    %v4710 = vld [vmem:[%s8 + $0x50] sm:$0xff]
    %v4711 = vld [vmem:[%s8 + $0x58] sm:$0xff]
    %v4712 = vld [vmem:[%s8 + $0x60] sm:$0xff]
    %v4713 = vld [vmem:[%s8 + $0x68] sm:$0xff]
    %v4714 = vld [vmem:[%s8 + $0x70] sm:$0xff]
    %v4715 = vld [vmem:[%s8 + $0x78] sm:$0xff]
    %v4716 = vld [vmem:[%s8 + $0x80] sm:$0xff]
    %v4717 = vld [vmem:[%s8 + $0x88] sm:$0xff]
    %v4718 = vld [vmem:[%s8 + $0x90] sm:$0xff]
    %v4719 = vld [vmem:[%s8 + $0x98] sm:$0xff]
    %v4720 = vld [vmem:[%s8 + $0xa0] sm:$0xff]
    %v4721 = vld [vmem:[%s8 + $0xa8] sm:$0xff]
    %v4722 = vld [vmem:[%s8 + $0xb0] sm:$0xff]
    %v4723 = vld [vmem:[%s8 + $0xb8] sm:$0xff]
    %v4724 = vld [vmem:[%s8 + $0xc0] sm:$0xff]
    %v4725 = vld [vmem:[%s8 + $0xc8] sm:$0xff]
    %v4726 = vld [vmem:[%s8 + $0xd0] sm:$0xff]
    %v4727 = vld [vmem:[%s8 + $0xd8] sm:$0xff]
    %v4728 = vld [vmem:[%s8 + $0xe0] sm:$0xff]
    %v4729 = vld [vmem:[%s8 + $0xe8] sm:$0xff]
    %v4730 = vld [vmem:[%s8 + $0xf0] sm:$0xff]
    %v4731 = vld [vmem:[%s8 + $0xf8] sm:$0xff]
    %v4732 = vunpack.c.l.s8.bf16 %v4700
    %v4733 = vunpack.c.l.s8.bf16 %v4701
    %v4734 = vunpack.c.h.s8.bf16 %v4700
    %v4735 = vunpack.c.h.s8.bf16 %v4701
    %v4736 = vunpack.c.l.s8.bf16 %v4702
    %v4737 = vunpack.c.l.s8.bf16 %v4703
    %v4738 = vunpack.c.h.s8.bf16 %v4702
    %v4739 = vunpack.c.h.s8.bf16 %v4703
    %v4740 = vunpack.c.l.s8.bf16 %v4704
    %v4741 = vunpack.c.l.s8.bf16 %v4705
    %v4742 = vunpack.c.h.s8.bf16 %v4704
    %v4743 = vunpack.c.h.s8.bf16 %v4705
    %v4744 = vunpack.c.l.s8.bf16 %v4706
    %v4745 = vunpack.c.l.s8.bf16 %v4707
    %v4746 = vunpack.c.h.s8.bf16 %v4706
    %v4747 = vunpack.c.h.s8.bf16 %v4707
    %v4748 = vunpack.c.l.s8.bf16 %v4708
    %v4749 = vunpack.c.l.s8.bf16 %v4709
    %v4750 = vunpack.c.h.s8.bf16 %v4708
    %v4751 = vunpack.c.h.s8.bf16 %v4709
    %v4752 = vunpack.c.l.s8.bf16 %v4710
    %v4753 = vunpack.c.l.s8.bf16 %v4711
    %v4754 = vunpack.c.h.s8.bf16 %v4710
    %v4755 = vunpack.c.h.s8.bf16 %v4711
    %v4756 = vunpack.c.l.s8.bf16 %v4712
    %v4757 = vunpack.c.l.s8.bf16 %v4713
    %v4758 = vunpack.c.h.s8.bf16 %v4712
    %v4759 = vunpack.c.h.s8.bf16 %v4713
    %v4760 = vunpack.c.l.s8.bf16 %v4714
    %v4761 = vunpack.c.l.s8.bf16 %v4715
    %v4762 = vunpack.c.h.s8.bf16 %v4714
    %v4763 = vunpack.c.h.s8.bf16 %v4715
    %v4764 = vunpack.c.l.s8.bf16 %v4716
    %v4765 = vunpack.c.l.s8.bf16 %v4717
    %v4766 = vunpack.c.h.s8.bf16 %v4716
    %v4767 = vunpack.c.h.s8.bf16 %v4717
    %v4768 = vunpack.c.l.s8.bf16 %v4718
    %v4769 = vunpack.c.l.s8.bf16 %v4719
    %v4770 = vunpack.c.h.s8.bf16 %v4718
    %v4771 = vunpack.c.h.s8.bf16 %v4719
    %v4772 = vunpack.c.l.s8.bf16 %v4720
    %v4773 = vunpack.c.l.s8.bf16 %v4721
    %v4774 = vunpack.c.h.s8.bf16 %v4720
    %v4775 = vunpack.c.h.s8.bf16 %v4721
    %v4776 = vunpack.c.l.s8.bf16 %v4722
    %v4777 = vunpack.c.l.s8.bf16 %v4723
    %v4778 = vunpack.c.h.s8.bf16 %v4722
    %v4779 = vunpack.c.h.s8.bf16 %v4723
    %v4780 = vunpack.c.l.s8.bf16 %v4724
    %v4781 = vunpack.c.l.s8.bf16 %v4725
    %v4782 = vunpack.c.h.s8.bf16 %v4724
    %v4783 = vunpack.c.h.s8.bf16 %v4725
    %v4784 = vunpack.c.l.s8.bf16 %v4726
    %v4785 = vunpack.c.l.s8.bf16 %v4727
    %v4786 = vunpack.c.h.s8.bf16 %v4726
    %v4787 = vunpack.c.h.s8.bf16 %v4727
    %v4788 = vunpack.c.l.s8.bf16 %v4728
    %v4789 = vunpack.c.l.s8.bf16 %v4729
    %v4790 = vunpack.c.h.s8.bf16 %v4728
    %v4791 = vunpack.c.h.s8.bf16 %v4729
    %v4792 = vunpack.c.l.s8.bf16 %v4730
    %v4793 = vunpack.c.l.s8.bf16 %v4731
    %v4794 = vunpack.c.h.s8.bf16 %v4730
    %v4795 = vunpack.c.h.s8.bf16 %v4731
    %v4796 = vpack.c.bf16 %v4696, %v4692
    %v4797 = vpack.c.bf16 %v4697, %v4693
    %v4798 = vpack.c.bf16 %v4698, %v4694
    %v4799 = vpack.c.bf16 %v4699, %v4695
    %4800 = vmatprep.subr.bf16.mxu0 %v4733
    %4801 = vmatpush1.bf16.msra.mxu0 %v4732
    %4802 = vmatprep.subr.bf16.mxu0 %v4735
    %4803 = vmatpush1.bf16.msra.mxu0 %v4734
    %4804 = vmatprep.subr.bf16.mxu0 %v4737
    %4805 = vmatpush1.bf16.msra.mxu0 %v4736
    %4806 = vmatprep.subr.bf16.mxu0 %v4739
    %4807 = vmatpush1.bf16.msra.mxu0 %v4738
    %4808 = vmatprep.subr.bf16.mxu0 %v4741
    %4809 = vmatpush1.bf16.msra.mxu0 %v4740
    %4810 = vmatprep.subr.bf16.mxu0 %v4743
    %4811 = vmatpush1.bf16.msra.mxu0 %v4742
    %4812 = vmatprep.subr.bf16.mxu0 %v4745
    %4813 = vmatpush1.bf16.msra.mxu0 %v4744
    %4814 = vmatprep.subr.bf16.mxu0 %v4747
    %4815 = vmatpush1.bf16.msra.mxu0 %v4746
    %4816 = vmatprep.subr.bf16.mxu0 %v4749
    %4817 = vmatpush1.bf16.msra.mxu0 %v4748
    %4818 = vmatprep.subr.bf16.mxu0 %v4751
    %4819 = vmatpush1.bf16.msra.mxu0 %v4750
    %4820 = vmatprep.subr.bf16.mxu0 %v4753
    %4821 = vmatpush1.bf16.msra.mxu0 %v4752
    %4822 = vmatprep.subr.bf16.mxu0 %v4755
    %4823 = vmatpush1.bf16.msra.mxu0 %v4754
    %4824 = vmatprep.subr.bf16.mxu0 %v4757
    %4825 = vmatpush1.bf16.msra.mxu0 %v4756
    %4826 = vmatprep.subr.bf16.mxu0 %v4759
    %4827 = vmatpush1.bf16.msra.mxu0 %v4758
    %4828 = vmatprep.subr.bf16.mxu0 %v4761
    %4829 = vmatpush1.bf16.msra.mxu0 %v4760
    %4830 = vmatprep.subr.bf16.mxu0 %v4763
    %4831 = vmatpush1.bf16.msra.mxu0 %v4762
    %4832 = vmatprep.mubr.bf16.mxu0 %v4797
    %4833 = vmatmul.mubr.bf16.gmra.mrb[0].mxu0 %v4796
    %v4834 = vpop.f32.mrb[0].mxu0
    %v4835 = vadd.f32 0.0, %v4834
    %v4836 = vpop.f32.mrb[0].mxu0
    %v4837 = vadd.f32 0.0, %v4836
    %v4838 = vpop.f32.mrb[0].mxu0
    %v4839 = vadd.f32 0.0, %v4838
    %v4840 = vpop.f32.mrb[0].mxu0
    %v4841 = vadd.f32 0.0, %v4840
    %4842 = vdwg.mxu0
    %4843 = vmatprep.subr.bf16.mxu0 %v4765
    %4844 = vmatpush1.bf16.msra.mxu0 %v4764
    %4845 = vmatprep.subr.bf16.mxu0 %v4767
    %4846 = vmatpush1.bf16.msra.mxu0 %v4766
    %4847 = vmatprep.subr.bf16.mxu0 %v4769
    %4848 = vmatpush1.bf16.msra.mxu0 %v4768
    %4849 = vmatprep.subr.bf16.mxu0 %v4771
    %4850 = vmatpush1.bf16.msra.mxu0 %v4770
    %4851 = vmatprep.subr.bf16.mxu0 %v4773
    %4852 = vmatpush1.bf16.msra.mxu0 %v4772
    %4853 = vmatprep.subr.bf16.mxu0 %v4775
    %4854 = vmatpush1.bf16.msra.mxu0 %v4774
    %4855 = vmatprep.subr.bf16.mxu0 %v4777
    %4856 = vmatpush1.bf16.msra.mxu0 %v4776
    %4857 = vmatprep.subr.bf16.mxu0 %v4779
    %4858 = vmatpush1.bf16.msra.mxu0 %v4778
    %4859 = vmatprep.subr.bf16.mxu0 %v4781
    %4860 = vmatpush1.bf16.msra.mxu0 %v4780
    %4861 = vmatprep.subr.bf16.mxu0 %v4783
    %4862 = vmatpush1.bf16.msra.mxu0 %v4782
    %4863 = vmatprep.subr.bf16.mxu0 %v4785
    %4864 = vmatpush1.bf16.msra.mxu0 %v4784
    %4865 = vmatprep.subr.bf16.mxu0 %v4787
    %4866 = vmatpush1.bf16.msra.mxu0 %v4786
    %4867 = vmatprep.subr.bf16.mxu0 %v4789
    %4868 = vmatpush1.bf16.msra.mxu0 %v4788
    %4869 = vmatprep.subr.bf16.mxu0 %v4791
    %4870 = vmatpush1.bf16.msra.mxu0 %v4790
    %4871 = vmatprep.subr.bf16.mxu0 %v4793
    %4872 = vmatpush1.bf16.msra.mxu0 %v4792
    %4873 = vmatprep.subr.bf16.mxu0 %v4795
    %4874 = vmatpush1.bf16.msra.mxu0 %v4794
    %4875 = vmatprep.mubr.bf16.mxu0 %v4799
    %4876 = vmatmul.mubr.bf16.gmra.mrb[0].mxu0 %v4798
    %v4877 = vpop.f32.mrb[0].mxu0
    %v4878 = vadd.f32 %v4835, %v4877
    %v4879 = vpop.f32.mrb[0].mxu0
    %v4880 = vadd.f32 %v4837, %v4879
    %v4881 = vpop.f32.mrb[0].mxu0
    %v4882 = vadd.f32 %v4839, %v4881
    %v4883 = vpop.f32.mrb[0].mxu0
    %v4884 = vadd.f32 %v4841, %v4883
    %4885 = vdwg.mxu0
    %v4886 = vld [vmem:[%s9] sm:$0x3]
    %v4888 = vlaneseq
    %v4889 = vshrl.u32 %v4888, 7
    %v4890 = vsub.s32 0, %v4889
    %v4891 = vrot.slane %v4886, %v4890
    %v4892 = vlaneseq
    %v4893 = vshrl.u32 %v4892, 7
    %v4894 = vsub.s32 1, %v4893
    %v4895 = vrot.slane %v4886, %v4894
    %v4898 = vmul.f32 %v4878, %v4891
    %v4899 = vmul.f32 %v4880, %v4895
    %v4900 = vmul.f32 %v4882, %v4891
    %v4901 = vmul.f32 %v4884, %v4895
    %v4902 = vld [vmem:[%s10] sm:$0x3]
    %v4904 = vlaneseq
    %v4905 = vshrl.u32 %v4904, 7
    %v4906 = vsub.s32 0, %v4905
    %v4907 = vrot.slane %v4902, %v4906
    %v4908 = vlaneseq
    %v4909 = vshrl.u32 %v4908, 7
    %v4910 = vsub.s32 1, %v4909
    %v4911 = vrot.slane %v4902, %v4910
    %v4914 = vadd.f32 %v4898, %v4907
    %v4915 = vadd.f32 %v4899, %v4911
    %v4916 = vadd.f32 %v4900, %v4907
    %v4917 = vadd.f32 %v4901, %v4911
    %v4918 = vmax.f32 %v4914, 0.0
    %v4919 = vmax.f32 %v4915, 0.0
    %v4920 = vmax.f32 %v4916, 0.0
    %v4921 = vmax.f32 %v4917, 0.0
    %v4922 = vadd.s32 %v3506, 1536
    %v4923 = vadd.s32 %v3507, 1536
    %v4924 = vadd.s32 %v4922, %v3498
    %v4925 = vadd.s32 %v4922, %v3499
    %v4926 = vadd.s32 %v4923, %v3498
    %v4927 = vadd.s32 %v4923, %v3499
    %v4928 = vxor.u32 %v4924, %v3525
    %v4929 = vxor.u32 %v4925, %v3525
    %v4930 = vxor.u32 %v4926, %v3525
    %v4931 = vxor.u32 %v4927, %v3525
    %v4932 = vshrl.u32 %v4928, 16
    %v4933 = vshrl.u32 %v4929, 16
    %v4934 = vshrl.u32 %v4930, 16
    %v4935 = vshrl.u32 %v4931, 16
    %v4936 = vxor.u32 %v4928, %v4932
    %v4937 = vxor.u32 %v4929, %v4933
    %v4938 = vxor.u32 %v4930, %v4934
    %v4939 = vxor.u32 %v4931, %v4935
    %v4940 = vmul.u32 %v4936, 2146121005
    %v4941 = vmul.u32 %v4937, 2146121005
    %v4942 = vmul.u32 %v4938, 2146121005
    %v4943 = vmul.u32 %v4939, 2146121005
    %v4944 = vshrl.u32 %v4940, 15
    %v4945 = vshrl.u32 %v4941, 15
    %v4946 = vshrl.u32 %v4942, 15
    %v4947 = vshrl.u32 %v4943, 15
    %v4948 = vxor.u32 %v4940, %v4944
    %v4949 = vxor.u32 %v4941, %v4945
    %v4950 = vxor.u32 %v4942, %v4946
    %v4951 = vxor.u32 %v4943, %v4947
    %v4952 = vmul.u32 %v4948, 2221713035
    %v4953 = vmul.u32 %v4949, 2221713035
    %v4954 = vmul.u32 %v4950, 2221713035
    %v4955 = vmul.u32 %v4951, 2221713035
    %v4956 = vshrl.u32 %v4952, 16
    %v4957 = vshrl.u32 %v4953, 16
    %v4958 = vshrl.u32 %v4954, 16
    %v4959 = vshrl.u32 %v4955, 16
    %v4960 = vxor.u32 %v4952, %v4956
    %v4961 = vxor.u32 %v4953, %v4957
    %v4962 = vxor.u32 %v4954, %v4958
    %v4963 = vxor.u32 %v4955, %v4959
    %v4964 = vand.u32 %v4960, 8388607
    %v4965 = vand.u32 %v4961, 8388607
    %v4966 = vand.u32 %v4962, 8388607
    %v4967 = vand.u32 %v4963, 8388607
    %v4968 = vcvt.s32.f32 %v4964
    %v4969 = vcvt.s32.f32 %v4965
    %v4970 = vcvt.s32.f32 %v4966
    %v4971 = vcvt.s32.f32 %v4967
    %v4972 = vmul.f32 %v4968, 1.1920929e-07
    %v4973 = vmul.f32 %v4969, 1.1920929e-07
    %v4974 = vmul.f32 %v4970, 1.1920929e-07
    %v4975 = vmul.f32 %v4971, 1.1920929e-07
    %vm4976 = vcmp.ge.f32.partialorder %v4972, 0.3
    %vm4977 = vcmp.ge.f32.partialorder %v4973, 0.3
    %vm4978 = vcmp.ge.f32.partialorder %v4974, 0.3
    %vm4979 = vcmp.ge.f32.partialorder %v4975, 0.3
    %v4980 = vmul.f32 %v4918, 1.4285715
    %v4981 = vmul.f32 %v4919, 1.4285715
    %v4982 = vmul.f32 %v4920, 1.4285715
    %v4983 = vmul.f32 %v4921, 1.4285715
    %v4984 = vsel %vm4976, %v4980, 0.0
    %v4985 = vsel %vm4977, %v4981, 0.0
    %v4986 = vsel %vm4978, %v4982, 0.0
    %v4987 = vsel %vm4979, %v4983, 0.0
    %v4988 = vld [vmem:[%s11] sm:$0x3]
    %v4989 = vunpack.c.l.bf16 %v4988
    %v4991 = vlaneseq
    %v4992 = vshrl.u32 %v4991, 7
    %v4993 = vsub.s32 0, %v4992
    %v4994 = vrot.slane %v4989, %v4993
    %v4995 = vlaneseq
    %v4996 = vshrl.u32 %v4995, 7
    %v4997 = vsub.s32 2, %v4996
    %v4998 = vrot.slane %v4989, %v4997
    %v5001 = vlaneseq
    %v5002 = vshrl.u32 %v5001, 7
    %v5003 = vsub.s32 0, %v5002
    %v5004 = vrot.slane %v4994, %v5003
    %v5005 = vlaneseq
    %v5006 = vshrl.u32 %v5005, 7
    %v5007 = vsub.s32 0, %v5006
    %v5008 = vrot.slane %v4998, %v5007
    %v5009 = vmul.f32 %v4984, %v5004
    %v5010 = vmul.f32 %v4985, %v5008
    %v5011 = vmul.f32 %v4986, %v5004
    %v5012 = vmul.f32 %v4987, %v5008
    %v5013 = vadd.f32 %v5009, %v5010
    %5014 = vadd.xlane.f32.xlu0 %v5013
    %v5015 = vpop.xlane.xlu0 %5014
    %v5016 = vadd.f32 %v5011, %v5012
    %5017 = vadd.xlane.f32.xlu0 %v5016
    %v5018 = vpop.xlane.xlu0 %5017
    %v5019 = vld [vmem:[#allocation4] sm:$0x1]
    %v5021 = vlaneseq
    %v5022 = vshrl.u32 %v5021, 7
    %v5023 = vsub.s32 0, %v5022
    %v5024 = vrot.slane %v5019, %v5023
    %v5026 = vadd.f32 %v5015, %v5024
    %v5027 = vadd.f32 %v5018, %v5024
    %v5028 = vsub.f32 0.0, %v5026
    %v5029 = vsub.f32 0.0, %v5027
    %v5030 = vmul.f32 %v5028, 1.442695
    %v5031 = vpow.pop %v5030
    %v5032 = vmul.f32 %v5029, 1.442695
    %v5033 = vpow.pop %v5032
    %v5034 = vadd.f32 %v5031, 1.0
    %v5035 = vadd.f32 %v5033, 1.0
    %v5036 = vrcp.pop %v5034
    %v5037 = vmul.f32 1.0, %v5036
    %v5038 = vrcp.pop %v5035
    %v5039 = vmul.f32 1.0, %v5038
    %vm5040 = vcmask 7168
    %5041 = vst.msk [vmem:[%s13] sm:$0xff] %vm5040, %v5037
    %5042 = vst.msk [vmem:[%s13 + $0x8] sm:$0xff] %vm5040, %v5039
    // Predicated region
    $region58: #{discriminator_forward.1} parent=1 // pred_check
      _
    $region59: #{discriminator_forward.1} parent=1 // pred_check_branch
      %5044 = sbr.rel (0) target = $region61
    $region60: #{discriminator_forward.1} parent=1 // pred_region
      _
    $region61: #{discriminator_forward.1} parent=1 // pred_fallthru
      _
    // Predicated region
    $region62: #{discriminator_forward.1} parent=1 // pred_check
      _
    $region63: #{discriminator_forward.1} parent=1 // pred_check_branch
      %5046 = sbr.rel (0) target = $region65
    $region64: #{discriminator_forward.1} parent=1 // pred_region
      _
    $region65: #{discriminator_forward.1} parent=1 // pred_fallthru
      _
    %5047 = vsyncpa [#allocation6], 1
    %5048 = vsyncpa [#allocation8], 1

</llo_original>
